<compile_context>
chip_gen: v6e
topology: v6e:2x2x1
jax: 0.10.0
libtpu: 0.0.40
codegen_flags: <defaults>
</compile_context>

<pallas_src>
import jax
import jax.numpy as jnp
from jax.experimental import pallas as pl
from jax.experimental.pallas import tpu as pltpu

# ---------------- config (scaled-down, shapes consistent with the module) ----
NTOKEN = 100      # vocab (141934 in the original, scaled down)
NINP = 32         # embedding dim (300 in the original)
NHID = 32         # LSTM hidden dim (300 in the original)
NLAYERS = 2
SEQ = 8
BATCH = 2

# Set to jnp.bfloat16 on v6e/v7x for ~2x MXU throughput and half the weight
# bytes in VMEM (accumulation, gate math and the h/c carry stay f32).  Kept
# f32 here so the check against the f32 JAX reference stays tight and v5e
# (no bf16 VPU/EUP) is safe; switching to bf16 requires loosening tolerances.
MATMUL_DTYPE = jnp.float32

# Bounded unroll for the serial time loop (full unroll only when T <= this).
TIME_UNROLL = 8


# ---------------- Pallas kernel: one bidirectional LSTM layer ----------------
def _bilstm_layer_kernel(x2d_ref, wih_ref, whh_ref, b_ref, h0_ref, c0_ref,
                         out_ref, pre_x_ref):
    """Both directions of one LSTM layer over the full sequence.

    x2d_ref  : (T*B, In)   input sequence, time-major rows (VMEM resident)
    wih_ref  : (In, 8H)    [wih_f | wih_r], each (In,4H), gate order i|f|g|o
    whh_ref  : (H, 8H)     [whh_f | whh_r]
    b_ref    : (1, 8H)     [b_f | b_r]  (b_ih + b_hh per direction)
    h0_ref   : (2B, H)     rows :B forward h0, rows B: reverse h0
    c0_ref   : (2B, H)     rows :B forward c0, rows B: reverse c0
    out_ref  : (T, B, 2H)  [..., :H] forward, [..., H:] reverse
    pre_x_ref: (T*B, 8H)   VMEM scratch for the hoisted input projection
    """
    T, B, H2 = out_ref.shape
    H = H2 // 2
    G = 4 * H

    # ---- prologue (runs once): hoisted input projection + bias --------------
    # One big lane-dense matmul with a real M dimension (T*B rows) instead of
    # T tiny (B, In) matmuls inside the serial recurrence.
    x2d = x2d_ref[...].astype(MATMUL_DTYPE)
    pre_x_ref[...] = (
        jnp.dot(x2d, wih_ref[...], preferred_element_type=jnp.float32)
        + b_ref[...])                                            # (T*B, 8H)

    # Hoisted once: recurrent weights and the direction-select mask.
    whh = whh_ref[...]                                           # (H, 8H)
    row = jax.lax.broadcasted_iota(jnp.int32, (2 * B, G), 0)
    is_fwd = row < B                                             # (2B, 4H)

    def body(t, carry):
        h_cat, c_cat = carry                                     # (2B, H) f32
        t_rev = T - 1 - t

        # Single fused recurrent matmul for both directions: (2B,H)@(H,8H).
        pre_h = jnp.dot(h_cat.astype(MATMUL_DTYPE), whh,
                        preferred_element_type=jnp.float32)      # (2B, 8H)
        # rows <B need the whh_f block, rows >=B the whh_r block.
        rec = jnp.where(is_fwd, pre_h[:, 0:G], pre_h[:, G:2 * G])  # (2B, 4H)

        # Hoisted input projections: fwd at time t, rev at time T-1-t.
        px_f = pre_x_ref[pl.ds(t * B, B), 0:G]                   # (B, 4H)
        px_r = pre_x_ref[pl.ds(t_rev * B, B), G:2 * G]           # (B, 4H)
        pre = jnp.concatenate([px_f, px_r], axis=0) + rec        # (2B, 4H)

        i = jax.nn.sigmoid(pre[:, 0 * H:1 * H])
        f = jax.nn.sigmoid(pre[:, 1 * H:2 * H])
        g = jnp.tanh(pre[:, 2 * H:3 * H])
        o = jax.nn.sigmoid(pre[:, 3 * H:4 * H])
        c_new = f * c_cat + i * g
        h_new = o * jnp.tanh(c_new)

        out_ref[t, :, 0:H] = h_new[0:B].astype(out_ref.dtype)
        out_ref[t_rev, :, H:2 * H] = h_new[B:2 * B].astype(out_ref.dtype)
        return h_new, c_new

    carry0 = (h0_ref[...].astype(jnp.float32),
              c0_ref[...].astype(jnp.float32))
    jax.lax.fori_loop(0, T, body, carry0, unroll=min(T, TIME_UNROLL))


def bilstm_layer(x, wih_cat, whh_cat, b_cat, h0_cat, c0_cat):
    """One bidirectional LSTM layer: x (T,B,In) -> (T,B,2H), single kernel."""
    T, B, in_dim = x.shape
    H = h0_cat.shape[-1]
    x2d = x.reshape(T * B, in_dim)   # free metadata reshape in XLA (row-major)
    return pl.pallas_call(
        _bilstm_layer_kernel,
        out_shape=jax.ShapeDtypeStruct((T, B, 2 * H), jnp.float32),
        # No grid at this toy scale: the whole sequence, weights and the
        # hoisted projection fit easily in scoped VMEM on all generations.
        scratch_shapes=[pltpu.VMEM((T * B, 8 * H), jnp.float32)],
    )(x2d, wih_cat, whh_cat, b_cat, h0_cat, c0_cat)


# ---------------- host-side parameter preparation (once, outside jit) --------
def _fuse_dir_params(wih, whh, b):
    """(4,H,In),(4,H,H),(4,1,H) -> (In,4H),(H,4H),(1,4H), gate order i|f|g|o."""
    H = wih.shape[1]
    wih_t = jnp.transpose(wih, (2, 0, 1)).reshape(wih.shape[2], 4 * H)
    whh_t = jnp.transpose(whh, (2, 0, 1)).reshape(whh.shape[2], 4 * H)
    b_t = b.reshape(1, 4 * H)
    return wih_t, whh_t, b_t


def prepare_layer_params(layer_params):
    """Fuse fwd|rev along the lane axis and pre-cast matmul operands once."""
    fused = []
    for p in layer_params:
        wih_f, whh_f, b_f = _fuse_dir_params(p["wih_f"], p["whh_f"], p["b_f"])
        wih_r, whh_r, b_r = _fuse_dir_params(p["wih_r"], p["whh_r"], p["b_r"])
        fused.append({
            "wih_cat": jnp.concatenate([wih_f, wih_r], axis=1).astype(MATMUL_DTYPE),
            "whh_cat": jnp.concatenate([whh_f, whh_r], axis=1).astype(MATMUL_DTYPE),
            "b_cat": jnp.concatenate([b_f, b_r], axis=1).astype(jnp.float32),
        })
    return fused


# ---------------- full module forward ----------------------------------------
def bilstm_forward(inp, hidden, embedding, fused_layer_params):
    """Mirrors BiLSTM.forward: returns (outp, emb).

    inp: (T, B) int32 ids; hidden = (h0, c0) each (2*NLAYERS, B, NHID).
    """
    h0, c0 = hidden
    # emb = self.drop(self.encoder(inp)); dropout is identity in eval mode.
    emb = jnp.take(embedding, inp, axis=0)                       # (T, B, NINP)
    # TODO(synk): training-mode dropout (p=0.5) on emb / between LSTM layers
    # is not applied (eval-mode identity).

    x = emb
    for layer in range(NLAYERS):
        fp = fused_layer_params[layer]
        h0_cat = jnp.concatenate([h0[2 * layer], h0[2 * layer + 1]], axis=0)
        c0_cat = jnp.concatenate([c0[2 * layer], c0[2 * layer + 1]], axis=0)
        x = bilstm_layer(x, fp["wih_cat"], fp["whh_cat"], fp["b_cat"],
                         h0_cat, c0_cat)                         # (T, B, 2H)

    outp = jnp.transpose(x, (1, 0, 2))                           # (B, T, 2H)
    return outp, emb


bilstm_forward_jit = jax.jit(bilstm_forward)


# ---------------- pure-JAX reference (for a correctness check) ---------------
def _lstm_dir_ref(x, wih, whh, bias, h0, c0, reverse):
    def step(carry, x_t):
        h, c = carry
        pre = (jnp.einsum("bi,ghi->gbh", x_t, wih)
               + jnp.einsum("bk,ghk->gbh", h, whh) + bias)
        i = jax.nn.sigmoid(pre[0])
        f = jax.nn.sigmoid(pre[1])
        g = jnp.tanh(pre[2])
        o = jax.nn.sigmoid(pre[3])
        c = f * c + i * g
        h = o * jnp.tanh(c)
        return (h, c), h

    xs = x[::-1] if reverse else x
    _, hs = jax.lax.scan(step, (h0, c0), xs)
    return hs[::-1] if reverse else hs


def bilstm_forward_ref(inp, hidden, embedding, layer_params):
    h0, c0 = hidden
    emb = jnp.take(embedding, inp, axis=0)
    x = emb
    for layer in range(NLAYERS):
        p = layer_params[layer]
        out_f = _lstm_dir_ref(x, p["wih_f"], p["whh_f"], p["b_f"],
                              h0[2 * layer], c0[2 * layer], reverse=False)
        out_r = _lstm_dir_ref(x, p["wih_r"], p["whh_r"], p["b_r"],
                              h0[2 * layer + 1], c0[2 * layer + 1], reverse=True)
        x = jnp.concatenate([out_f, out_r], axis=-1)
    return jnp.transpose(x, (1, 0, 2)), emb


# ---------------- deterministic parameter init --------------------------------
def init_params(key):
    k_embed, key = jax.random.split(key)
    embedding = jax.random.normal(k_embed, (NTOKEN, NINP), jnp.float32) * 0.1

    bound = 1.0 / jnp.sqrt(NHID)
    layer_params = []
    for layer in range(NLAYERS):
        in_dim = NINP if layer == 0 else 2 * NHID
        p = {}
        for tag in ("f", "r"):  # forward / reverse direction
            key, k1, k2, k3, k4 = jax.random.split(key, 5)
            p["wih_" + tag] = jax.random.uniform(
                k1, (4, NHID, in_dim), jnp.float32, -bound, bound)
            p["whh_" + tag] = jax.random.uniform(
                k2, (4, NHID, NHID), jnp.float32, -bound, bound)
            b_ih = jax.random.uniform(k3, (4, 1, NHID), jnp.float32, -bound, bound)
            b_hh = jax.random.uniform(k4, (4, 1, NHID), jnp.float32, -bound, bound)
            p["b_" + tag] = b_ih + b_hh
        layer_params.append(p)
    return embedding, layer_params


# ---------------- main --------------------------------------------------------
if __name__ == "__main__":
    key = jax.random.PRNGKey(0)
    k_tok, k_h, k_c, k_par = jax.random.split(key, 4)

    inp = jax.random.randint(k_tok, (SEQ, BATCH), 0, NTOKEN, dtype=jnp.int32)
    h0 = jax.random.normal(k_h, (2 * NLAYERS, BATCH, NHID), jnp.float32) * 0.1
    c0 = jax.random.normal(k_c, (2 * NLAYERS, BATCH, NHID), jnp.float32) * 0.1

    embedding, layer_params = init_params(k_par)
    fused_layer_params = prepare_layer_params(layer_params)   # once, host-side

    outp, emb = bilstm_forward_jit(inp, (h0, c0), embedding, fused_layer_params)
    outp = jax.block_until_ready(outp)
    emb = jax.block_until_ready(emb)

    assert outp.shape == (BATCH, SEQ, 2 * NHID), outp.shape
    assert emb.shape == (SEQ, BATCH, NINP), emb.shape

    outp_ref, emb_ref = bilstm_forward_ref(inp, (h0, c0), embedding, layer_params)
    if not jnp.allclose(outp, outp_ref, atol=1e-4, rtol=1e-4):
        raise AssertionError("Pallas BiLSTM output mismatch vs JAX reference")
    if not jnp.allclose(emb, emb_ref, atol=1e-6, rtol=1e-6):
        raise AssertionError("Embedding mismatch vs JAX reference")

    print("KERNEL_OK")
</pallas_src>

<mosaic_0001>
module attributes {stable_mosaic.version = 11 : i64} {
  func.func @_bilstm_layer_kernel(%arg0: memref<16x32xf32, #tpu.memory_space<vmem>>, %arg1: memref<32x256xf32, #tpu.memory_space<vmem>>, %arg2: memref<32x256xf32, #tpu.memory_space<vmem>>, %arg3: memref<1x256xf32, #tpu.memory_space<vmem>>, %arg4: memref<4x32xf32, #tpu.memory_space<vmem>>, %arg5: memref<4x32xf32, #tpu.memory_space<vmem>>, %arg6: memref<8x2x64xf32, #tpu.memory_space<vmem>>, %arg7: memref<16x256xf32, #tpu.memory_space<vmem>>) attributes {dimension_semantics = [], scalar_prefetch = 0 : i64, scratch_operands = 1 : i64, tpu.core_type = #tpu.core_type<tc>} {
    %c0 = arith.constant 0 : index
    %c0_0 = arith.constant 0 : index
    %0 = vector.load %arg0[%c0, %c0_0] : memref<16x32xf32, #tpu.memory_space<vmem>>, vector<16x32xf32>
    %c0_1 = arith.constant 0 : index
    %c0_2 = arith.constant 0 : index
    %1 = vector.load %arg1[%c0_1, %c0_2] : memref<32x256xf32, #tpu.memory_space<vmem>>, vector<32x256xf32>
    %cst = arith.constant dense<0.000000e+00> : vector<16x256xf32>
    %2 = tpu.matmul %0, %1, %cst {dimension_numbers = #tpu.dot_dimension_numbers<[1], [0], [0], [1], [0, 0, 1, 1], [], []>} : vector<16x32xf32>, vector<32x256xf32>, vector<16x256xf32> -> vector<16x256xf32>
    %c0_3 = arith.constant 0 : index
    %c0_4 = arith.constant 0 : index
    %3 = vector.load %arg3[%c0_3, %c0_4] : memref<1x256xf32, #tpu.memory_space<vmem>>, vector<1x256xf32>
    %4 = vector.broadcast %3 : vector<1x256xf32> to vector<16x256xf32>
    %5 = arith.addf %2, %4 : vector<16x256xf32>
    %c0_5 = arith.constant 0 : index
    %c0_6 = arith.constant 0 : index
    %6 = vector.load %arg7[%c0_5, %c0_6] : memref<16x256xf32, #tpu.memory_space<vmem>>, vector<16x256xf32>
    tpu.vector_store %arg7[%c0_5, %c0_6], %5 {strides = array<i32>} : memref<16x256xf32, #tpu.memory_space<vmem>>, vector<16x256xf32>,
    %c0_7 = arith.constant 0 : index
    %c0_8 = arith.constant 0 : index
    %7 = vector.load %arg2[%c0_7, %c0_8] : memref<32x256xf32, #tpu.memory_space<vmem>>, vector<32x256xf32>
    %8 = tpu.iota {dimensions = array<i32: 0>} : vector<4x128xi32>
    %c2_i32 = arith.constant 2 : i32
    %9 = vector.broadcast %c2_i32 : i32 to vector<4x128xi32>
    %10 = arith.cmpi slt, %8, %9 : vector<4x128xi32>
    %c0_9 = arith.constant 0 : index
    %c0_10 = arith.constant 0 : index
    %11 = vector.load %arg4[%c0_9, %c0_10] : memref<4x32xf32, #tpu.memory_space<vmem>>, vector<4x32xf32>
    %c0_11 = arith.constant 0 : index
    %c0_12 = arith.constant 0 : index
    %12 = vector.load %arg5[%c0_11, %c0_12] : memref<4x32xf32, #tpu.memory_space<vmem>>, vector<4x32xf32>
    %c0_i32 = arith.constant 0 : i32
    %c7_i32 = arith.constant 7 : i32
    %13 = arith.subi %c7_i32, %c0_i32 : i32
    %cst_13 = arith.constant dense<0.000000e+00> : vector<4x256xf32>
    %14 = tpu.matmul %11, %7, %cst_13 {dimension_numbers = #tpu.dot_dimension_numbers<[1], [0], [0], [1], [0, 0, 1, 1], [], []>} : vector<4x32xf32>, vector<32x256xf32>, vector<4x256xf32> -> vector<4x256xf32>
    %15 = vector.extract_strided_slice %14 {offsets = [0, 0], sizes = [4, 128], strides = [1, 1]} : vector<4x256xf32> to vector<4x128xf32>
    %16 = vector.extract_strided_slice %14 {offsets = [0, 128], sizes = [4, 128], strides = [1, 1]} : vector<4x256xf32> to vector<4x128xf32>
    %17 = arith.select %10, %15, %16 : vector<4x128xi1>, vector<4x128xf32>
    %c2_i32_14 = arith.constant 2 : i32
    %18 = arith.muli %c0_i32, %c2_i32_14 : i32
    %19 = arith.index_cast %18 : i32 to index
    %c0_15 = arith.constant 0 : index
    %20 = vector.load %arg7[%19, %c0_15] : memref<16x256xf32, #tpu.memory_space<vmem>>, vector<2x128xf32>
    %c2_i32_16 = arith.constant 2 : i32
    %21 = arith.muli %13, %c2_i32_16 : i32
    %22 = arith.index_cast %21 : i32 to index
    %c128 = arith.constant 128 : index
    %23 = vector.load %arg7[%22, %c128] : memref<16x256xf32, #tpu.memory_space<vmem>>, vector<2x128xf32>
    %24 = tpu.concatenate %20, %23 in 0 : vector<2x128xf32>, vector<2x128xf32> -> vector<4x128xf32>
    %25 = arith.addf %24, %17 : vector<4x128xf32>
    %26 = vector.extract_strided_slice %25 {offsets = [0, 0], sizes = [4, 32], strides = [1, 1]} : vector<4x128xf32> to vector<4x32xf32>
    %27 = arith.negf %26 : vector<4x32xf32>
    %28 = math.exp %27 : vector<4x32xf32>
    %cst_17 = arith.constant 1.000000e+00 : f32
    %29 = vector.broadcast %cst_17 : f32 to vector<4x32xf32>
    %30 = arith.addf %29, %28 : vector<4x32xf32>
    %31 = arith.divf %29, %30 : vector<4x32xf32>
    %32 = vector.extract_strided_slice %25 {offsets = [0, 32], sizes = [4, 32], strides = [1, 1]} : vector<4x128xf32> to vector<4x32xf32>
    %33 = arith.negf %32 : vector<4x32xf32>
    %34 = math.exp %33 : vector<4x32xf32>
    %cst_18 = arith.constant 1.000000e+00 : f32
    %35 = vector.broadcast %cst_18 : f32 to vector<4x32xf32>
    %36 = arith.addf %35, %34 : vector<4x32xf32>
    %37 = arith.divf %35, %36 : vector<4x32xf32>
    %38 = vector.extract_strided_slice %25 {offsets = [0, 64], sizes = [4, 32], strides = [1, 1]} : vector<4x128xf32> to vector<4x32xf32>
    %39 = math.tanh %38 : vector<4x32xf32>
    %40 = vector.extract_strided_slice %25 {offsets = [0, 96], sizes = [4, 32], strides = [1, 1]} : vector<4x128xf32> to vector<4x32xf32>
    %41 = arith.negf %40 : vector<4x32xf32>
    %42 = math.exp %41 : vector<4x32xf32>
    %cst_19 = arith.constant 1.000000e+00 : f32
    %43 = vector.broadcast %cst_19 : f32 to vector<4x32xf32>
    %44 = arith.addf %43, %42 : vector<4x32xf32>
    %45 = arith.divf %43, %44 : vector<4x32xf32>
    %46 = arith.mulf %37, %12 : vector<4x32xf32>
    %47 = arith.mulf %31, %39 : vector<4x32xf32>
    %48 = arith.addf %46, %47 : vector<4x32xf32>
    %49 = math.tanh %48 : vector<4x32xf32>
    %50 = arith.mulf %45, %49 : vector<4x32xf32>
    %51 = vector.extract_strided_slice %50 {offsets = [0, 0], sizes = [2, 32], strides = [1, 1]} : vector<4x32xf32> to vector<2x32xf32>
    %52 = arith.index_cast %c0_i32 : i32 to index
    %c0_20 = arith.constant 0 : index
    %c0_21 = arith.constant 0 : index
    %53 = vector.load %arg6[%52, %c0_20, %c0_21] : memref<8x2x64xf32, #tpu.memory_space<vmem>>, vector<1x2x32xf32>
    %54 = vector.shape_cast %53 : vector<1x2x32xf32> to vector<2x32xf32>
    %55 = vector.shape_cast %51 : vector<2x32xf32> to vector<1x2x32xf32>
    tpu.vector_store %arg6[%52, %c0_20, %c0_21], %55 {strides = array<i32>} : memref<8x2x64xf32, #tpu.memory_space<vmem>>, vector<1x2x32xf32>,
    %56 = vector.extract_strided_slice %50 {offsets = [2, 0], sizes = [2, 32], strides = [1, 1]} : vector<4x32xf32> to vector<2x32xf32>
    %57 = arith.index_cast %13 : i32 to index
    %c0_22 = arith.constant 0 : index
    %c32 = arith.constant 32 : index
    %58 = vector.load %arg6[%57, %c0_22, %c32] : memref<8x2x64xf32, #tpu.memory_space<vmem>>, vector<1x2x32xf32>
    %59 = vector.shape_cast %58 : vector<1x2x32xf32> to vector<2x32xf32>
    %60 = vector.shape_cast %56 : vector<2x32xf32> to vector<1x2x32xf32>
    tpu.vector_store %arg6[%57, %c0_22, %c32], %60 {strides = array<i32>} : memref<8x2x64xf32, #tpu.memory_space<vmem>>, vector<1x2x32xf32>,
    %c1_i32 = arith.constant 1 : i32
    %c7_i32_23 = arith.constant 7 : i32
    %61 = arith.subi %c7_i32_23, %c1_i32 : i32
    %cst_24 = arith.constant dense<0.000000e+00> : vector<4x256xf32>
    %62 = tpu.matmul %50, %7, %cst_24 {dimension_numbers = #tpu.dot_dimension_numbers<[1], [0], [0], [1], [0, 0, 1, 1], [], []>} : vector<4x32xf32>, vector<32x256xf32>, vector<4x256xf32> -> vector<4x256xf32>
    %63 = vector.extract_strided_slice %62 {offsets = [0, 0], sizes = [4, 128], strides = [1, 1]} : vector<4x256xf32> to vector<4x128xf32>
    %64 = vector.extract_strided_slice %62 {offsets = [0, 128], sizes = [4, 128], strides = [1, 1]} : vector<4x256xf32> to vector<4x128xf32>
    %65 = arith.select %10, %63, %64 : vector<4x128xi1>, vector<4x128xf32>
    %c2_i32_25 = arith.constant 2 : i32
    %66 = arith.muli %c1_i32, %c2_i32_25 : i32
    %67 = arith.index_cast %66 : i32 to index
    %c0_26 = arith.constant 0 : index
    %68 = vector.load %arg7[%67, %c0_26] : memref<16x256xf32, #tpu.memory_space<vmem>>, vector<2x128xf32>
    %c2_i32_27 = arith.constant 2 : i32
    %69 = arith.muli %61, %c2_i32_27 : i32
    %70 = arith.index_cast %69 : i32 to index
    %c128_28 = arith.constant 128 : index
    %71 = vector.load %arg7[%70, %c128_28] : memref<16x256xf32, #tpu.memory_space<vmem>>, vector<2x128xf32>
    %72 = tpu.concatenate %68, %71 in 0 : vector<2x128xf32>, vector<2x128xf32> -> vector<4x128xf32>
    %73 = arith.addf %72, %65 : vector<4x128xf32>
    %74 = vector.extract_strided_slice %73 {offsets = [0, 0], sizes = [4, 32], strides = [1, 1]} : vector<4x128xf32> to vector<4x32xf32>
    %75 = arith.negf %74 : vector<4x32xf32>
    %76 = math.exp %75 : vector<4x32xf32>
    %cst_29 = arith.constant 1.000000e+00 : f32
    %77 = vector.broadcast %cst_29 : f32 to vector<4x32xf32>
    %78 = arith.addf %77, %76 : vector<4x32xf32>
    %79 = arith.divf %77, %78 : vector<4x32xf32>
    %80 = vector.extract_strided_slice %73 {offsets = [0, 32], sizes = [4, 32], strides = [1, 1]} : vector<4x128xf32> to vector<4x32xf32>
    %81 = arith.negf %80 : vector<4x32xf32>
    %82 = math.exp %81 : vector<4x32xf32>
    %cst_30 = arith.constant 1.000000e+00 : f32
    %83 = vector.broadcast %cst_30 : f32 to vector<4x32xf32>
    %84 = arith.addf %83, %82 : vector<4x32xf32>
    %85 = arith.divf %83, %84 : vector<4x32xf32>
    %86 = vector.extract_strided_slice %73 {offsets = [0, 64], sizes = [4, 32], strides = [1, 1]} : vector<4x128xf32> to vector<4x32xf32>
    %87 = math.tanh %86 : vector<4x32xf32>
    %88 = vector.extract_strided_slice %73 {offsets = [0, 96], sizes = [4, 32], strides = [1, 1]} : vector<4x128xf32> to vector<4x32xf32>
    %89 = arith.negf %88 : vector<4x32xf32>
    %90 = math.exp %89 : vector<4x32xf32>
    %cst_31 = arith.constant 1.000000e+00 : f32
    %91 = vector.broadcast %cst_31 : f32 to vector<4x32xf32>
    %92 = arith.addf %91, %90 : vector<4x32xf32>
    %93 = arith.divf %91, %92 : vector<4x32xf32>
    %94 = arith.mulf %85, %48 : vector<4x32xf32>
    %95 = arith.mulf %79, %87 : vector<4x32xf32>
    %96 = arith.addf %94, %95 : vector<4x32xf32>
    %97 = math.tanh %96 : vector<4x32xf32>
    %98 = arith.mulf %93, %97 : vector<4x32xf32>
    %99 = vector.extract_strided_slice %98 {offsets = [0, 0], sizes = [2, 32], strides = [1, 1]} : vector<4x32xf32> to vector<2x32xf32>
    %100 = arith.index_cast %c1_i32 : i32 to index
    %c0_32 = arith.constant 0 : index
    %c0_33 = arith.constant 0 : index
    %101 = vector.load %arg6[%100, %c0_32, %c0_33] : memref<8x2x64xf32, #tpu.memory_space<vmem>>, vector<1x2x32xf32>
    %102 = vector.shape_cast %101 : vector<1x2x32xf32> to vector<2x32xf32>
    %103 = vector.shape_cast %99 : vector<2x32xf32> to vector<1x2x32xf32>
    tpu.vector_store %arg6[%100, %c0_32, %c0_33], %103 {strides = array<i32>} : memref<8x2x64xf32, #tpu.memory_space<vmem>>, vector<1x2x32xf32>,
    %104 = vector.extract_strided_slice %98 {offsets = [2, 0], sizes = [2, 32], strides = [1, 1]} : vector<4x32xf32> to vector<2x32xf32>
    %105 = arith.index_cast %61 : i32 to index
    %c0_34 = arith.constant 0 : index
    %c32_35 = arith.constant 32 : index
    %106 = vector.load %arg6[%105, %c0_34, %c32_35] : memref<8x2x64xf32, #tpu.memory_space<vmem>>, vector<1x2x32xf32>
    %107 = vector.shape_cast %106 : vector<1x2x32xf32> to vector<2x32xf32>
    %108 = vector.shape_cast %104 : vector<2x32xf32> to vector<1x2x32xf32>
    tpu.vector_store %arg6[%105, %c0_34, %c32_35], %108 {strides = array<i32>} : memref<8x2x64xf32, #tpu.memory_space<vmem>>, vector<1x2x32xf32>,
    %c2_i32_36 = arith.constant 2 : i32
    %c7_i32_37 = arith.constant 7 : i32
    %109 = arith.subi %c7_i32_37, %c2_i32_36 : i32
    %cst_38 = arith.constant dense<0.000000e+00> : vector<4x256xf32>
    %110 = tpu.matmul %98, %7, %cst_38 {dimension_numbers = #tpu.dot_dimension_numbers<[1], [0], [0], [1], [0, 0, 1, 1], [], []>} : vector<4x32xf32>, vector<32x256xf32>, vector<4x256xf32> -> vector<4x256xf32>
    %111 = vector.extract_strided_slice %110 {offsets = [0, 0], sizes = [4, 128], strides = [1, 1]} : vector<4x256xf32> to vector<4x128xf32>
    %112 = vector.extract_strided_slice %110 {offsets = [0, 128], sizes = [4, 128], strides = [1, 1]} : vector<4x256xf32> to vector<4x128xf32>
    %113 = arith.select %10, %111, %112 : vector<4x128xi1>, vector<4x128xf32>
    %c2_i32_39 = arith.constant 2 : i32
    %114 = arith.muli %c2_i32_36, %c2_i32_39 : i32
    %115 = arith.index_cast %114 : i32 to index
    %c0_40 = arith.constant 0 : index
    %116 = vector.load %arg7[%115, %c0_40] : memref<16x256xf32, #tpu.memory_space<vmem>>, vector<2x128xf32>
    %c2_i32_41 = arith.constant 2 : i32
    %117 = arith.muli %109, %c2_i32_41 : i32
    %118 = arith.index_cast %117 : i32 to index
    %c128_42 = arith.constant 128 : index
    %119 = vector.load %arg7[%118, %c128_42] : memref<16x256xf32, #tpu.memory_space<vmem>>, vector<2x128xf32>
    %120 = tpu.concatenate %116, %119 in 0 : vector<2x128xf32>, vector<2x128xf32> -> vector<4x128xf32>
    %121 = arith.addf %120, %113 : vector<4x128xf32>
    %122 = vector.extract_strided_slice %121 {offsets = [0, 0], sizes = [4, 32], strides = [1, 1]} : vector<4x128xf32> to vector<4x32xf32>
    %123 = arith.negf %122 : vector<4x32xf32>
    %124 = math.exp %123 : vector<4x32xf32>
    %cst_43 = arith.constant 1.000000e+00 : f32
    %125 = vector.broadcast %cst_43 : f32 to vector<4x32xf32>
    %126 = arith.addf %125, %124 : vector<4x32xf32>
    %127 = arith.divf %125, %126 : vector<4x32xf32>
    %128 = vector.extract_strided_slice %121 {offsets = [0, 32], sizes = [4, 32], strides = [1, 1]} : vector<4x128xf32> to vector<4x32xf32>
    %129 = arith.negf %128 : vector<4x32xf32>
    %130 = math.exp %129 : vector<4x32xf32>
    %cst_44 = arith.constant 1.000000e+00 : f32
    %131 = vector.broadcast %cst_44 : f32 to vector<4x32xf32>
    %132 = arith.addf %131, %130 : vector<4x32xf32>
    %133 = arith.divf %131, %132 : vector<4x32xf32>
    %134 = vector.extract_strided_slice %121 {offsets = [0, 64], sizes = [4, 32], strides = [1, 1]} : vector<4x128xf32> to vector<4x32xf32>
    %135 = math.tanh %134 : vector<4x32xf32>
    %136 = vector.extract_strided_slice %121 {offsets = [0, 96], sizes = [4, 32], strides = [1, 1]} : vector<4x128xf32> to vector<4x32xf32>
    %137 = arith.negf %136 : vector<4x32xf32>
    %138 = math.exp %137 : vector<4x32xf32>
    %cst_45 = arith.constant 1.000000e+00 : f32
    %139 = vector.broadcast %cst_45 : f32 to vector<4x32xf32>
    %140 = arith.addf %139, %138 : vector<4x32xf32>
    %141 = arith.divf %139, %140 : vector<4x32xf32>
    %142 = arith.mulf %133, %96 : vector<4x32xf32>
    %143 = arith.mulf %127, %135 : vector<4x32xf32>
    %144 = arith.addf %142, %143 : vector<4x32xf32>
    %145 = math.tanh %144 : vector<4x32xf32>
    %146 = arith.mulf %141, %145 : vector<4x32xf32>
    %147 = vector.extract_strided_slice %146 {offsets = [0, 0], sizes = [2, 32], strides = [1, 1]} : vector<4x32xf32> to vector<2x32xf32>
    %148 = arith.index_cast %c2_i32_36 : i32 to index
    %c0_46 = arith.constant 0 : index
    %c0_47 = arith.constant 0 : index
    %149 = vector.load %arg6[%148, %c0_46, %c0_47] : memref<8x2x64xf32, #tpu.memory_space<vmem>>, vector<1x2x32xf32>
    %150 = vector.shape_cast %149 : vector<1x2x32xf32> to vector<2x32xf32>
    %151 = vector.shape_cast %147 : vector<2x32xf32> to vector<1x2x32xf32>
    tpu.vector_store %arg6[%148, %c0_46, %c0_47], %151 {strides = array<i32>} : memref<8x2x64xf32, #tpu.memory_space<vmem>>, vector<1x2x32xf32>,
    %152 = vector.extract_strided_slice %146 {offsets = [2, 0], sizes = [2, 32], strides = [1, 1]} : vector<4x32xf32> to vector<2x32xf32>
    %153 = arith.index_cast %109 : i32 to index
    %c0_48 = arith.constant 0 : index
    %c32_49 = arith.constant 32 : index
    %154 = vector.load %arg6[%153, %c0_48, %c32_49] : memref<8x2x64xf32, #tpu.memory_space<vmem>>, vector<1x2x32xf32>
    %155 = vector.shape_cast %154 : vector<1x2x32xf32> to vector<2x32xf32>
    %156 = vector.shape_cast %152 : vector<2x32xf32> to vector<1x2x32xf32>
    tpu.vector_store %arg6[%153, %c0_48, %c32_49], %156 {strides = array<i32>} : memref<8x2x64xf32, #tpu.memory_space<vmem>>, vector<1x2x32xf32>,
    %c3_i32 = arith.constant 3 : i32
    %c7_i32_50 = arith.constant 7 : i32
    %157 = arith.subi %c7_i32_50, %c3_i32 : i32
    %cst_51 = arith.constant dense<0.000000e+00> : vector<4x256xf32>
    %158 = tpu.matmul %146, %7, %cst_51 {dimension_numbers = #tpu.dot_dimension_numbers<[1], [0], [0], [1], [0, 0, 1, 1], [], []>} : vector<4x32xf32>, vector<32x256xf32>, vector<4x256xf32> -> vector<4x256xf32>
    %159 = vector.extract_strided_slice %158 {offsets = [0, 0], sizes = [4, 128], strides = [1, 1]} : vector<4x256xf32> to vector<4x128xf32>
    %160 = vector.extract_strided_slice %158 {offsets = [0, 128], sizes = [4, 128], strides = [1, 1]} : vector<4x256xf32> to vector<4x128xf32>
    %161 = arith.select %10, %159, %160 : vector<4x128xi1>, vector<4x128xf32>
    %c2_i32_52 = arith.constant 2 : i32
    %162 = arith.muli %c3_i32, %c2_i32_52 : i32
    %163 = arith.index_cast %162 : i32 to index
    %c0_53 = arith.constant 0 : index
    %164 = vector.load %arg7[%163, %c0_53] : memref<16x256xf32, #tpu.memory_space<vmem>>, vector<2x128xf32>
    %c2_i32_54 = arith.constant 2 : i32
    %165 = arith.muli %157, %c2_i32_54 : i32
    %166 = arith.index_cast %165 : i32 to index
    %c128_55 = arith.constant 128 : index
    %167 = vector.load %arg7[%166, %c128_55] : memref<16x256xf32, #tpu.memory_space<vmem>>, vector<2x128xf32>
    %168 = tpu.concatenate %164, %167 in 0 : vector<2x128xf32>, vector<2x128xf32> -> vector<4x128xf32>
    %169 = arith.addf %168, %161 : vector<4x128xf32>
    %170 = vector.extract_strided_slice %169 {offsets = [0, 0], sizes = [4, 32], strides = [1, 1]} : vector<4x128xf32> to vector<4x32xf32>
    %171 = arith.negf %170 : vector<4x32xf32>
    %172 = math.exp %171 : vector<4x32xf32>
    %cst_56 = arith.constant 1.000000e+00 : f32
    %173 = vector.broadcast %cst_56 : f32 to vector<4x32xf32>
    %174 = arith.addf %173, %172 : vector<4x32xf32>
    %175 = arith.divf %173, %174 : vector<4x32xf32>
    %176 = vector.extract_strided_slice %169 {offsets = [0, 32], sizes = [4, 32], strides = [1, 1]} : vector<4x128xf32> to vector<4x32xf32>
    %177 = arith.negf %176 : vector<4x32xf32>
    %178 = math.exp %177 : vector<4x32xf32>
    %cst_57 = arith.constant 1.000000e+00 : f32
    %179 = vector.broadcast %cst_57 : f32 to vector<4x32xf32>
    %180 = arith.addf %179, %178 : vector<4x32xf32>
    %181 = arith.divf %179, %180 : vector<4x32xf32>
    %182 = vector.extract_strided_slice %169 {offsets = [0, 64], sizes = [4, 32], strides = [1, 1]} : vector<4x128xf32> to vector<4x32xf32>
    %183 = math.tanh %182 : vector<4x32xf32>
    %184 = vector.extract_strided_slice %169 {offsets = [0, 96], sizes = [4, 32], strides = [1, 1]} : vector<4x128xf32> to vector<4x32xf32>
    %185 = arith.negf %184 : vector<4x32xf32>
    %186 = math.exp %185 : vector<4x32xf32>
    %cst_58 = arith.constant 1.000000e+00 : f32
    %187 = vector.broadcast %cst_58 : f32 to vector<4x32xf32>
    %188 = arith.addf %187, %186 : vector<4x32xf32>
    %189 = arith.divf %187, %188 : vector<4x32xf32>
    %190 = arith.mulf %181, %144 : vector<4x32xf32>
    %191 = arith.mulf %175, %183 : vector<4x32xf32>
    %192 = arith.addf %190, %191 : vector<4x32xf32>
    %193 = math.tanh %192 : vector<4x32xf32>
    %194 = arith.mulf %189, %193 : vector<4x32xf32>
    %195 = vector.extract_strided_slice %194 {offsets = [0, 0], sizes = [2, 32], strides = [1, 1]} : vector<4x32xf32> to vector<2x32xf32>
    %196 = arith.index_cast %c3_i32 : i32 to index
    %c0_59 = arith.constant 0 : index
    %c0_60 = arith.constant 0 : index
    %197 = vector.load %arg6[%196, %c0_59, %c0_60] : memref<8x2x64xf32, #tpu.memory_space<vmem>>, vector<1x2x32xf32>
    %198 = vector.shape_cast %197 : vector<1x2x32xf32> to vector<2x32xf32>
    %199 = vector.shape_cast %195 : vector<2x32xf32> to vector<1x2x32xf32>
    tpu.vector_store %arg6[%196, %c0_59, %c0_60], %199 {strides = array<i32>} : memref<8x2x64xf32, #tpu.memory_space<vmem>>, vector<1x2x32xf32>,
    %200 = vector.extract_strided_slice %194 {offsets = [2, 0], sizes = [2, 32], strides = [1, 1]} : vector<4x32xf32> to vector<2x32xf32>
    %201 = arith.index_cast %157 : i32 to index
    %c0_61 = arith.constant 0 : index
    %c32_62 = arith.constant 32 : index
    %202 = vector.load %arg6[%201, %c0_61, %c32_62] : memref<8x2x64xf32, #tpu.memory_space<vmem>>, vector<1x2x32xf32>
    %203 = vector.shape_cast %202 : vector<1x2x32xf32> to vector<2x32xf32>
    %204 = vector.shape_cast %200 : vector<2x32xf32> to vector<1x2x32xf32>
    tpu.vector_store %arg6[%201, %c0_61, %c32_62], %204 {strides = array<i32>} : memref<8x2x64xf32, #tpu.memory_space<vmem>>, vector<1x2x32xf32>,
    %c4_i32 = arith.constant 4 : i32
    %c7_i32_63 = arith.constant 7 : i32
    %205 = arith.subi %c7_i32_63, %c4_i32 : i32
    %cst_64 = arith.constant dense<0.000000e+00> : vector<4x256xf32>
    %206 = tpu.matmul %194, %7, %cst_64 {dimension_numbers = #tpu.dot_dimension_numbers<[1], [0], [0], [1], [0, 0, 1, 1], [], []>} : vector<4x32xf32>, vector<32x256xf32>, vector<4x256xf32> -> vector<4x256xf32>
    %207 = vector.extract_strided_slice %206 {offsets = [0, 0], sizes = [4, 128], strides = [1, 1]} : vector<4x256xf32> to vector<4x128xf32>
    %208 = vector.extract_strided_slice %206 {offsets = [0, 128], sizes = [4, 128], strides = [1, 1]} : vector<4x256xf32> to vector<4x128xf32>
    %209 = arith.select %10, %207, %208 : vector<4x128xi1>, vector<4x128xf32>
    %c2_i32_65 = arith.constant 2 : i32
    %210 = arith.muli %c4_i32, %c2_i32_65 : i32
    %211 = arith.index_cast %210 : i32 to index
    %c0_66 = arith.constant 0 : index
    %212 = vector.load %arg7[%211, %c0_66] : memref<16x256xf32, #tpu.memory_space<vmem>>, vector<2x128xf32>
    %c2_i32_67 = arith.constant 2 : i32
    %213 = arith.muli %205, %c2_i32_67 : i32
    %214 = arith.index_cast %213 : i32 to index
    %c128_68 = arith.constant 128 : index
    %215 = vector.load %arg7[%214, %c128_68] : memref<16x256xf32, #tpu.memory_space<vmem>>, vector<2x128xf32>
    %216 = tpu.concatenate %212, %215 in 0 : vector<2x128xf32>, vector<2x128xf32> -> vector<4x128xf32>
    %217 = arith.addf %216, %209 : vector<4x128xf32>
    %218 = vector.extract_strided_slice %217 {offsets = [0, 0], sizes = [4, 32], strides = [1, 1]} : vector<4x128xf32> to vector<4x32xf32>
    %219 = arith.negf %218 : vector<4x32xf32>
    %220 = math.exp %219 : vector<4x32xf32>
    %cst_69 = arith.constant 1.000000e+00 : f32
    %221 = vector.broadcast %cst_69 : f32 to vector<4x32xf32>
    %222 = arith.addf %221, %220 : vector<4x32xf32>
    %223 = arith.divf %221, %222 : vector<4x32xf32>
    %224 = vector.extract_strided_slice %217 {offsets = [0, 32], sizes = [4, 32], strides = [1, 1]} : vector<4x128xf32> to vector<4x32xf32>
    %225 = arith.negf %224 : vector<4x32xf32>
    %226 = math.exp %225 : vector<4x32xf32>
    %cst_70 = arith.constant 1.000000e+00 : f32
    %227 = vector.broadcast %cst_70 : f32 to vector<4x32xf32>
    %228 = arith.addf %227, %226 : vector<4x32xf32>
    %229 = arith.divf %227, %228 : vector<4x32xf32>
    %230 = vector.extract_strided_slice %217 {offsets = [0, 64], sizes = [4, 32], strides = [1, 1]} : vector<4x128xf32> to vector<4x32xf32>
    %231 = math.tanh %230 : vector<4x32xf32>
    %232 = vector.extract_strided_slice %217 {offsets = [0, 96], sizes = [4, 32], strides = [1, 1]} : vector<4x128xf32> to vector<4x32xf32>
    %233 = arith.negf %232 : vector<4x32xf32>
    %234 = math.exp %233 : vector<4x32xf32>
    %cst_71 = arith.constant 1.000000e+00 : f32
    %235 = vector.broadcast %cst_71 : f32 to vector<4x32xf32>
    %236 = arith.addf %235, %234 : vector<4x32xf32>
    %237 = arith.divf %235, %236 : vector<4x32xf32>
    %238 = arith.mulf %229, %192 : vector<4x32xf32>
    %239 = arith.mulf %223, %231 : vector<4x32xf32>
    %240 = arith.addf %238, %239 : vector<4x32xf32>
    %241 = math.tanh %240 : vector<4x32xf32>
    %242 = arith.mulf %237, %241 : vector<4x32xf32>
    %243 = vector.extract_strided_slice %242 {offsets = [0, 0], sizes = [2, 32], strides = [1, 1]} : vector<4x32xf32> to vector<2x32xf32>
    %244 = arith.index_cast %c4_i32 : i32 to index
    %c0_72 = arith.constant 0 : index
    %c0_73 = arith.constant 0 : index
    %245 = vector.load %arg6[%244, %c0_72, %c0_73] : memref<8x2x64xf32, #tpu.memory_space<vmem>>, vector<1x2x32xf32>
    %246 = vector.shape_cast %245 : vector<1x2x32xf32> to vector<2x32xf32>
    %247 = vector.shape_cast %243 : vector<2x32xf32> to vector<1x2x32xf32>
    tpu.vector_store %arg6[%244, %c0_72, %c0_73], %247 {strides = array<i32>} : memref<8x2x64xf32, #tpu.memory_space<vmem>>, vector<1x2x32xf32>,
    %248 = vector.extract_strided_slice %242 {offsets = [2, 0], sizes = [2, 32], strides = [1, 1]} : vector<4x32xf32> to vector<2x32xf32>
    %249 = arith.index_cast %205 : i32 to index
    %c0_74 = arith.constant 0 : index
    %c32_75 = arith.constant 32 : index
    %250 = vector.load %arg6[%249, %c0_74, %c32_75] : memref<8x2x64xf32, #tpu.memory_space<vmem>>, vector<1x2x32xf32>
    %251 = vector.shape_cast %250 : vector<1x2x32xf32> to vector<2x32xf32>
    %252 = vector.shape_cast %248 : vector<2x32xf32> to vector<1x2x32xf32>
    tpu.vector_store %arg6[%249, %c0_74, %c32_75], %252 {strides = array<i32>} : memref<8x2x64xf32, #tpu.memory_space<vmem>>, vector<1x2x32xf32>,
    %c5_i32 = arith.constant 5 : i32
    %c7_i32_76 = arith.constant 7 : i32
    %253 = arith.subi %c7_i32_76, %c5_i32 : i32
    %cst_77 = arith.constant dense<0.000000e+00> : vector<4x256xf32>
    %254 = tpu.matmul %242, %7, %cst_77 {dimension_numbers = #tpu.dot_dimension_numbers<[1], [0], [0], [1], [0, 0, 1, 1], [], []>} : vector<4x32xf32>, vector<32x256xf32>, vector<4x256xf32> -> vector<4x256xf32>
    %255 = vector.extract_strided_slice %254 {offsets = [0, 0], sizes = [4, 128], strides = [1, 1]} : vector<4x256xf32> to vector<4x128xf32>
    %256 = vector.extract_strided_slice %254 {offsets = [0, 128], sizes = [4, 128], strides = [1, 1]} : vector<4x256xf32> to vector<4x128xf32>
    %257 = arith.select %10, %255, %256 : vector<4x128xi1>, vector<4x128xf32>
    %c2_i32_78 = arith.constant 2 : i32
    %258 = arith.muli %c5_i32, %c2_i32_78 : i32
    %259 = arith.index_cast %258 : i32 to index
    %c0_79 = arith.constant 0 : index
    %260 = vector.load %arg7[%259, %c0_79] : memref<16x256xf32, #tpu.memory_space<vmem>>, vector<2x128xf32>
    %c2_i32_80 = arith.constant 2 : i32
    %261 = arith.muli %253, %c2_i32_80 : i32
    %262 = arith.index_cast %261 : i32 to index
    %c128_81 = arith.constant 128 : index
    %263 = vector.load %arg7[%262, %c128_81] : memref<16x256xf32, #tpu.memory_space<vmem>>, vector<2x128xf32>
    %264 = tpu.concatenate %260, %263 in 0 : vector<2x128xf32>, vector<2x128xf32> -> vector<4x128xf32>
    %265 = arith.addf %264, %257 : vector<4x128xf32>
    %266 = vector.extract_strided_slice %265 {offsets = [0, 0], sizes = [4, 32], strides = [1, 1]} : vector<4x128xf32> to vector<4x32xf32>
    %267 = arith.negf %266 : vector<4x32xf32>
    %268 = math.exp %267 : vector<4x32xf32>
    %cst_82 = arith.constant 1.000000e+00 : f32
    %269 = vector.broadcast %cst_82 : f32 to vector<4x32xf32>
    %270 = arith.addf %269, %268 : vector<4x32xf32>
    %271 = arith.divf %269, %270 : vector<4x32xf32>
    %272 = vector.extract_strided_slice %265 {offsets = [0, 32], sizes = [4, 32], strides = [1, 1]} : vector<4x128xf32> to vector<4x32xf32>
    %273 = arith.negf %272 : vector<4x32xf32>
    %274 = math.exp %273 : vector<4x32xf32>
    %cst_83 = arith.constant 1.000000e+00 : f32
    %275 = vector.broadcast %cst_83 : f32 to vector<4x32xf32>
    %276 = arith.addf %275, %274 : vector<4x32xf32>
    %277 = arith.divf %275, %276 : vector<4x32xf32>
    %278 = vector.extract_strided_slice %265 {offsets = [0, 64], sizes = [4, 32], strides = [1, 1]} : vector<4x128xf32> to vector<4x32xf32>
    %279 = math.tanh %278 : vector<4x32xf32>
    %280 = vector.extract_strided_slice %265 {offsets = [0, 96], sizes = [4, 32], strides = [1, 1]} : vector<4x128xf32> to vector<4x32xf32>
    %281 = arith.negf %280 : vector<4x32xf32>
    %282 = math.exp %281 : vector<4x32xf32>
    %cst_84 = arith.constant 1.000000e+00 : f32
    %283 = vector.broadcast %cst_84 : f32 to vector<4x32xf32>
    %284 = arith.addf %283, %282 : vector<4x32xf32>
    %285 = arith.divf %283, %284 : vector<4x32xf32>
    %286 = arith.mulf %277, %240 : vector<4x32xf32>
    %287 = arith.mulf %271, %279 : vector<4x32xf32>
    %288 = arith.addf %286, %287 : vector<4x32xf32>
    %289 = math.tanh %288 : vector<4x32xf32>
    %290 = arith.mulf %285, %289 : vector<4x32xf32>
    %291 = vector.extract_strided_slice %290 {offsets = [0, 0], sizes = [2, 32], strides = [1, 1]} : vector<4x32xf32> to vector<2x32xf32>
    %292 = arith.index_cast %c5_i32 : i32 to index
    %c0_85 = arith.constant 0 : index
    %c0_86 = arith.constant 0 : index
    %293 = vector.load %arg6[%292, %c0_85, %c0_86] : memref<8x2x64xf32, #tpu.memory_space<vmem>>, vector<1x2x32xf32>
    %294 = vector.shape_cast %293 : vector<1x2x32xf32> to vector<2x32xf32>
    %295 = vector.shape_cast %291 : vector<2x32xf32> to vector<1x2x32xf32>
    tpu.vector_store %arg6[%292, %c0_85, %c0_86], %295 {strides = array<i32>} : memref<8x2x64xf32, #tpu.memory_space<vmem>>, vector<1x2x32xf32>,
    %296 = vector.extract_strided_slice %290 {offsets = [2, 0], sizes = [2, 32], strides = [1, 1]} : vector<4x32xf32> to vector<2x32xf32>
    %297 = arith.index_cast %253 : i32 to index
    %c0_87 = arith.constant 0 : index
    %c32_88 = arith.constant 32 : index
    %298 = vector.load %arg6[%297, %c0_87, %c32_88] : memref<8x2x64xf32, #tpu.memory_space<vmem>>, vector<1x2x32xf32>
    %299 = vector.shape_cast %298 : vector<1x2x32xf32> to vector<2x32xf32>
    %300 = vector.shape_cast %296 : vector<2x32xf32> to vector<1x2x32xf32>
    tpu.vector_store %arg6[%297, %c0_87, %c32_88], %300 {strides = array<i32>} : memref<8x2x64xf32, #tpu.memory_space<vmem>>, vector<1x2x32xf32>,
    %c6_i32 = arith.constant 6 : i32
    %c7_i32_89 = arith.constant 7 : i32
    %301 = arith.subi %c7_i32_89, %c6_i32 : i32
    %cst_90 = arith.constant dense<0.000000e+00> : vector<4x256xf32>
    %302 = tpu.matmul %290, %7, %cst_90 {dimension_numbers = #tpu.dot_dimension_numbers<[1], [0], [0], [1], [0, 0, 1, 1], [], []>} : vector<4x32xf32>, vector<32x256xf32>, vector<4x256xf32> -> vector<4x256xf32>
    %303 = vector.extract_strided_slice %302 {offsets = [0, 0], sizes = [4, 128], strides = [1, 1]} : vector<4x256xf32> to vector<4x128xf32>
    %304 = vector.extract_strided_slice %302 {offsets = [0, 128], sizes = [4, 128], strides = [1, 1]} : vector<4x256xf32> to vector<4x128xf32>
    %305 = arith.select %10, %303, %304 : vector<4x128xi1>, vector<4x128xf32>
    %c2_i32_91 = arith.constant 2 : i32
    %306 = arith.muli %c6_i32, %c2_i32_91 : i32
    %307 = arith.index_cast %306 : i32 to index
    %c0_92 = arith.constant 0 : index
    %308 = vector.load %arg7[%307, %c0_92] : memref<16x256xf32, #tpu.memory_space<vmem>>, vector<2x128xf32>
    %c2_i32_93 = arith.constant 2 : i32
    %309 = arith.muli %301, %c2_i32_93 : i32
    %310 = arith.index_cast %309 : i32 to index
    %c128_94 = arith.constant 128 : index
    %311 = vector.load %arg7[%310, %c128_94] : memref<16x256xf32, #tpu.memory_space<vmem>>, vector<2x128xf32>
    %312 = tpu.concatenate %308, %311 in 0 : vector<2x128xf32>, vector<2x128xf32> -> vector<4x128xf32>
    %313 = arith.addf %312, %305 : vector<4x128xf32>
    %314 = vector.extract_strided_slice %313 {offsets = [0, 0], sizes = [4, 32], strides = [1, 1]} : vector<4x128xf32> to vector<4x32xf32>
    %315 = arith.negf %314 : vector<4x32xf32>
    %316 = math.exp %315 : vector<4x32xf32>
    %cst_95 = arith.constant 1.000000e+00 : f32
    %317 = vector.broadcast %cst_95 : f32 to vector<4x32xf32>
    %318 = arith.addf %317, %316 : vector<4x32xf32>
    %319 = arith.divf %317, %318 : vector<4x32xf32>
    %320 = vector.extract_strided_slice %313 {offsets = [0, 32], sizes = [4, 32], strides = [1, 1]} : vector<4x128xf32> to vector<4x32xf32>
    %321 = arith.negf %320 : vector<4x32xf32>
    %322 = math.exp %321 : vector<4x32xf32>
    %cst_96 = arith.constant 1.000000e+00 : f32
    %323 = vector.broadcast %cst_96 : f32 to vector<4x32xf32>
    %324 = arith.addf %323, %322 : vector<4x32xf32>
    %325 = arith.divf %323, %324 : vector<4x32xf32>
    %326 = vector.extract_strided_slice %313 {offsets = [0, 64], sizes = [4, 32], strides = [1, 1]} : vector<4x128xf32> to vector<4x32xf32>
    %327 = math.tanh %326 : vector<4x32xf32>
    %328 = vector.extract_strided_slice %313 {offsets = [0, 96], sizes = [4, 32], strides = [1, 1]} : vector<4x128xf32> to vector<4x32xf32>
    %329 = arith.negf %328 : vector<4x32xf32>
    %330 = math.exp %329 : vector<4x32xf32>
    %cst_97 = arith.constant 1.000000e+00 : f32
    %331 = vector.broadcast %cst_97 : f32 to vector<4x32xf32>
    %332 = arith.addf %331, %330 : vector<4x32xf32>
    %333 = arith.divf %331, %332 : vector<4x32xf32>
    %334 = arith.mulf %325, %288 : vector<4x32xf32>
    %335 = arith.mulf %319, %327 : vector<4x32xf32>
    %336 = arith.addf %334, %335 : vector<4x32xf32>
    %337 = math.tanh %336 : vector<4x32xf32>
    %338 = arith.mulf %333, %337 : vector<4x32xf32>
    %339 = vector.extract_strided_slice %338 {offsets = [0, 0], sizes = [2, 32], strides = [1, 1]} : vector<4x32xf32> to vector<2x32xf32>
    %340 = arith.index_cast %c6_i32 : i32 to index
    %c0_98 = arith.constant 0 : index
    %c0_99 = arith.constant 0 : index
    %341 = vector.load %arg6[%340, %c0_98, %c0_99] : memref<8x2x64xf32, #tpu.memory_space<vmem>>, vector<1x2x32xf32>
    %342 = vector.shape_cast %341 : vector<1x2x32xf32> to vector<2x32xf32>
    %343 = vector.shape_cast %339 : vector<2x32xf32> to vector<1x2x32xf32>
    tpu.vector_store %arg6[%340, %c0_98, %c0_99], %343 {strides = array<i32>} : memref<8x2x64xf32, #tpu.memory_space<vmem>>, vector<1x2x32xf32>,
    %344 = vector.extract_strided_slice %338 {offsets = [2, 0], sizes = [2, 32], strides = [1, 1]} : vector<4x32xf32> to vector<2x32xf32>
    %345 = arith.index_cast %301 : i32 to index
    %c0_100 = arith.constant 0 : index
    %c32_101 = arith.constant 32 : index
    %346 = vector.load %arg6[%345, %c0_100, %c32_101] : memref<8x2x64xf32, #tpu.memory_space<vmem>>, vector<1x2x32xf32>
    %347 = vector.shape_cast %346 : vector<1x2x32xf32> to vector<2x32xf32>
    %348 = vector.shape_cast %344 : vector<2x32xf32> to vector<1x2x32xf32>
    tpu.vector_store %arg6[%345, %c0_100, %c32_101], %348 {strides = array<i32>} : memref<8x2x64xf32, #tpu.memory_space<vmem>>, vector<1x2x32xf32>,
    %c7_i32_102 = arith.constant 7 : i32
    %c7_i32_103 = arith.constant 7 : i32
    %349 = arith.subi %c7_i32_103, %c7_i32_102 : i32
    %cst_104 = arith.constant dense<0.000000e+00> : vector<4x256xf32>
    %350 = tpu.matmul %338, %7, %cst_104 {dimension_numbers = #tpu.dot_dimension_numbers<[1], [0], [0], [1], [0, 0, 1, 1], [], []>} : vector<4x32xf32>, vector<32x256xf32>, vector<4x256xf32> -> vector<4x256xf32>
    %351 = vector.extract_strided_slice %350 {offsets = [0, 0], sizes = [4, 128], strides = [1, 1]} : vector<4x256xf32> to vector<4x128xf32>
    %352 = vector.extract_strided_slice %350 {offsets = [0, 128], sizes = [4, 128], strides = [1, 1]} : vector<4x256xf32> to vector<4x128xf32>
    %353 = arith.select %10, %351, %352 : vector<4x128xi1>, vector<4x128xf32>
    %c2_i32_105 = arith.constant 2 : i32
    %354 = arith.muli %c7_i32_102, %c2_i32_105 : i32
    %355 = arith.index_cast %354 : i32 to index
    %c0_106 = arith.constant 0 : index
    %356 = vector.load %arg7[%355, %c0_106] : memref<16x256xf32, #tpu.memory_space<vmem>>, vector<2x128xf32>
    %c2_i32_107 = arith.constant 2 : i32
    %357 = arith.muli %349, %c2_i32_107 : i32
    %358 = arith.index_cast %357 : i32 to index
    %c128_108 = arith.constant 128 : index
    %359 = vector.load %arg7[%358, %c128_108] : memref<16x256xf32, #tpu.memory_space<vmem>>, vector<2x128xf32>
    %360 = tpu.concatenate %356, %359 in 0 : vector<2x128xf32>, vector<2x128xf32> -> vector<4x128xf32>
    %361 = arith.addf %360, %353 : vector<4x128xf32>
    %362 = vector.extract_strided_slice %361 {offsets = [0, 0], sizes = [4, 32], strides = [1, 1]} : vector<4x128xf32> to vector<4x32xf32>
    %363 = arith.negf %362 : vector<4x32xf32>
    %364 = math.exp %363 : vector<4x32xf32>
    %cst_109 = arith.constant 1.000000e+00 : f32
    %365 = vector.broadcast %cst_109 : f32 to vector<4x32xf32>
    %366 = arith.addf %365, %364 : vector<4x32xf32>
    %367 = arith.divf %365, %366 : vector<4x32xf32>
    %368 = vector.extract_strided_slice %361 {offsets = [0, 32], sizes = [4, 32], strides = [1, 1]} : vector<4x128xf32> to vector<4x32xf32>
    %369 = arith.negf %368 : vector<4x32xf32>
    %370 = math.exp %369 : vector<4x32xf32>
    %cst_110 = arith.constant 1.000000e+00 : f32
    %371 = vector.broadcast %cst_110 : f32 to vector<4x32xf32>
    %372 = arith.addf %371, %370 : vector<4x32xf32>
    %373 = arith.divf %371, %372 : vector<4x32xf32>
    %374 = vector.extract_strided_slice %361 {offsets = [0, 64], sizes = [4, 32], strides = [1, 1]} : vector<4x128xf32> to vector<4x32xf32>
    %375 = math.tanh %374 : vector<4x32xf32>
    %376 = vector.extract_strided_slice %361 {offsets = [0, 96], sizes = [4, 32], strides = [1, 1]} : vector<4x128xf32> to vector<4x32xf32>
    %377 = arith.negf %376 : vector<4x32xf32>
    %378 = math.exp %377 : vector<4x32xf32>
    %cst_111 = arith.constant 1.000000e+00 : f32
    %379 = vector.broadcast %cst_111 : f32 to vector<4x32xf32>
    %380 = arith.addf %379, %378 : vector<4x32xf32>
    %381 = arith.divf %379, %380 : vector<4x32xf32>
    %382 = arith.mulf %373, %336 : vector<4x32xf32>
    %383 = arith.mulf %367, %375 : vector<4x32xf32>
    %384 = arith.addf %382, %383 : vector<4x32xf32>
    %385 = math.tanh %384 : vector<4x32xf32>
    %386 = arith.mulf %381, %385 : vector<4x32xf32>
    %387 = vector.extract_strided_slice %386 {offsets = [0, 0], sizes = [2, 32], strides = [1, 1]} : vector<4x32xf32> to vector<2x32xf32>
    %388 = arith.index_cast %c7_i32_102 : i32 to index
    %c0_112 = arith.constant 0 : index
    %c0_113 = arith.constant 0 : index
    %389 = vector.load %arg6[%388, %c0_112, %c0_113] : memref<8x2x64xf32, #tpu.memory_space<vmem>>, vector<1x2x32xf32>
    %390 = vector.shape_cast %389 : vector<1x2x32xf32> to vector<2x32xf32>
    %391 = vector.shape_cast %387 : vector<2x32xf32> to vector<1x2x32xf32>
    tpu.vector_store %arg6[%388, %c0_112, %c0_113], %391 {strides = array<i32>} : memref<8x2x64xf32, #tpu.memory_space<vmem>>, vector<1x2x32xf32>,
    %392 = vector.extract_strided_slice %386 {offsets = [2, 0], sizes = [2, 32], strides = [1, 1]} : vector<4x32xf32> to vector<2x32xf32>
    %393 = arith.index_cast %349 : i32 to index
    %c0_114 = arith.constant 0 : index
    %c32_115 = arith.constant 32 : index
    %394 = vector.load %arg6[%393, %c0_114, %c32_115] : memref<8x2x64xf32, #tpu.memory_space<vmem>>, vector<1x2x32xf32>
    %395 = vector.shape_cast %394 : vector<1x2x32xf32> to vector<2x32xf32>
    %396 = vector.shape_cast %392 : vector<2x32xf32> to vector<1x2x32xf32>
    tpu.vector_store %arg6[%393, %c0_114, %c32_115], %396 {strides = array<i32>} : memref<8x2x64xf32, #tpu.memory_space<vmem>>, vector<1x2x32xf32>,
    %c8_i32 = arith.constant 8 : i32
    return
  }
}

module attributes {stable_mosaic.version = 11 : i64} {
  func.func @_bilstm_layer_kernel(%arg0: memref<16x64xf32, #tpu.memory_space<vmem>>, %arg1: memref<64x256xf32, #tpu.memory_space<vmem>>, %arg2: memref<32x256xf32, #tpu.memory_space<vmem>>, %arg3: memref<1x256xf32, #tpu.memory_space<vmem>>, %arg4: memref<4x32xf32, #tpu.memory_space<vmem>>, %arg5: memref<4x32xf32, #tpu.memory_space<vmem>>, %arg6: memref<8x2x64xf32, #tpu.memory_space<vmem>>, %arg7: memref<16x256xf32, #tpu.memory_space<vmem>>) attributes {dimension_semantics = [], scalar_prefetch = 0 : i64, scratch_operands = 1 : i64, tpu.core_type = #tpu.core_type<tc>} {
    %c0 = arith.constant 0 : index
    %c0_0 = arith.constant 0 : index
    %0 = vector.load %arg0[%c0, %c0_0] : memref<16x64xf32, #tpu.memory_space<vmem>>, vector<16x64xf32>
    %c0_1 = arith.constant 0 : index
    %c0_2 = arith.constant 0 : index
    %1 = vector.load %arg1[%c0_1, %c0_2] : memref<64x256xf32, #tpu.memory_space<vmem>>, vector<64x256xf32>
    %cst = arith.constant dense<0.000000e+00> : vector<16x256xf32>
    %2 = tpu.matmul %0, %1, %cst {dimension_numbers = #tpu.dot_dimension_numbers<[1], [0], [0], [1], [0, 0, 1, 1], [], []>} : vector<16x64xf32>, vector<64x256xf32>, vector<16x256xf32> -> vector<16x256xf32>
    %c0_3 = arith.constant 0 : index
    %c0_4 = arith.constant 0 : index
    %3 = vector.load %arg3[%c0_3, %c0_4] : memref<1x256xf32, #tpu.memory_space<vmem>>, vector<1x256xf32>
    %4 = vector.broadcast %3 : vector<1x256xf32> to vector<16x256xf32>
    %5 = arith.addf %2, %4 : vector<16x256xf32>
    %c0_5 = arith.constant 0 : index
    %c0_6 = arith.constant 0 : index
    %6 = vector.load %arg7[%c0_5, %c0_6] : memref<16x256xf32, #tpu.memory_space<vmem>>, vector<16x256xf32>
    tpu.vector_store %arg7[%c0_5, %c0_6], %5 {strides = array<i32>} : memref<16x256xf32, #tpu.memory_space<vmem>>, vector<16x256xf32>,
    %c0_7 = arith.constant 0 : index
    %c0_8 = arith.constant 0 : index
    %7 = vector.load %arg2[%c0_7, %c0_8] : memref<32x256xf32, #tpu.memory_space<vmem>>, vector<32x256xf32>
    %8 = tpu.iota {dimensions = array<i32: 0>} : vector<4x128xi32>
    %c2_i32 = arith.constant 2 : i32
    %9 = vector.broadcast %c2_i32 : i32 to vector<4x128xi32>
    %10 = arith.cmpi slt, %8, %9 : vector<4x128xi32>
    %c0_9 = arith.constant 0 : index
    %c0_10 = arith.constant 0 : index
    %11 = vector.load %arg4[%c0_9, %c0_10] : memref<4x32xf32, #tpu.memory_space<vmem>>, vector<4x32xf32>
    %c0_11 = arith.constant 0 : index
    %c0_12 = arith.constant 0 : index
    %12 = vector.load %arg5[%c0_11, %c0_12] : memref<4x32xf32, #tpu.memory_space<vmem>>, vector<4x32xf32>
    %c0_i32 = arith.constant 0 : i32
    %c7_i32 = arith.constant 7 : i32
    %13 = arith.subi %c7_i32, %c0_i32 : i32
    %cst_13 = arith.constant dense<0.000000e+00> : vector<4x256xf32>
    %14 = tpu.matmul %11, %7, %cst_13 {dimension_numbers = #tpu.dot_dimension_numbers<[1], [0], [0], [1], [0, 0, 1, 1], [], []>} : vector<4x32xf32>, vector<32x256xf32>, vector<4x256xf32> -> vector<4x256xf32>
    %15 = vector.extract_strided_slice %14 {offsets = [0, 0], sizes = [4, 128], strides = [1, 1]} : vector<4x256xf32> to vector<4x128xf32>
    %16 = vector.extract_strided_slice %14 {offsets = [0, 128], sizes = [4, 128], strides = [1, 1]} : vector<4x256xf32> to vector<4x128xf32>
    %17 = arith.select %10, %15, %16 : vector<4x128xi1>, vector<4x128xf32>
    %c2_i32_14 = arith.constant 2 : i32
    %18 = arith.muli %c0_i32, %c2_i32_14 : i32
    %19 = arith.index_cast %18 : i32 to index
    %c0_15 = arith.constant 0 : index
    %20 = vector.load %arg7[%19, %c0_15] : memref<16x256xf32, #tpu.memory_space<vmem>>, vector<2x128xf32>
    %c2_i32_16 = arith.constant 2 : i32
    %21 = arith.muli %13, %c2_i32_16 : i32
    %22 = arith.index_cast %21 : i32 to index
    %c128 = arith.constant 128 : index
    %23 = vector.load %arg7[%22, %c128] : memref<16x256xf32, #tpu.memory_space<vmem>>, vector<2x128xf32>
    %24 = tpu.concatenate %20, %23 in 0 : vector<2x128xf32>, vector<2x128xf32> -> vector<4x128xf32>
    %25 = arith.addf %24, %17 : vector<4x128xf32>
    %26 = vector.extract_strided_slice %25 {offsets = [0, 0], sizes = [4, 32], strides = [1, 1]} : vector<4x128xf32> to vector<4x32xf32>
    %27 = arith.negf %26 : vector<4x32xf32>
    %28 = math.exp %27 : vector<4x32xf32>
    %cst_17 = arith.constant 1.000000e+00 : f32
    %29 = vector.broadcast %cst_17 : f32 to vector<4x32xf32>
    %30 = arith.addf %29, %28 : vector<4x32xf32>
    %31 = arith.divf %29, %30 : vector<4x32xf32>
    %32 = vector.extract_strided_slice %25 {offsets = [0, 32], sizes = [4, 32], strides = [1, 1]} : vector<4x128xf32> to vector<4x32xf32>
    %33 = arith.negf %32 : vector<4x32xf32>
    %34 = math.exp %33 : vector<4x32xf32>
    %cst_18 = arith.constant 1.000000e+00 : f32
    %35 = vector.broadcast %cst_18 : f32 to vector<4x32xf32>
    %36 = arith.addf %35, %34 : vector<4x32xf32>
    %37 = arith.divf %35, %36 : vector<4x32xf32>
    %38 = vector.extract_strided_slice %25 {offsets = [0, 64], sizes = [4, 32], strides = [1, 1]} : vector<4x128xf32> to vector<4x32xf32>
    %39 = math.tanh %38 : vector<4x32xf32>
    %40 = vector.extract_strided_slice %25 {offsets = [0, 96], sizes = [4, 32], strides = [1, 1]} : vector<4x128xf32> to vector<4x32xf32>
    %41 = arith.negf %40 : vector<4x32xf32>
    %42 = math.exp %41 : vector<4x32xf32>
    %cst_19 = arith.constant 1.000000e+00 : f32
    %43 = vector.broadcast %cst_19 : f32 to vector<4x32xf32>
    %44 = arith.addf %43, %42 : vector<4x32xf32>
    %45 = arith.divf %43, %44 : vector<4x32xf32>
    %46 = arith.mulf %37, %12 : vector<4x32xf32>
    %47 = arith.mulf %31, %39 : vector<4x32xf32>
    %48 = arith.addf %46, %47 : vector<4x32xf32>
    %49 = math.tanh %48 : vector<4x32xf32>
    %50 = arith.mulf %45, %49 : vector<4x32xf32>
    %51 = vector.extract_strided_slice %50 {offsets = [0, 0], sizes = [2, 32], strides = [1, 1]} : vector<4x32xf32> to vector<2x32xf32>
    %52 = arith.index_cast %c0_i32 : i32 to index
    %c0_20 = arith.constant 0 : index
    %c0_21 = arith.constant 0 : index
    %53 = vector.load %arg6[%52, %c0_20, %c0_21] : memref<8x2x64xf32, #tpu.memory_space<vmem>>, vector<1x2x32xf32>
    %54 = vector.shape_cast %53 : vector<1x2x32xf32> to vector<2x32xf32>
    %55 = vector.shape_cast %51 : vector<2x32xf32> to vector<1x2x32xf32>
    tpu.vector_store %arg6[%52, %c0_20, %c0_21], %55 {strides = array<i32>} : memref<8x2x64xf32, #tpu.memory_space<vmem>>, vector<1x2x32xf32>,
    %56 = vector.extract_strided_slice %50 {offsets = [2, 0], sizes = [2, 32], strides = [1, 1]} : vector<4x32xf32> to vector<2x32xf32>
    %57 = arith.index_cast %13 : i32 to index
    %c0_22 = arith.constant 0 : index
    %c32 = arith.constant 32 : index
    %58 = vector.load %arg6[%57, %c0_22, %c32] : memref<8x2x64xf32, #tpu.memory_space<vmem>>, vector<1x2x32xf32>
    %59 = vector.shape_cast %58 : vector<1x2x32xf32> to vector<2x32xf32>
    %60 = vector.shape_cast %56 : vector<2x32xf32> to vector<1x2x32xf32>
    tpu.vector_store %arg6[%57, %c0_22, %c32], %60 {strides = array<i32>} : memref<8x2x64xf32, #tpu.memory_space<vmem>>, vector<1x2x32xf32>,
    %c1_i32 = arith.constant 1 : i32
    %c7_i32_23 = arith.constant 7 : i32
    %61 = arith.subi %c7_i32_23, %c1_i32 : i32
    %cst_24 = arith.constant dense<0.000000e+00> : vector<4x256xf32>
    %62 = tpu.matmul %50, %7, %cst_24 {dimension_numbers = #tpu.dot_dimension_numbers<[1], [0], [0], [1], [0, 0, 1, 1], [], []>} : vector<4x32xf32>, vector<32x256xf32>, vector<4x256xf32> -> vector<4x256xf32>
    %63 = vector.extract_strided_slice %62 {offsets = [0, 0], sizes = [4, 128], strides = [1, 1]} : vector<4x256xf32> to vector<4x128xf32>
    %64 = vector.extract_strided_slice %62 {offsets = [0, 128], sizes = [4, 128], strides = [1, 1]} : vector<4x256xf32> to vector<4x128xf32>
    %65 = arith.select %10, %63, %64 : vector<4x128xi1>, vector<4x128xf32>
    %c2_i32_25 = arith.constant 2 : i32
    %66 = arith.muli %c1_i32, %c2_i32_25 : i32
    %67 = arith.index_cast %66 : i32 to index
    %c0_26 = arith.constant 0 : index
    %68 = vector.load %arg7[%67, %c0_26] : memref<16x256xf32, #tpu.memory_space<vmem>>, vector<2x128xf32>
    %c2_i32_27 = arith.constant 2 : i32
    %69 = arith.muli %61, %c2_i32_27 : i32
    %70 = arith.index_cast %69 : i32 to index
    %c128_28 = arith.constant 128 : index
    %71 = vector.load %arg7[%70, %c128_28] : memref<16x256xf32, #tpu.memory_space<vmem>>, vector<2x128xf32>
    %72 = tpu.concatenate %68, %71 in 0 : vector<2x128xf32>, vector<2x128xf32> -> vector<4x128xf32>
    %73 = arith.addf %72, %65 : vector<4x128xf32>
    %74 = vector.extract_strided_slice %73 {offsets = [0, 0], sizes = [4, 32], strides = [1, 1]} : vector<4x128xf32> to vector<4x32xf32>
    %75 = arith.negf %74 : vector<4x32xf32>
    %76 = math.exp %75 : vector<4x32xf32>
    %cst_29 = arith.constant 1.000000e+00 : f32
    %77 = vector.broadcast %cst_29 : f32 to vector<4x32xf32>
    %78 = arith.addf %77, %76 : vector<4x32xf32>
    %79 = arith.divf %77, %78 : vector<4x32xf32>
    %80 = vector.extract_strided_slice %73 {offsets = [0, 32], sizes = [4, 32], strides = [1, 1]} : vector<4x128xf32> to vector<4x32xf32>
    %81 = arith.negf %80 : vector<4x32xf32>
    %82 = math.exp %81 : vector<4x32xf32>
    %cst_30 = arith.constant 1.000000e+00 : f32
    %83 = vector.broadcast %cst_30 : f32 to vector<4x32xf32>
    %84 = arith.addf %83, %82 : vector<4x32xf32>
    %85 = arith.divf %83, %84 : vector<4x32xf32>
    %86 = vector.extract_strided_slice %73 {offsets = [0, 64], sizes = [4, 32], strides = [1, 1]} : vector<4x128xf32> to vector<4x32xf32>
    %87 = math.tanh %86 : vector<4x32xf32>
    %88 = vector.extract_strided_slice %73 {offsets = [0, 96], sizes = [4, 32], strides = [1, 1]} : vector<4x128xf32> to vector<4x32xf32>
    %89 = arith.negf %88 : vector<4x32xf32>
    %90 = math.exp %89 : vector<4x32xf32>
    %cst_31 = arith.constant 1.000000e+00 : f32
    %91 = vector.broadcast %cst_31 : f32 to vector<4x32xf32>
    %92 = arith.addf %91, %90 : vector<4x32xf32>
    %93 = arith.divf %91, %92 : vector<4x32xf32>
    %94 = arith.mulf %85, %48 : vector<4x32xf32>
    %95 = arith.mulf %79, %87 : vector<4x32xf32>
    %96 = arith.addf %94, %95 : vector<4x32xf32>
    %97 = math.tanh %96 : vector<4x32xf32>
    %98 = arith.mulf %93, %97 : vector<4x32xf32>
    %99 = vector.extract_strided_slice %98 {offsets = [0, 0], sizes = [2, 32], strides = [1, 1]} : vector<4x32xf32> to vector<2x32xf32>
    %100 = arith.index_cast %c1_i32 : i32 to index
    %c0_32 = arith.constant 0 : index
    %c0_33 = arith.constant 0 : index
    %101 = vector.load %arg6[%100, %c0_32, %c0_33] : memref<8x2x64xf32, #tpu.memory_space<vmem>>, vector<1x2x32xf32>
    %102 = vector.shape_cast %101 : vector<1x2x32xf32> to vector<2x32xf32>
    %103 = vector.shape_cast %99 : vector<2x32xf32> to vector<1x2x32xf32>
    tpu.vector_store %arg6[%100, %c0_32, %c0_33], %103 {strides = array<i32>} : memref<8x2x64xf32, #tpu.memory_space<vmem>>, vector<1x2x32xf32>,
    %104 = vector.extract_strided_slice %98 {offsets = [2, 0], sizes = [2, 32], strides = [1, 1]} : vector<4x32xf32> to vector<2x32xf32>
    %105 = arith.index_cast %61 : i32 to index
    %c0_34 = arith.constant 0 : index
    %c32_35 = arith.constant 32 : index
    %106 = vector.load %arg6[%105, %c0_34, %c32_35] : memref<8x2x64xf32, #tpu.memory_space<vmem>>, vector<1x2x32xf32>
    %107 = vector.shape_cast %106 : vector<1x2x32xf32> to vector<2x32xf32>
    %108 = vector.shape_cast %104 : vector<2x32xf32> to vector<1x2x32xf32>
    tpu.vector_store %arg6[%105, %c0_34, %c32_35], %108 {strides = array<i32>} : memref<8x2x64xf32, #tpu.memory_space<vmem>>, vector<1x2x32xf32>,
    %c2_i32_36 = arith.constant 2 : i32
    %c7_i32_37 = arith.constant 7 : i32
    %109 = arith.subi %c7_i32_37, %c2_i32_36 : i32
    %cst_38 = arith.constant dense<0.000000e+00> : vector<4x256xf32>
    %110 = tpu.matmul %98, %7, %cst_38 {dimension_numbers = #tpu.dot_dimension_numbers<[1], [0], [0], [1], [0, 0, 1, 1], [], []>} : vector<4x32xf32>, vector<32x256xf32>, vector<4x256xf32> -> vector<4x256xf32>
    %111 = vector.extract_strided_slice %110 {offsets = [0, 0], sizes = [4, 128], strides = [1, 1]} : vector<4x256xf32> to vector<4x128xf32>
    %112 = vector.extract_strided_slice %110 {offsets = [0, 128], sizes = [4, 128], strides = [1, 1]} : vector<4x256xf32> to vector<4x128xf32>
    %113 = arith.select %10, %111, %112 : vector<4x128xi1>, vector<4x128xf32>
    %c2_i32_39 = arith.constant 2 : i32
    %114 = arith.muli %c2_i32_36, %c2_i32_39 : i32
    %115 = arith.index_cast %114 : i32 to index
    %c0_40 = arith.constant 0 : index
    %116 = vector.load %arg7[%115, %c0_40] : memref<16x256xf32, #tpu.memory_space<vmem>>, vector<2x128xf32>
    %c2_i32_41 = arith.constant 2 : i32
    %117 = arith.muli %109, %c2_i32_41 : i32
    %118 = arith.index_cast %117 : i32 to index
    %c128_42 = arith.constant 128 : index
    %119 = vector.load %arg7[%118, %c128_42] : memref<16x256xf32, #tpu.memory_space<vmem>>, vector<2x128xf32>
    %120 = tpu.concatenate %116, %119 in 0 : vector<2x128xf32>, vector<2x128xf32> -> vector<4x128xf32>
    %121 = arith.addf %120, %113 : vector<4x128xf32>
    %122 = vector.extract_strided_slice %121 {offsets = [0, 0], sizes = [4, 32], strides = [1, 1]} : vector<4x128xf32> to vector<4x32xf32>
    %123 = arith.negf %122 : vector<4x32xf32>
    %124 = math.exp %123 : vector<4x32xf32>
    %cst_43 = arith.constant 1.000000e+00 : f32
    %125 = vector.broadcast %cst_43 : f32 to vector<4x32xf32>
    %126 = arith.addf %125, %124 : vector<4x32xf32>
    %127 = arith.divf %125, %126 : vector<4x32xf32>
    %128 = vector.extract_strided_slice %121 {offsets = [0, 32], sizes = [4, 32], strides = [1, 1]} : vector<4x128xf32> to vector<4x32xf32>
    %129 = arith.negf %128 : vector<4x32xf32>
    %130 = math.exp %129 : vector<4x32xf32>
    %cst_44 = arith.constant 1.000000e+00 : f32
    %131 = vector.broadcast %cst_44 : f32 to vector<4x32xf32>
    %132 = arith.addf %131, %130 : vector<4x32xf32>
    %133 = arith.divf %131, %132 : vector<4x32xf32>
    %134 = vector.extract_strided_slice %121 {offsets = [0, 64], sizes = [4, 32], strides = [1, 1]} : vector<4x128xf32> to vector<4x32xf32>
    %135 = math.tanh %134 : vector<4x32xf32>
    %136 = vector.extract_strided_slice %121 {offsets = [0, 96], sizes = [4, 32], strides = [1, 1]} : vector<4x128xf32> to vector<4x32xf32>
    %137 = arith.negf %136 : vector<4x32xf32>
    %138 = math.exp %137 : vector<4x32xf32>
    %cst_45 = arith.constant 1.000000e+00 : f32
    %139 = vector.broadcast %cst_45 : f32 to vector<4x32xf32>
    %140 = arith.addf %139, %138 : vector<4x32xf32>
    %141 = arith.divf %139, %140 : vector<4x32xf32>
    %142 = arith.mulf %133, %96 : vector<4x32xf32>
    %143 = arith.mulf %127, %135 : vector<4x32xf32>
    %144 = arith.addf %142, %143 : vector<4x32xf32>
    %145 = math.tanh %144 : vector<4x32xf32>
    %146 = arith.mulf %141, %145 : vector<4x32xf32>
    %147 = vector.extract_strided_slice %146 {offsets = [0, 0], sizes = [2, 32], strides = [1, 1]} : vector<4x32xf32> to vector<2x32xf32>
    %148 = arith.index_cast %c2_i32_36 : i32 to index
    %c0_46 = arith.constant 0 : index
    %c0_47 = arith.constant 0 : index
    %149 = vector.load %arg6[%148, %c0_46, %c0_47] : memref<8x2x64xf32, #tpu.memory_space<vmem>>, vector<1x2x32xf32>
    %150 = vector.shape_cast %149 : vector<1x2x32xf32> to vector<2x32xf32>
    %151 = vector.shape_cast %147 : vector<2x32xf32> to vector<1x2x32xf32>
    tpu.vector_store %arg6[%148, %c0_46, %c0_47], %151 {strides = array<i32>} : memref<8x2x64xf32, #tpu.memory_space<vmem>>, vector<1x2x32xf32>,
    %152 = vector.extract_strided_slice %146 {offsets = [2, 0], sizes = [2, 32], strides = [1, 1]} : vector<4x32xf32> to vector<2x32xf32>
    %153 = arith.index_cast %109 : i32 to index
    %c0_48 = arith.constant 0 : index
    %c32_49 = arith.constant 32 : index
    %154 = vector.load %arg6[%153, %c0_48, %c32_49] : memref<8x2x64xf32, #tpu.memory_space<vmem>>, vector<1x2x32xf32>
    %155 = vector.shape_cast %154 : vector<1x2x32xf32> to vector<2x32xf32>
    %156 = vector.shape_cast %152 : vector<2x32xf32> to vector<1x2x32xf32>
    tpu.vector_store %arg6[%153, %c0_48, %c32_49], %156 {strides = array<i32>} : memref<8x2x64xf32, #tpu.memory_space<vmem>>, vector<1x2x32xf32>,
    %c3_i32 = arith.constant 3 : i32
    %c7_i32_50 = arith.constant 7 : i32
    %157 = arith.subi %c7_i32_50, %c3_i32 : i32
    %cst_51 = arith.constant dense<0.000000e+00> : vector<4x256xf32>
    %158 = tpu.matmul %146, %7, %cst_51 {dimension_numbers = #tpu.dot_dimension_numbers<[1], [0], [0], [1], [0, 0, 1, 1], [], []>} : vector<4x32xf32>, vector<32x256xf32>, vector<4x256xf32> -> vector<4x256xf32>
    %159 = vector.extract_strided_slice %158 {offsets = [0, 0], sizes = [4, 128], strides = [1, 1]} : vector<4x256xf32> to vector<4x128xf32>
    %160 = vector.extract_strided_slice %158 {offsets = [0, 128], sizes = [4, 128], strides = [1, 1]} : vector<4x256xf32> to vector<4x128xf32>
    %161 = arith.select %10, %159, %160 : vector<4x128xi1>, vector<4x128xf32>
    %c2_i32_52 = arith.constant 2 : i32
    %162 = arith.muli %c3_i32, %c2_i32_52 : i32
    %163 = arith.index_cast %162 : i32 to index
    %c0_53 = arith.constant 0 : index
    %164 = vector.load %arg7[%163, %c0_53] : memref<16x256xf32, #tpu.memory_space<vmem>>, vector<2x128xf32>
    %c2_i32_54 = arith.constant 2 : i32
    %165 = arith.muli %157, %c2_i32_54 : i32
    %166 = arith.index_cast %165 : i32 to index
    %c128_55 = arith.constant 128 : index
    %167 = vector.load %arg7[%166, %c128_55] : memref<16x256xf32, #tpu.memory_space<vmem>>, vector<2x128xf32>
    %168 = tpu.concatenate %164, %167 in 0 : vector<2x128xf32>, vector<2x128xf32> -> vector<4x128xf32>
    %169 = arith.addf %168, %161 : vector<4x128xf32>
    %170 = vector.extract_strided_slice %169 {offsets = [0, 0], sizes = [4, 32], strides = [1, 1]} : vector<4x128xf32> to vector<4x32xf32>
    %171 = arith.negf %170 : vector<4x32xf32>
    %172 = math.exp %171 : vector<4x32xf32>
    %cst_56 = arith.constant 1.000000e+00 : f32
    %173 = vector.broadcast %cst_56 : f32 to vector<4x32xf32>
    %174 = arith.addf %173, %172 : vector<4x32xf32>
    %175 = arith.divf %173, %174 : vector<4x32xf32>
    %176 = vector.extract_strided_slice %169 {offsets = [0, 32], sizes = [4, 32], strides = [1, 1]} : vector<4x128xf32> to vector<4x32xf32>
    %177 = arith.negf %176 : vector<4x32xf32>
    %178 = math.exp %177 : vector<4x32xf32>
    %cst_57 = arith.constant 1.000000e+00 : f32
    %179 = vector.broadcast %cst_57 : f32 to vector<4x32xf32>
    %180 = arith.addf %179, %178 : vector<4x32xf32>
    %181 = arith.divf %179, %180 : vector<4x32xf32>
    %182 = vector.extract_strided_slice %169 {offsets = [0, 64], sizes = [4, 32], strides = [1, 1]} : vector<4x128xf32> to vector<4x32xf32>
    %183 = math.tanh %182 : vector<4x32xf32>
    %184 = vector.extract_strided_slice %169 {offsets = [0, 96], sizes = [4, 32], strides = [1, 1]} : vector<4x128xf32> to vector<4x32xf32>
    %185 = arith.negf %184 : vector<4x32xf32>
    %186 = math.exp %185 : vector<4x32xf32>
    %cst_58 = arith.constant 1.000000e+00 : f32
    %187 = vector.broadcast %cst_58 : f32 to vector<4x32xf32>
    %188 = arith.addf %187, %186 : vector<4x32xf32>
    %189 = arith.divf %187, %188 : vector<4x32xf32>
    %190 = arith.mulf %181, %144 : vector<4x32xf32>
    %191 = arith.mulf %175, %183 : vector<4x32xf32>
    %192 = arith.addf %190, %191 : vector<4x32xf32>
    %193 = math.tanh %192 : vector<4x32xf32>
    %194 = arith.mulf %189, %193 : vector<4x32xf32>
    %195 = vector.extract_strided_slice %194 {offsets = [0, 0], sizes = [2, 32], strides = [1, 1]} : vector<4x32xf32> to vector<2x32xf32>
    %196 = arith.index_cast %c3_i32 : i32 to index
    %c0_59 = arith.constant 0 : index
    %c0_60 = arith.constant 0 : index
    %197 = vector.load %arg6[%196, %c0_59, %c0_60] : memref<8x2x64xf32, #tpu.memory_space<vmem>>, vector<1x2x32xf32>
    %198 = vector.shape_cast %197 : vector<1x2x32xf32> to vector<2x32xf32>
    %199 = vector.shape_cast %195 : vector<2x32xf32> to vector<1x2x32xf32>
    tpu.vector_store %arg6[%196, %c0_59, %c0_60], %199 {strides = array<i32>} : memref<8x2x64xf32, #tpu.memory_space<vmem>>, vector<1x2x32xf32>,
    %200 = vector.extract_strided_slice %194 {offsets = [2, 0], sizes = [2, 32], strides = [1, 1]} : vector<4x32xf32> to vector<2x32xf32>
    %201 = arith.index_cast %157 : i32 to index
    %c0_61 = arith.constant 0 : index
    %c32_62 = arith.constant 32 : index
    %202 = vector.load %arg6[%201, %c0_61, %c32_62] : memref<8x2x64xf32, #tpu.memory_space<vmem>>, vector<1x2x32xf32>
    %203 = vector.shape_cast %202 : vector<1x2x32xf32> to vector<2x32xf32>
    %204 = vector.shape_cast %200 : vector<2x32xf32> to vector<1x2x32xf32>
    tpu.vector_store %arg6[%201, %c0_61, %c32_62], %204 {strides = array<i32>} : memref<8x2x64xf32, #tpu.memory_space<vmem>>, vector<1x2x32xf32>,
    %c4_i32 = arith.constant 4 : i32
    %c7_i32_63 = arith.constant 7 : i32
    %205 = arith.subi %c7_i32_63, %c4_i32 : i32
    %cst_64 = arith.constant dense<0.000000e+00> : vector<4x256xf32>
    %206 = tpu.matmul %194, %7, %cst_64 {dimension_numbers = #tpu.dot_dimension_numbers<[1], [0], [0], [1], [0, 0, 1, 1], [], []>} : vector<4x32xf32>, vector<32x256xf32>, vector<4x256xf32> -> vector<4x256xf32>
    %207 = vector.extract_strided_slice %206 {offsets = [0, 0], sizes = [4, 128], strides = [1, 1]} : vector<4x256xf32> to vector<4x128xf32>
    %208 = vector.extract_strided_slice %206 {offsets = [0, 128], sizes = [4, 128], strides = [1, 1]} : vector<4x256xf32> to vector<4x128xf32>
    %209 = arith.select %10, %207, %208 : vector<4x128xi1>, vector<4x128xf32>
    %c2_i32_65 = arith.constant 2 : i32
    %210 = arith.muli %c4_i32, %c2_i32_65 : i32
    %211 = arith.index_cast %210 : i32 to index
    %c0_66 = arith.constant 0 : index
    %212 = vector.load %arg7[%211, %c0_66] : memref<16x256xf32, #tpu.memory_space<vmem>>, vector<2x128xf32>
    %c2_i32_67 = arith.constant 2 : i32
    %213 = arith.muli %205, %c2_i32_67 : i32
    %214 = arith.index_cast %213 : i32 to index
    %c128_68 = arith.constant 128 : index
    %215 = vector.load %arg7[%214, %c128_68] : memref<16x256xf32, #tpu.memory_space<vmem>>, vector<2x128xf32>
    %216 = tpu.concatenate %212, %215 in 0 : vector<2x128xf32>, vector<2x128xf32> -> vector<4x128xf32>
    %217 = arith.addf %216, %209 : vector<4x128xf32>
    %218 = vector.extract_strided_slice %217 {offsets = [0, 0], sizes = [4, 32], strides = [1, 1]} : vector<4x128xf32> to vector<4x32xf32>
    %219 = arith.negf %218 : vector<4x32xf32>
    %220 = math.exp %219 : vector<4x32xf32>
    %cst_69 = arith.constant 1.000000e+00 : f32
    %221 = vector.broadcast %cst_69 : f32 to vector<4x32xf32>
    %222 = arith.addf %221, %220 : vector<4x32xf32>
    %223 = arith.divf %221, %222 : vector<4x32xf32>
    %224 = vector.extract_strided_slice %217 {offsets = [0, 32], sizes = [4, 32], strides = [1, 1]} : vector<4x128xf32> to vector<4x32xf32>
    %225 = arith.negf %224 : vector<4x32xf32>
    %226 = math.exp %225 : vector<4x32xf32>
    %cst_70 = arith.constant 1.000000e+00 : f32
    %227 = vector.broadcast %cst_70 : f32 to vector<4x32xf32>
    %228 = arith.addf %227, %226 : vector<4x32xf32>
    %229 = arith.divf %227, %228 : vector<4x32xf32>
    %230 = vector.extract_strided_slice %217 {offsets = [0, 64], sizes = [4, 32], strides = [1, 1]} : vector<4x128xf32> to vector<4x32xf32>
    %231 = math.tanh %230 : vector<4x32xf32>
    %232 = vector.extract_strided_slice %217 {offsets = [0, 96], sizes = [4, 32], strides = [1, 1]} : vector<4x128xf32> to vector<4x32xf32>
    %233 = arith.negf %232 : vector<4x32xf32>
    %234 = math.exp %233 : vector<4x32xf32>
    %cst_71 = arith.constant 1.000000e+00 : f32
    %235 = vector.broadcast %cst_71 : f32 to vector<4x32xf32>
    %236 = arith.addf %235, %234 : vector<4x32xf32>
    %237 = arith.divf %235, %236 : vector<4x32xf32>
    %238 = arith.mulf %229, %192 : vector<4x32xf32>
    %239 = arith.mulf %223, %231 : vector<4x32xf32>
    %240 = arith.addf %238, %239 : vector<4x32xf32>
    %241 = math.tanh %240 : vector<4x32xf32>
    %242 = arith.mulf %237, %241 : vector<4x32xf32>
    %243 = vector.extract_strided_slice %242 {offsets = [0, 0], sizes = [2, 32], strides = [1, 1]} : vector<4x32xf32> to vector<2x32xf32>
    %244 = arith.index_cast %c4_i32 : i32 to index
    %c0_72 = arith.constant 0 : index
    %c0_73 = arith.constant 0 : index
    %245 = vector.load %arg6[%244, %c0_72, %c0_73] : memref<8x2x64xf32, #tpu.memory_space<vmem>>, vector<1x2x32xf32>
    %246 = vector.shape_cast %245 : vector<1x2x32xf32> to vector<2x32xf32>
    %247 = vector.shape_cast %243 : vector<2x32xf32> to vector<1x2x32xf32>
    tpu.vector_store %arg6[%244, %c0_72, %c0_73], %247 {strides = array<i32>} : memref<8x2x64xf32, #tpu.memory_space<vmem>>, vector<1x2x32xf32>,
    %248 = vector.extract_strided_slice %242 {offsets = [2, 0], sizes = [2, 32], strides = [1, 1]} : vector<4x32xf32> to vector<2x32xf32>
    %249 = arith.index_cast %205 : i32 to index
    %c0_74 = arith.constant 0 : index
    %c32_75 = arith.constant 32 : index
    %250 = vector.load %arg6[%249, %c0_74, %c32_75] : memref<8x2x64xf32, #tpu.memory_space<vmem>>, vector<1x2x32xf32>
    %251 = vector.shape_cast %250 : vector<1x2x32xf32> to vector<2x32xf32>
    %252 = vector.shape_cast %248 : vector<2x32xf32> to vector<1x2x32xf32>
    tpu.vector_store %arg6[%249, %c0_74, %c32_75], %252 {strides = array<i32>} : memref<8x2x64xf32, #tpu.memory_space<vmem>>, vector<1x2x32xf32>,
    %c5_i32 = arith.constant 5 : i32
    %c7_i32_76 = arith.constant 7 : i32
    %253 = arith.subi %c7_i32_76, %c5_i32 : i32
    %cst_77 = arith.constant dense<0.000000e+00> : vector<4x256xf32>
    %254 = tpu.matmul %242, %7, %cst_77 {dimension_numbers = #tpu.dot_dimension_numbers<[1], [0], [0], [1], [0, 0, 1, 1], [], []>} : vector<4x32xf32>, vector<32x256xf32>, vector<4x256xf32> -> vector<4x256xf32>
    %255 = vector.extract_strided_slice %254 {offsets = [0, 0], sizes = [4, 128], strides = [1, 1]} : vector<4x256xf32> to vector<4x128xf32>
    %256 = vector.extract_strided_slice %254 {offsets = [0, 128], sizes = [4, 128], strides = [1, 1]} : vector<4x256xf32> to vector<4x128xf32>
    %257 = arith.select %10, %255, %256 : vector<4x128xi1>, vector<4x128xf32>
    %c2_i32_78 = arith.constant 2 : i32
    %258 = arith.muli %c5_i32, %c2_i32_78 : i32
    %259 = arith.index_cast %258 : i32 to index
    %c0_79 = arith.constant 0 : index
    %260 = vector.load %arg7[%259, %c0_79] : memref<16x256xf32, #tpu.memory_space<vmem>>, vector<2x128xf32>
    %c2_i32_80 = arith.constant 2 : i32
    %261 = arith.muli %253, %c2_i32_80 : i32
    %262 = arith.index_cast %261 : i32 to index
    %c128_81 = arith.constant 128 : index
    %263 = vector.load %arg7[%262, %c128_81] : memref<16x256xf32, #tpu.memory_space<vmem>>, vector<2x128xf32>
    %264 = tpu.concatenate %260, %263 in 0 : vector<2x128xf32>, vector<2x128xf32> -> vector<4x128xf32>
    %265 = arith.addf %264, %257 : vector<4x128xf32>
    %266 = vector.extract_strided_slice %265 {offsets = [0, 0], sizes = [4, 32], strides = [1, 1]} : vector<4x128xf32> to vector<4x32xf32>
    %267 = arith.negf %266 : vector<4x32xf32>
    %268 = math.exp %267 : vector<4x32xf32>
    %cst_82 = arith.constant 1.000000e+00 : f32
    %269 = vector.broadcast %cst_82 : f32 to vector<4x32xf32>
    %270 = arith.addf %269, %268 : vector<4x32xf32>
    %271 = arith.divf %269, %270 : vector<4x32xf32>
    %272 = vector.extract_strided_slice %265 {offsets = [0, 32], sizes = [4, 32], strides = [1, 1]} : vector<4x128xf32> to vector<4x32xf32>
    %273 = arith.negf %272 : vector<4x32xf32>
    %274 = math.exp %273 : vector<4x32xf32>
    %cst_83 = arith.constant 1.000000e+00 : f32
    %275 = vector.broadcast %cst_83 : f32 to vector<4x32xf32>
    %276 = arith.addf %275, %274 : vector<4x32xf32>
    %277 = arith.divf %275, %276 : vector<4x32xf32>
    %278 = vector.extract_strided_slice %265 {offsets = [0, 64], sizes = [4, 32], strides = [1, 1]} : vector<4x128xf32> to vector<4x32xf32>
    %279 = math.tanh %278 : vector<4x32xf32>
    %280 = vector.extract_strided_slice %265 {offsets = [0, 96], sizes = [4, 32], strides = [1, 1]} : vector<4x128xf32> to vector<4x32xf32>
    %281 = arith.negf %280 : vector<4x32xf32>
    %282 = math.exp %281 : vector<4x32xf32>
    %cst_84 = arith.constant 1.000000e+00 : f32
    %283 = vector.broadcast %cst_84 : f32 to vector<4x32xf32>
    %284 = arith.addf %283, %282 : vector<4x32xf32>
    %285 = arith.divf %283, %284 : vector<4x32xf32>
    %286 = arith.mulf %277, %240 : vector<4x32xf32>
    %287 = arith.mulf %271, %279 : vector<4x32xf32>
    %288 = arith.addf %286, %287 : vector<4x32xf32>
    %289 = math.tanh %288 : vector<4x32xf32>
    %290 = arith.mulf %285, %289 : vector<4x32xf32>
    %291 = vector.extract_strided_slice %290 {offsets = [0, 0], sizes = [2, 32], strides = [1, 1]} : vector<4x32xf32> to vector<2x32xf32>
    %292 = arith.index_cast %c5_i32 : i32 to index
    %c0_85 = arith.constant 0 : index
    %c0_86 = arith.constant 0 : index
    %293 = vector.load %arg6[%292, %c0_85, %c0_86] : memref<8x2x64xf32, #tpu.memory_space<vmem>>, vector<1x2x32xf32>
    %294 = vector.shape_cast %293 : vector<1x2x32xf32> to vector<2x32xf32>
    %295 = vector.shape_cast %291 : vector<2x32xf32> to vector<1x2x32xf32>
    tpu.vector_store %arg6[%292, %c0_85, %c0_86], %295 {strides = array<i32>} : memref<8x2x64xf32, #tpu.memory_space<vmem>>, vector<1x2x32xf32>,
    %296 = vector.extract_strided_slice %290 {offsets = [2, 0], sizes = [2, 32], strides = [1, 1]} : vector<4x32xf32> to vector<2x32xf32>
    %297 = arith.index_cast %253 : i32 to index
    %c0_87 = arith.constant 0 : index
    %c32_88 = arith.constant 32 : index
    %298 = vector.load %arg6[%297, %c0_87, %c32_88] : memref<8x2x64xf32, #tpu.memory_space<vmem>>, vector<1x2x32xf32>
    %299 = vector.shape_cast %298 : vector<1x2x32xf32> to vector<2x32xf32>
    %300 = vector.shape_cast %296 : vector<2x32xf32> to vector<1x2x32xf32>
    tpu.vector_store %arg6[%297, %c0_87, %c32_88], %300 {strides = array<i32>} : memref<8x2x64xf32, #tpu.memory_space<vmem>>, vector<1x2x32xf32>,
    %c6_i32 = arith.constant 6 : i32
    %c7_i32_89 = arith.constant 7 : i32
    %301 = arith.subi %c7_i32_89, %c6_i32 : i32
    %cst_90 = arith.constant dense<0.000000e+00> : vector<4x256xf32>
    %302 = tpu.matmul %290, %7, %cst_90 {dimension_numbers = #tpu.dot_dimension_numbers<[1], [0], [0], [1], [0, 0, 1, 1], [], []>} : vector<4x32xf32>, vector<32x256xf32>, vector<4x256xf32> -> vector<4x256xf32>
    %303 = vector.extract_strided_slice %302 {offsets = [0, 0], sizes = [4, 128], strides = [1, 1]} : vector<4x256xf32> to vector<4x128xf32>
    %304 = vector.extract_strided_slice %302 {offsets = [0, 128], sizes = [4, 128], strides = [1, 1]} : vector<4x256xf32> to vector<4x128xf32>
    %305 = arith.select %10, %303, %304 : vector<4x128xi1>, vector<4x128xf32>
    %c2_i32_91 = arith.constant 2 : i32
    %306 = arith.muli %c6_i32, %c2_i32_91 : i32
    %307 = arith.index_cast %306 : i32 to index
    %c0_92 = arith.constant 0 : index
    %308 = vector.load %arg7[%307, %c0_92] : memref<16x256xf32, #tpu.memory_space<vmem>>, vector<2x128xf32>
    %c2_i32_93 = arith.constant 2 : i32
    %309 = arith.muli %301, %c2_i32_93 : i32
    %310 = arith.index_cast %309 : i32 to index
    %c128_94 = arith.constant 128 : index
    %311 = vector.load %arg7[%310, %c128_94] : memref<16x256xf32, #tpu.memory_space<vmem>>, vector<2x128xf32>
    %312 = tpu.concatenate %308, %311 in 0 : vector<2x128xf32>, vector<2x128xf32> -> vector<4x128xf32>
    %313 = arith.addf %312, %305 : vector<4x128xf32>
    %314 = vector.extract_strided_slice %313 {offsets = [0, 0], sizes = [4, 32], strides = [1, 1]} : vector<4x128xf32> to vector<4x32xf32>
    %315 = arith.negf %314 : vector<4x32xf32>
    %316 = math.exp %315 : vector<4x32xf32>
    %cst_95 = arith.constant 1.000000e+00 : f32
    %317 = vector.broadcast %cst_95 : f32 to vector<4x32xf32>
    %318 = arith.addf %317, %316 : vector<4x32xf32>
    %319 = arith.divf %317, %318 : vector<4x32xf32>
    %320 = vector.extract_strided_slice %313 {offsets = [0, 32], sizes = [4, 32], strides = [1, 1]} : vector<4x128xf32> to vector<4x32xf32>
    %321 = arith.negf %320 : vector<4x32xf32>
    %322 = math.exp %321 : vector<4x32xf32>
    %cst_96 = arith.constant 1.000000e+00 : f32
    %323 = vector.broadcast %cst_96 : f32 to vector<4x32xf32>
    %324 = arith.addf %323, %322 : vector<4x32xf32>
    %325 = arith.divf %323, %324 : vector<4x32xf32>
    %326 = vector.extract_strided_slice %313 {offsets = [0, 64], sizes = [4, 32], strides = [1, 1]} : vector<4x128xf32> to vector<4x32xf32>
    %327 = math.tanh %326 : vector<4x32xf32>
    %328 = vector.extract_strided_slice %313 {offsets = [0, 96], sizes = [4, 32], strides = [1, 1]} : vector<4x128xf32> to vector<4x32xf32>
    %329 = arith.negf %328 : vector<4x32xf32>
    %330 = math.exp %329 : vector<4x32xf32>
    %cst_97 = arith.constant 1.000000e+00 : f32
    %331 = vector.broadcast %cst_97 : f32 to vector<4x32xf32>
    %332 = arith.addf %331, %330 : vector<4x32xf32>
    %333 = arith.divf %331, %332 : vector<4x32xf32>
    %334 = arith.mulf %325, %288 : vector<4x32xf32>
    %335 = arith.mulf %319, %327 : vector<4x32xf32>
    %336 = arith.addf %334, %335 : vector<4x32xf32>
    %337 = math.tanh %336 : vector<4x32xf32>
    %338 = arith.mulf %333, %337 : vector<4x32xf32>
    %339 = vector.extract_strided_slice %338 {offsets = [0, 0], sizes = [2, 32], strides = [1, 1]} : vector<4x32xf32> to vector<2x32xf32>
    %340 = arith.index_cast %c6_i32 : i32 to index
    %c0_98 = arith.constant 0 : index
    %c0_99 = arith.constant 0 : index
    %341 = vector.load %arg6[%340, %c0_98, %c0_99] : memref<8x2x64xf32, #tpu.memory_space<vmem>>, vector<1x2x32xf32>
    %342 = vector.shape_cast %341 : vector<1x2x32xf32> to vector<2x32xf32>
    %343 = vector.shape_cast %339 : vector<2x32xf32> to vector<1x2x32xf32>
    tpu.vector_store %arg6[%340, %c0_98, %c0_99], %343 {strides = array<i32>} : memref<8x2x64xf32, #tpu.memory_space<vmem>>, vector<1x2x32xf32>,
    %344 = vector.extract_strided_slice %338 {offsets = [2, 0], sizes = [2, 32], strides = [1, 1]} : vector<4x32xf32> to vector<2x32xf32>
    %345 = arith.index_cast %301 : i32 to index
    %c0_100 = arith.constant 0 : index
    %c32_101 = arith.constant 32 : index
    %346 = vector.load %arg6[%345, %c0_100, %c32_101] : memref<8x2x64xf32, #tpu.memory_space<vmem>>, vector<1x2x32xf32>
    %347 = vector.shape_cast %346 : vector<1x2x32xf32> to vector<2x32xf32>
    %348 = vector.shape_cast %344 : vector<2x32xf32> to vector<1x2x32xf32>
    tpu.vector_store %arg6[%345, %c0_100, %c32_101], %348 {strides = array<i32>} : memref<8x2x64xf32, #tpu.memory_space<vmem>>, vector<1x2x32xf32>,
    %c7_i32_102 = arith.constant 7 : i32
    %c7_i32_103 = arith.constant 7 : i32
    %349 = arith.subi %c7_i32_103, %c7_i32_102 : i32
    %cst_104 = arith.constant dense<0.000000e+00> : vector<4x256xf32>
    %350 = tpu.matmul %338, %7, %cst_104 {dimension_numbers = #tpu.dot_dimension_numbers<[1], [0], [0], [1], [0, 0, 1, 1], [], []>} : vector<4x32xf32>, vector<32x256xf32>, vector<4x256xf32> -> vector<4x256xf32>
    %351 = vector.extract_strided_slice %350 {offsets = [0, 0], sizes = [4, 128], strides = [1, 1]} : vector<4x256xf32> to vector<4x128xf32>
    %352 = vector.extract_strided_slice %350 {offsets = [0, 128], sizes = [4, 128], strides = [1, 1]} : vector<4x256xf32> to vector<4x128xf32>
    %353 = arith.select %10, %351, %352 : vector<4x128xi1>, vector<4x128xf32>
    %c2_i32_105 = arith.constant 2 : i32
    %354 = arith.muli %c7_i32_102, %c2_i32_105 : i32
    %355 = arith.index_cast %354 : i32 to index
    %c0_106 = arith.constant 0 : index
    %356 = vector.load %arg7[%355, %c0_106] : memref<16x256xf32, #tpu.memory_space<vmem>>, vector<2x128xf32>
    %c2_i32_107 = arith.constant 2 : i32
    %357 = arith.muli %349, %c2_i32_107 : i32
    %358 = arith.index_cast %357 : i32 to index
    %c128_108 = arith.constant 128 : index
    %359 = vector.load %arg7[%358, %c128_108] : memref<16x256xf32, #tpu.memory_space<vmem>>, vector<2x128xf32>
    %360 = tpu.concatenate %356, %359 in 0 : vector<2x128xf32>, vector<2x128xf32> -> vector<4x128xf32>
    %361 = arith.addf %360, %353 : vector<4x128xf32>
    %362 = vector.extract_strided_slice %361 {offsets = [0, 0], sizes = [4, 32], strides = [1, 1]} : vector<4x128xf32> to vector<4x32xf32>
    %363 = arith.negf %362 : vector<4x32xf32>
    %364 = math.exp %363 : vector<4x32xf32>
    %cst_109 = arith.constant 1.000000e+00 : f32
    %365 = vector.broadcast %cst_109 : f32 to vector<4x32xf32>
    %366 = arith.addf %365, %364 : vector<4x32xf32>
    %367 = arith.divf %365, %366 : vector<4x32xf32>
    %368 = vector.extract_strided_slice %361 {offsets = [0, 32], sizes = [4, 32], strides = [1, 1]} : vector<4x128xf32> to vector<4x32xf32>
    %369 = arith.negf %368 : vector<4x32xf32>
    %370 = math.exp %369 : vector<4x32xf32>
    %cst_110 = arith.constant 1.000000e+00 : f32
    %371 = vector.broadcast %cst_110 : f32 to vector<4x32xf32>
    %372 = arith.addf %371, %370 : vector<4x32xf32>
    %373 = arith.divf %371, %372 : vector<4x32xf32>
    %374 = vector.extract_strided_slice %361 {offsets = [0, 64], sizes = [4, 32], strides = [1, 1]} : vector<4x128xf32> to vector<4x32xf32>
    %375 = math.tanh %374 : vector<4x32xf32>
    %376 = vector.extract_strided_slice %361 {offsets = [0, 96], sizes = [4, 32], strides = [1, 1]} : vector<4x128xf32> to vector<4x32xf32>
    %377 = arith.negf %376 : vector<4x32xf32>
    %378 = math.exp %377 : vector<4x32xf32>
    %cst_111 = arith.constant 1.000000e+00 : f32
    %379 = vector.broadcast %cst_111 : f32 to vector<4x32xf32>
    %380 = arith.addf %379, %378 : vector<4x32xf32>
    %381 = arith.divf %379, %380 : vector<4x32xf32>
    %382 = arith.mulf %373, %336 : vector<4x32xf32>
    %383 = arith.mulf %367, %375 : vector<4x32xf32>
    %384 = arith.addf %382, %383 : vector<4x32xf32>
    %385 = math.tanh %384 : vector<4x32xf32>
    %386 = arith.mulf %381, %385 : vector<4x32xf32>
    %387 = vector.extract_strided_slice %386 {offsets = [0, 0], sizes = [2, 32], strides = [1, 1]} : vector<4x32xf32> to vector<2x32xf32>
    %388 = arith.index_cast %c7_i32_102 : i32 to index
    %c0_112 = arith.constant 0 : index
    %c0_113 = arith.constant 0 : index
    %389 = vector.load %arg6[%388, %c0_112, %c0_113] : memref<8x2x64xf32, #tpu.memory_space<vmem>>, vector<1x2x32xf32>
    %390 = vector.shape_cast %389 : vector<1x2x32xf32> to vector<2x32xf32>
    %391 = vector.shape_cast %387 : vector<2x32xf32> to vector<1x2x32xf32>
    tpu.vector_store %arg6[%388, %c0_112, %c0_113], %391 {strides = array<i32>} : memref<8x2x64xf32, #tpu.memory_space<vmem>>, vector<1x2x32xf32>,
    %392 = vector.extract_strided_slice %386 {offsets = [2, 0], sizes = [2, 32], strides = [1, 1]} : vector<4x32xf32> to vector<2x32xf32>
    %393 = arith.index_cast %349 : i32 to index
    %c0_114 = arith.constant 0 : index
    %c32_115 = arith.constant 32 : index
    %394 = vector.load %arg6[%393, %c0_114, %c32_115] : memref<8x2x64xf32, #tpu.memory_space<vmem>>, vector<1x2x32xf32>
    %395 = vector.shape_cast %394 : vector<1x2x32xf32> to vector<2x32xf32>
    %396 = vector.shape_cast %392 : vector<2x32xf32> to vector<1x2x32xf32>
    tpu.vector_store %arg6[%393, %c0_114, %c32_115], %396 {strides = array<i32>} : memref<8x2x64xf32, #tpu.memory_space<vmem>>, vector<1x2x32xf32>,
    %c8_i32 = arith.constant 8 : i32
    return
  }
}

</mosaic_0001>

<llo_original>
// kernel: bilstm_forward.2
$region0: #{bilstm_forward.2}
  #allocation0 [shape = 'u32[]', space=smem, size = 0x4, offset = 0x4, fixed_abs, tag = 'smem constant byte address 0x4 - core index']
  #allocation1 [shape = 'u32[144,128]{1,0:T(1,128)}', space=vmem, size = 0x12000, scoped, tag = 'internal scratch']
  #allocation2 [shape = 'f32[16,256]{1,0:T(8,128)}', space=vmem, size = 0x4000, scoped, tag = 'scratch operand']
  %s0 = inlined_call_operand.vmem [shape: f32[16,32], index: 0, kind: input, shape index: {}]
  %s1 = inlined_call_operand.vmem [shape: f32[32,256], index: 1, kind: input, shape index: {}]
  %s2 = inlined_call_operand.vmem [shape: f32[32,256], index: 2, kind: input, shape index: {}]
  %s3 = inlined_call_operand.vmem [shape: f32[1,256], index: 3, kind: input, shape index: {}]
  %s4 = inlined_call_operand.vmem [shape: f32[4,32], index: 4, kind: input, shape index: {}]
  %s5 = inlined_call_operand.vmem [shape: f32[4,32], index: 5, kind: input, shape index: {}]
  %s6 = inlined_call_operand.vmem [shape: f32[8,2,64], index: 6, kind: output, shape index: {}]
  %s7 = sld [smem:[#allocation0]]
  $region34: #{bilstm_forward.2} parent=0
    _
  %s9 = ssub.s32 1, %s7
  %s10 = scalar_select 0, %s9, %s7
  // Predicated region
  $region2: #{bilstm_forward.2} parent=0 // pred_check
    _
  $region3: #{bilstm_forward.2} parent=0 // pred_check_branch
    %12 = sbr.rel (0) target = $region5
  $region4: #{bilstm_forward.2} parent=0 // pred_region
    _
  $region5: #{bilstm_forward.2} parent=0 // pred_fallthru
    _
  // Predicated region
  $region6: #{bilstm_forward.2} parent=0 // pred_check
    _
  $region7: #{bilstm_forward.2} parent=0 // pred_check_branch
    %14 = sbr.rel (0) target = $region9
  $region8: #{bilstm_forward.2} parent=0 // pred_region
    _
  $region9: #{bilstm_forward.2} parent=0 // pred_fallthru
    _
  // Predicated region
  $region10: #{bilstm_forward.2} parent=0 // pred_check
    _
  $region11: #{bilstm_forward.2} parent=0 // pred_check_branch
    %16 = sbr.rel (0) target = $region13
  $region12: #{bilstm_forward.2} parent=0 // pred_region
    _
  $region13: #{bilstm_forward.2} parent=0 // pred_fallthru
    _
  // Predicated region
  $region14: #{bilstm_forward.2} parent=0 // pred_check
    _
  $region15: #{bilstm_forward.2} parent=0 // pred_check_branch
    %18 = sbr.rel (0) target = $region17
  $region16: #{bilstm_forward.2} parent=0 // pred_region
    _
  $region17: #{bilstm_forward.2} parent=0 // pred_fallthru
    _
  // Predicated region
  $region18: #{bilstm_forward.2} parent=0 // pred_check
    _
  $region19: #{bilstm_forward.2} parent=0 // pred_check_branch
    %20 = sbr.rel (0) target = $region21
  $region20: #{bilstm_forward.2} parent=0 // pred_region
    _
  $region21: #{bilstm_forward.2} parent=0 // pred_fallthru
    _
  // Predicated region
  $region22: #{bilstm_forward.2} parent=0 // pred_check
    _
  $region23: #{bilstm_forward.2} parent=0 // pred_check_branch
    %22 = sbr.rel (0) target = $region25
  $region24: #{bilstm_forward.2} parent=0 // pred_region
    _
  $region25: #{bilstm_forward.2} parent=0 // pred_fallthru
    _
  %v23 = vld [vmem:[%s0] sm:$0xff]
  %v24 = vld [vmem:[%s0 + $0x8] sm:$0xff]
  %v25 = vld [vmem:[%s1] sm:$0xff]
  %v26 = vld [vmem:[%s1 + $0x8] sm:$0xff]
  %v27 = vld [vmem:[%s1 + $0x10] sm:$0xff]
  %v28 = vld [vmem:[%s1 + $0x18] sm:$0xff]
  %v29 = vld [vmem:[%s1 + $0x20] sm:$0xff]
  %v30 = vld [vmem:[%s1 + $0x28] sm:$0xff]
  %v31 = vld [vmem:[%s1 + $0x30] sm:$0xff]
  %v32 = vld [vmem:[%s1 + $0x38] sm:$0xff]
  %v33 = vld [vmem:[%s3] sm:$0x3]
  %v35 = vlaneseq
  %v36 = vshrl.u32 %v35, 7
  %v37 = vsub.s32 0, %v36
  %v38 = vrot.slane %v33, %v37
  %v39 = vlaneseq
  %v40 = vshrl.u32 %v39, 7
  %v41 = vsub.s32 1, %v40
  %v42 = vrot.slane %v33, %v41
  %vm45 = vcmask 261120
  %v47 = vsel %vm45, %v23, 0
  %v50 = vsel %vm45, %v24, 0
  %52 = vmatprep.subr.mxu0 0.0
  %53 = vmatpush1.msra.mxu0 0.0
  %54 = vmatprep.subr.mxu0 0.0
  %55 = vmatpush1.msra.mxu0 0.0
  %56 = vmatprep.subr.mxu0 0.0
  %57 = vmatpush1.msra.mxu0 0.0
  %58 = vmatprep.subr.mxu0 0.0
  %59 = vmatpush1.msra.mxu0 0.0
  %60 = vmatprep.subr.mxu0 0.0
  %61 = vmatpush1.msra.mxu0 0.0
  %62 = vmatprep.subr.mxu0 0.0
  %63 = vmatpush1.msra.mxu0 0.0
  %64 = vmatprep.subr.mxu0 0.0
  %65 = vmatpush1.msra.mxu0 0.0
  %66 = vmatprep.subr.mxu0 0.0
  %67 = vmatpush1.msra.mxu0 0.0
  %68 = vmatprep.subr.mxu0 0.0
  %69 = vmatpush1.msra.mxu0 0.0
  %70 = vmatprep.subr.mxu0 0.0
  %71 = vmatpush1.msra.mxu0 0.0
  %72 = vmatprep.subr.mxu0 0.0
  %73 = vmatpush1.msra.mxu0 0.0
  %74 = vmatprep.subr.mxu0 0.0
  %75 = vmatpush1.msra.mxu0 0.0
  %76 = vmatprep.subr.mxu0 %v32
  %77 = vmatpush1.msra.mxu0 %v31
  %78 = vmatprep.subr.mxu0 %v30
  %79 = vmatpush1.msra.mxu0 %v29
  %80 = vmatprep.subr.mxu0 %v28
  %81 = vmatpush1.msra.mxu0 %v27
  %82 = vmatprep.subr.mxu0 %v26
  %83 = vmatpush1.msra.mxu0 %v25
  %84 = vmatprep.subr.mxu0 0.0
  %85 = vmatpush2.msra.mxu0 0.0
  %86 = vmatprep.subr.mxu0 0.0
  %87 = vmatpush2.msra.mxu0 0.0
  %88 = vmatprep.subr.mxu0 0.0
  %89 = vmatpush2.msra.mxu0 0.0
  %90 = vmatprep.subr.mxu0 0.0
  %91 = vmatpush2.msra.mxu0 0.0
  %92 = vmatprep.subr.mxu0 0.0
  %93 = vmatpush2.msra.mxu0 0.0
  %94 = vmatprep.subr.mxu0 0.0
  %95 = vmatpush2.msra.mxu0 0.0
  %96 = vmatprep.subr.mxu0 0.0
  %97 = vmatpush2.msra.mxu0 0.0
  %98 = vmatprep.subr.mxu0 0.0
  %99 = vmatpush2.msra.mxu0 0.0
  %100 = vmatprep.subr.mxu0 0.0
  %101 = vmatpush2.msra.mxu0 0.0
  %102 = vmatprep.subr.mxu0 0.0
  %103 = vmatpush2.msra.mxu0 0.0
  %104 = vmatprep.subr.mxu0 0.0
  %105 = vmatpush2.msra.mxu0 0.0
  %106 = vmatprep.subr.mxu0 0.0
  %107 = vmatpush2.msra.mxu0 0.0
  %108 = vmatprep.subr.mxu0 0.0
  %109 = vmatpush2.msra.mxu0 0.0
  %110 = vmatprep.subr.mxu0 0.0
  %111 = vmatpush2.msra.mxu0 0.0
  %112 = vmatprep.subr.mxu0 0.0
  %113 = vmatpush2.msra.mxu0 0.0
  %114 = vmatprep.subr.mxu0 0.0
  %115 = vmatpush2.msra.mxu0 0.0
  %116 = vmatprep.mubr.f32.mxu0 0.0
  %117 = vmatmul.mubr.f32.gmra.mxu0 %v47
  %v118 = vpop.f32.mrf.mxu0
  %v119 = vadd.f32 %v38, %v118
  %v120 = vpop.f32.mrf.mxu0
  %v121 = vadd.f32 %v42, %v120
  %122 = vmatprep.mubr.f32.mxu0 0.0
  %123 = vmatmul.mubr.f32.gmra.mxu0 %v50
  %v124 = vpop.f32.mrf.mxu0
  %v125 = vadd.f32 %v38, %v124
  %v126 = vpop.f32.mrf.mxu0
  %v127 = vadd.f32 %v42, %v126
  %128 = vdwg.mxu0
  %129 = vst [vmem:[#allocation2] sm:$0xff] %v119
  %130 = vst [vmem:[#allocation2 + $0x8] sm:$0xff] %v121
  %131 = vst [vmem:[#allocation2 + $0x10] sm:$0xff] %v125
  %132 = vst [vmem:[#allocation2 + $0x18] sm:$0xff] %v127
  %v133 = vld [vmem:[%s2] sm:$0xff]
  %v134 = vld [vmem:[%s2 + $0x8] sm:$0xff]
  %v135 = vld [vmem:[%s2 + $0x10] sm:$0xff]
  %v136 = vld [vmem:[%s2 + $0x18] sm:$0xff]
  %v137 = vld [vmem:[%s2 + $0x20] sm:$0xff]
  %v138 = vld [vmem:[%s2 + $0x28] sm:$0xff]
  %v139 = vld [vmem:[%s2 + $0x30] sm:$0xff]
  %v140 = vld [vmem:[%s2 + $0x38] sm:$0xff]
  %v141 = vlaneseq
  %v142 = vshrl.u32 %v141, 7
  %vm143 = vcmp.lt.s32.totalorder %v142, 2
  %v144 = vld [vmem:[%s4] sm:$0xf]
  %v145 = vld [vmem:[%s5] sm:$0xf]
  %v147 = vsel %vm45, %v144, 0
  %149 = vmatprep.subr.mxu0 0.0
  %150 = vmatpush1.msra.mxu0 0.0
  %151 = vmatprep.subr.mxu0 0.0
  %152 = vmatpush1.msra.mxu0 0.0
  %153 = vmatprep.subr.mxu0 0.0
  %154 = vmatpush1.msra.mxu0 0.0
  %155 = vmatprep.subr.mxu0 0.0
  %156 = vmatpush1.msra.mxu0 0.0
  %157 = vmatprep.subr.mxu0 0.0
  %158 = vmatpush1.msra.mxu0 0.0
  %159 = vmatprep.subr.mxu0 0.0
  %160 = vmatpush1.msra.mxu0 0.0
  %161 = vmatprep.subr.mxu0 0.0
  %162 = vmatpush1.msra.mxu0 0.0
  %163 = vmatprep.subr.mxu0 0.0
  %164 = vmatpush1.msra.mxu0 0.0
  %165 = vmatprep.subr.mxu0 0.0
  %166 = vmatpush1.msra.mxu0 0.0
  %167 = vmatprep.subr.mxu0 0.0
  %168 = vmatpush1.msra.mxu0 0.0
  %169 = vmatprep.subr.mxu0 0.0
  %170 = vmatpush1.msra.mxu0 0.0
  %171 = vmatprep.subr.mxu0 0.0
  %172 = vmatpush1.msra.mxu0 0.0
  %173 = vmatprep.subr.mxu0 %v140
  %174 = vmatpush1.msra.mxu0 %v139
  %175 = vmatprep.subr.mxu0 %v138
  %176 = vmatpush1.msra.mxu0 %v137
  %177 = vmatprep.subr.mxu0 %v136
  %178 = vmatpush1.msra.mxu0 %v135
  %179 = vmatprep.subr.mxu0 %v134
  %180 = vmatpush1.msra.mxu0 %v133
  %181 = vmatprep.subr.mxu0 0.0
  %182 = vmatpush2.msra.mxu0 0.0
  %183 = vmatprep.subr.mxu0 0.0
  %184 = vmatpush2.msra.mxu0 0.0
  %185 = vmatprep.subr.mxu0 0.0
  %186 = vmatpush2.msra.mxu0 0.0
  %187 = vmatprep.subr.mxu0 0.0
  %188 = vmatpush2.msra.mxu0 0.0
  %189 = vmatprep.subr.mxu0 0.0
  %190 = vmatpush2.msra.mxu0 0.0
  %191 = vmatprep.subr.mxu0 0.0
  %192 = vmatpush2.msra.mxu0 0.0
  %193 = vmatprep.subr.mxu0 0.0
  %194 = vmatpush2.msra.mxu0 0.0
  %195 = vmatprep.subr.mxu0 0.0
  %196 = vmatpush2.msra.mxu0 0.0
  %197 = vmatprep.subr.mxu0 0.0
  %198 = vmatpush2.msra.mxu0 0.0
  %199 = vmatprep.subr.mxu0 0.0
  %200 = vmatpush2.msra.mxu0 0.0
  %201 = vmatprep.subr.mxu0 0.0
  %202 = vmatpush2.msra.mxu0 0.0
  %203 = vmatprep.subr.mxu0 0.0
  %204 = vmatpush2.msra.mxu0 0.0
  %205 = vmatprep.subr.mxu0 0.0
  %206 = vmatpush2.msra.mxu0 0.0
  %207 = vmatprep.subr.mxu0 0.0
  %208 = vmatpush2.msra.mxu0 0.0
  %209 = vmatprep.subr.mxu0 0.0
  %210 = vmatpush2.msra.mxu0 0.0
  %211 = vmatprep.subr.mxu0 0.0
  %212 = vmatpush2.msra.mxu0 0.0
  %213 = vmatprep.mubr.f32.mxu0 0.0
  %214 = vmatmul.mubr.f32.gmra.mxu0 %v147
  %v215 = vpop.f32.mrf.mxu0
  %v216 = vadd.f32 0.0, %v215
  %v217 = vpop.f32.mrf.mxu0
  %v218 = vadd.f32 0.0, %v217
  %219 = vdwg.mxu0
  %v220 = vsel %vm143, %v216, %v218
  %v221 = vld [vmem:[#allocation2] sm:$0x3]
  %v222 = vld [vmem:[#allocation2 + $0x18] sm:$0xc0]
  %v224 = vrot.slane %v222, 4
  %vm226 = vcmask 1041408
  %v227 = vsel %vm226, %v221, %v224
  %v228 = vadd.f32 %v227, %v220
  %v229 = vxor.u32 %v228, 2147483648
  %v230 = vmul.f32 %v229, 1.442695
  %v231 = vpow.pop %v230
  %v232 = vadd.f32 %v231, 1.0
  %v233 = vrcp.pop %v232
  %v234 = vmul.f32 1.0, %v233
  %v235 = vtanh.pop %v228
  %237 = vrot.lane.b32.xlu0 %v145, 32
  %v238 = vpop.permute.xlu0 %237
  %v240 = vmul.f32 %v234, %v238
  %242 = vrot.lane.b32.xlu0 %v235, 64
  %v243 = vpop.permute.xlu0 %242
  %v245 = vmul.f32 %v234, %v243
  %247 = vrot.lane.b32.xlu0 %v245, 32
  %v248 = vpop.permute.xlu0 %247
  %v250 = vadd.f32 %v240, %v248
  %v251 = vtanh.pop %v250
  %253 = vrot.lane.b32.xlu0 %v251, 64
  %v254 = vpop.permute.xlu0 %253
  %v256 = vmul.f32 %v234, %v254
  %258 = vrot.lane.b32.xlu0 %v256, 32
  %v259 = vpop.permute.xlu0 %258
  %vm261 = vcmask 254976
  %262 = vst.msk [vmem:[%s6] sm:$0x3] %vm261, %v259
  %263 = vrot.lane.b32.xlu0 %v256, 64
  %v264 = vpop.permute.xlu0 %263
  %s266 = scalar_lea.vmem %s6, 14
  %vm267 = vcmask 519426
  %268 = vst.msk [vmem:[%s266 - $0x2] sm:$0xc] %vm267, %v264
  %v269 = vsel %vm45, %v259, 0
  %271 = vmatprep.subr.mxu0 0.0
  %272 = vmatpush1.msra.mxu0 0.0
  %273 = vmatprep.subr.mxu0 0.0
  %274 = vmatpush1.msra.mxu0 0.0
  %275 = vmatprep.subr.mxu0 0.0
  %276 = vmatpush1.msra.mxu0 0.0
  %277 = vmatprep.subr.mxu0 0.0
  %278 = vmatpush1.msra.mxu0 0.0
  %279 = vmatprep.subr.mxu0 0.0
  %280 = vmatpush1.msra.mxu0 0.0
  %281 = vmatprep.subr.mxu0 0.0
  %282 = vmatpush1.msra.mxu0 0.0
  %283 = vmatprep.subr.mxu0 0.0
  %284 = vmatpush1.msra.mxu0 0.0
  %285 = vmatprep.subr.mxu0 0.0
  %286 = vmatpush1.msra.mxu0 0.0
  %287 = vmatprep.subr.mxu0 0.0
  %288 = vmatpush1.msra.mxu0 0.0
  %289 = vmatprep.subr.mxu0 0.0
  %290 = vmatpush1.msra.mxu0 0.0
  %291 = vmatprep.subr.mxu0 0.0
  %292 = vmatpush1.msra.mxu0 0.0
  %293 = vmatprep.subr.mxu0 0.0
  %294 = vmatpush1.msra.mxu0 0.0
  %295 = vmatprep.subr.mxu0 %v140
  %296 = vmatpush1.msra.mxu0 %v139
  %297 = vmatprep.subr.mxu0 %v138
  %298 = vmatpush1.msra.mxu0 %v137
  %299 = vmatprep.subr.mxu0 %v136
  %300 = vmatpush1.msra.mxu0 %v135
  %301 = vmatprep.subr.mxu0 %v134
  %302 = vmatpush1.msra.mxu0 %v133
  %303 = vmatprep.subr.mxu0 0.0
  %304 = vmatpush2.msra.mxu0 0.0
  %305 = vmatprep.subr.mxu0 0.0
  %306 = vmatpush2.msra.mxu0 0.0
  %307 = vmatprep.subr.mxu0 0.0
  %308 = vmatpush2.msra.mxu0 0.0
  %309 = vmatprep.subr.mxu0 0.0
  %310 = vmatpush2.msra.mxu0 0.0
  %311 = vmatprep.subr.mxu0 0.0
  %312 = vmatpush2.msra.mxu0 0.0
  %313 = vmatprep.subr.mxu0 0.0
  %314 = vmatpush2.msra.mxu0 0.0
  %315 = vmatprep.subr.mxu0 0.0
  %316 = vmatpush2.msra.mxu0 0.0
  %317 = vmatprep.subr.mxu0 0.0
  %318 = vmatpush2.msra.mxu0 0.0
  %319 = vmatprep.subr.mxu0 0.0
  %320 = vmatpush2.msra.mxu0 0.0
  %321 = vmatprep.subr.mxu0 0.0
  %322 = vmatpush2.msra.mxu0 0.0
  %323 = vmatprep.subr.mxu0 0.0
  %324 = vmatpush2.msra.mxu0 0.0
  %325 = vmatprep.subr.mxu0 0.0
  %326 = vmatpush2.msra.mxu0 0.0
  %327 = vmatprep.subr.mxu0 0.0
  %328 = vmatpush2.msra.mxu0 0.0
  %329 = vmatprep.subr.mxu0 0.0
  %330 = vmatpush2.msra.mxu0 0.0
  %331 = vmatprep.subr.mxu0 0.0
  %332 = vmatpush2.msra.mxu0 0.0
  %333 = vmatprep.subr.mxu0 0.0
  %334 = vmatpush2.msra.mxu0 0.0
  %335 = vmatprep.mubr.f32.mxu0 0.0
  %336 = vmatmul.mubr.f32.gmra.mxu0 %v269
  %v337 = vpop.f32.mrf.mxu0
  %v338 = vadd.f32 0.0, %v337
  %v339 = vpop.f32.mrf.mxu0
  %v340 = vadd.f32 0.0, %v339
  %341 = vdwg.mxu0
  %v342 = vsel %vm143, %v338, %v340
  %v343 = vld [vmem:[#allocation2] sm:$0xc]
  %v344 = vld [vmem:[#allocation2 + $0x18] sm:$0x30]
  %v346 = vrot.slane %v343, 2
  %v349 = vrot.slane %v344, 2
  %v351 = vsel %vm226, %v346, %v349
  %v352 = vadd.f32 %v351, %v342
  %v353 = vxor.u32 %v352, 2147483648
  %v354 = vmul.f32 %v353, 1.442695
  %v355 = vpow.pop %v354
  %v356 = vadd.f32 %v355, 1.0
  %v357 = vrcp.pop %v356
  %v358 = vmul.f32 1.0, %v357
  %v359 = vtanh.pop %v352
  %v360 = vmul.f32 %v358, %v250
  %362 = vrot.lane.b32.xlu0 %v359, 64
  %v363 = vpop.permute.xlu0 %362
  %v365 = vmul.f32 %v358, %v363
  %367 = vrot.lane.b32.xlu0 %v365, 32
  %v368 = vpop.permute.xlu0 %367
  %v370 = vadd.f32 %v360, %v368
  %v371 = vtanh.pop %v370
  %373 = vrot.lane.b32.xlu0 %v371, 64
  %v374 = vpop.permute.xlu0 %373
  %v376 = vmul.f32 %v358, %v374
  %378 = vrot.lane.b32.xlu0 %v376, 32
  %v379 = vpop.permute.xlu0 %378
  %s381 = scalar_lea.vmem %s6, 2
  %382 = vst.msk [vmem:[%s381] sm:$0x3] %vm261, %v379
  %383 = vrot.lane.b32.xlu0 %v376, 64
  %v384 = vpop.permute.xlu0 %383
  %s386 = scalar_lea.vmem %s6, 12
  %387 = vst.msk [vmem:[%s386 - $0x2] sm:$0xc] %vm267, %v384
  %v388 = vsel %vm45, %v379, 0
  %390 = vmatprep.subr.mxu0 0.0
  %391 = vmatpush1.msra.mxu0 0.0
  %392 = vmatprep.subr.mxu0 0.0
  %393 = vmatpush1.msra.mxu0 0.0
  %394 = vmatprep.subr.mxu0 0.0
  %395 = vmatpush1.msra.mxu0 0.0
  %396 = vmatprep.subr.mxu0 0.0
  %397 = vmatpush1.msra.mxu0 0.0
  %398 = vmatprep.subr.mxu0 0.0
  %399 = vmatpush1.msra.mxu0 0.0
  %400 = vmatprep.subr.mxu0 0.0
  %401 = vmatpush1.msra.mxu0 0.0
  %402 = vmatprep.subr.mxu0 0.0
  %403 = vmatpush1.msra.mxu0 0.0
  %404 = vmatprep.subr.mxu0 0.0
  %405 = vmatpush1.msra.mxu0 0.0
  %406 = vmatprep.subr.mxu0 0.0
  %407 = vmatpush1.msra.mxu0 0.0
  %408 = vmatprep.subr.mxu0 0.0
  %409 = vmatpush1.msra.mxu0 0.0
  %410 = vmatprep.subr.mxu0 0.0
  %411 = vmatpush1.msra.mxu0 0.0
  %412 = vmatprep.subr.mxu0 0.0
  %413 = vmatpush1.msra.mxu0 0.0
  %414 = vmatprep.subr.mxu0 %v140
  %415 = vmatpush1.msra.mxu0 %v139
  %416 = vmatprep.subr.mxu0 %v138
  %417 = vmatpush1.msra.mxu0 %v137
  %418 = vmatprep.subr.mxu0 %v136
  %419 = vmatpush1.msra.mxu0 %v135
  %420 = vmatprep.subr.mxu0 %v134
  %421 = vmatpush1.msra.mxu0 %v133
  %422 = vmatprep.subr.mxu0 0.0
  %423 = vmatpush2.msra.mxu0 0.0
  %424 = vmatprep.subr.mxu0 0.0
  %425 = vmatpush2.msra.mxu0 0.0
  %426 = vmatprep.subr.mxu0 0.0
  %427 = vmatpush2.msra.mxu0 0.0
  %428 = vmatprep.subr.mxu0 0.0
  %429 = vmatpush2.msra.mxu0 0.0
  %430 = vmatprep.subr.mxu0 0.0
  %431 = vmatpush2.msra.mxu0 0.0
  %432 = vmatprep.subr.mxu0 0.0
  %433 = vmatpush2.msra.mxu0 0.0
  %434 = vmatprep.subr.mxu0 0.0
  %435 = vmatpush2.msra.mxu0 0.0
  %436 = vmatprep.subr.mxu0 0.0
  %437 = vmatpush2.msra.mxu0 0.0
  %438 = vmatprep.subr.mxu0 0.0
  %439 = vmatpush2.msra.mxu0 0.0
  %440 = vmatprep.subr.mxu0 0.0
  %441 = vmatpush2.msra.mxu0 0.0
  %442 = vmatprep.subr.mxu0 0.0
  %443 = vmatpush2.msra.mxu0 0.0
  %444 = vmatprep.subr.mxu0 0.0
  %445 = vmatpush2.msra.mxu0 0.0
  %446 = vmatprep.subr.mxu0 0.0
  %447 = vmatpush2.msra.mxu0 0.0
  %448 = vmatprep.subr.mxu0 0.0
  %449 = vmatpush2.msra.mxu0 0.0
  %450 = vmatprep.subr.mxu0 0.0
  %451 = vmatpush2.msra.mxu0 0.0
  %452 = vmatprep.subr.mxu0 0.0
  %453 = vmatpush2.msra.mxu0 0.0
  %454 = vmatprep.mubr.f32.mxu0 0.0
  %455 = vmatmul.mubr.f32.gmra.mxu0 %v388
  %v456 = vpop.f32.mrf.mxu0
  %v457 = vadd.f32 0.0, %v456
  %v458 = vpop.f32.mrf.mxu0
  %v459 = vadd.f32 0.0, %v458
  %460 = vdwg.mxu0
  %v461 = vsel %vm143, %v457, %v459
  %v462 = vld [vmem:[#allocation2] sm:$0x30]
  %v463 = vld [vmem:[#allocation2 + $0x18] sm:$0xc]
  %v465 = vrot.slane %v462, 4
  %v467 = vsel %vm226, %v465, %v463
  %v468 = vadd.f32 %v467, %v461
  %v469 = vxor.u32 %v468, 2147483648
  %v470 = vmul.f32 %v469, 1.442695
  %v471 = vpow.pop %v470
  %v472 = vadd.f32 %v471, 1.0
  %v473 = vrcp.pop %v472
  %v474 = vmul.f32 1.0, %v473
  %v475 = vtanh.pop %v468
  %v476 = vmul.f32 %v474, %v370
  %478 = vrot.lane.b32.xlu0 %v475, 64
  %v479 = vpop.permute.xlu0 %478
  %v481 = vmul.f32 %v474, %v479
  %483 = vrot.lane.b32.xlu0 %v481, 32
  %v484 = vpop.permute.xlu0 %483
  %v486 = vadd.f32 %v476, %v484
  %v487 = vtanh.pop %v486
  %489 = vrot.lane.b32.xlu0 %v487, 64
  %v490 = vpop.permute.xlu0 %489
  %v492 = vmul.f32 %v474, %v490
  %494 = vrot.lane.b32.xlu0 %v492, 32
  %v495 = vpop.permute.xlu0 %494
  %s497 = scalar_lea.vmem %s6, 4
  %498 = vst.msk [vmem:[%s497] sm:$0x3] %vm261, %v495
  %499 = vrot.lane.b32.xlu0 %v492, 64
  %v500 = vpop.permute.xlu0 %499
  %s502 = scalar_lea.vmem %s6, 10
  %503 = vst.msk [vmem:[%s502 - $0x2] sm:$0xc] %vm267, %v500
  %v504 = vsel %vm45, %v495, 0
  %506 = vmatprep.subr.mxu0 0.0
  %507 = vmatpush1.msra.mxu0 0.0
  %508 = vmatprep.subr.mxu0 0.0
  %509 = vmatpush1.msra.mxu0 0.0
  %510 = vmatprep.subr.mxu0 0.0
  %511 = vmatpush1.msra.mxu0 0.0
  %512 = vmatprep.subr.mxu0 0.0
  %513 = vmatpush1.msra.mxu0 0.0
  %514 = vmatprep.subr.mxu0 0.0
  %515 = vmatpush1.msra.mxu0 0.0
  %516 = vmatprep.subr.mxu0 0.0
  %517 = vmatpush1.msra.mxu0 0.0
  %518 = vmatprep.subr.mxu0 0.0
  %519 = vmatpush1.msra.mxu0 0.0
  %520 = vmatprep.subr.mxu0 0.0
  %521 = vmatpush1.msra.mxu0 0.0
  %522 = vmatprep.subr.mxu0 0.0
  %523 = vmatpush1.msra.mxu0 0.0
  %524 = vmatprep.subr.mxu0 0.0
  %525 = vmatpush1.msra.mxu0 0.0
  %526 = vmatprep.subr.mxu0 0.0
  %527 = vmatpush1.msra.mxu0 0.0
  %528 = vmatprep.subr.mxu0 0.0
  %529 = vmatpush1.msra.mxu0 0.0
  %530 = vmatprep.subr.mxu0 %v140
  %531 = vmatpush1.msra.mxu0 %v139
  %532 = vmatprep.subr.mxu0 %v138
  %533 = vmatpush1.msra.mxu0 %v137
  %534 = vmatprep.subr.mxu0 %v136
  %535 = vmatpush1.msra.mxu0 %v135
  %536 = vmatprep.subr.mxu0 %v134
  %537 = vmatpush1.msra.mxu0 %v133
  %538 = vmatprep.subr.mxu0 0.0
  %539 = vmatpush2.msra.mxu0 0.0
  %540 = vmatprep.subr.mxu0 0.0
  %541 = vmatpush2.msra.mxu0 0.0
  %542 = vmatprep.subr.mxu0 0.0
  %543 = vmatpush2.msra.mxu0 0.0
  %544 = vmatprep.subr.mxu0 0.0
  %545 = vmatpush2.msra.mxu0 0.0
  %546 = vmatprep.subr.mxu0 0.0
  %547 = vmatpush2.msra.mxu0 0.0
  %548 = vmatprep.subr.mxu0 0.0
  %549 = vmatpush2.msra.mxu0 0.0
  %550 = vmatprep.subr.mxu0 0.0
  %551 = vmatpush2.msra.mxu0 0.0
  %552 = vmatprep.subr.mxu0 0.0
  %553 = vmatpush2.msra.mxu0 0.0
  %554 = vmatprep.subr.mxu0 0.0
  %555 = vmatpush2.msra.mxu0 0.0
  %556 = vmatprep.subr.mxu0 0.0
  %557 = vmatpush2.msra.mxu0 0.0
  %558 = vmatprep.subr.mxu0 0.0
  %559 = vmatpush2.msra.mxu0 0.0
  %560 = vmatprep.subr.mxu0 0.0
  %561 = vmatpush2.msra.mxu0 0.0
  %562 = vmatprep.subr.mxu0 0.0
  %563 = vmatpush2.msra.mxu0 0.0
  %564 = vmatprep.subr.mxu0 0.0
  %565 = vmatpush2.msra.mxu0 0.0
  %566 = vmatprep.subr.mxu0 0.0
  %567 = vmatpush2.msra.mxu0 0.0
  %568 = vmatprep.subr.mxu0 0.0
  %569 = vmatpush2.msra.mxu0 0.0
  %570 = vmatprep.mubr.f32.mxu0 0.0
  %571 = vmatmul.mubr.f32.gmra.mxu0 %v504
  %v572 = vpop.f32.mrf.mxu0
  %v573 = vadd.f32 0.0, %v572
  %v574 = vpop.f32.mrf.mxu0
  %v575 = vadd.f32 0.0, %v574
  %576 = vdwg.mxu0
  %v577 = vsel %vm143, %v573, %v575
  %v578 = vld [vmem:[#allocation2] sm:$0xc0]
  %v579 = vld [vmem:[#allocation2 + $0x18] sm:$0x3]
  %v581 = vrot.slane %v578, 6
  %v584 = vrot.slane %v579, 6
  %v586 = vsel %vm226, %v581, %v584
  %v587 = vadd.f32 %v586, %v577
  %v588 = vxor.u32 %v587, 2147483648
  %v589 = vmul.f32 %v588, 1.442695
  %v590 = vpow.pop %v589
  %v591 = vadd.f32 %v590, 1.0
  %v592 = vrcp.pop %v591
  %v593 = vmul.f32 1.0, %v592
  %v594 = vtanh.pop %v587
  %v595 = vmul.f32 %v593, %v486
  %597 = vrot.lane.b32.xlu0 %v594, 64
  %v598 = vpop.permute.xlu0 %597
  %v600 = vmul.f32 %v593, %v598
  %602 = vrot.lane.b32.xlu0 %v600, 32
  %v603 = vpop.permute.xlu0 %602
  %v605 = vadd.f32 %v595, %v603
  %v606 = vtanh.pop %v605
  %608 = vrot.lane.b32.xlu0 %v606, 64
  %v609 = vpop.permute.xlu0 %608
  %v611 = vmul.f32 %v593, %v609
  %613 = vrot.lane.b32.xlu0 %v611, 32
  %v614 = vpop.permute.xlu0 %613
  %s616 = scalar_lea.vmem %s6, 6
  %617 = vst.msk [vmem:[%s616] sm:$0x3] %vm261, %v614
  %618 = vrot.lane.b32.xlu0 %v611, 64
  %v619 = vpop.permute.xlu0 %618
  %s621 = scalar_lea.vmem %s6, 8
  %622 = vst.msk [vmem:[%s621 - $0x2] sm:$0xc] %vm267, %v619
  %v623 = vsel %vm45, %v614, 0
  %625 = vmatprep.subr.mxu0 0.0
  %626 = vmatpush1.msra.mxu0 0.0
  %627 = vmatprep.subr.mxu0 0.0
  %628 = vmatpush1.msra.mxu0 0.0
  %629 = vmatprep.subr.mxu0 0.0
  %630 = vmatpush1.msra.mxu0 0.0
  %631 = vmatprep.subr.mxu0 0.0
  %632 = vmatpush1.msra.mxu0 0.0
  %633 = vmatprep.subr.mxu0 0.0
  %634 = vmatpush1.msra.mxu0 0.0
  %635 = vmatprep.subr.mxu0 0.0
  %636 = vmatpush1.msra.mxu0 0.0
  %637 = vmatprep.subr.mxu0 0.0
  %638 = vmatpush1.msra.mxu0 0.0
  %639 = vmatprep.subr.mxu0 0.0
  %640 = vmatpush1.msra.mxu0 0.0
  %641 = vmatprep.subr.mxu0 0.0
  %642 = vmatpush1.msra.mxu0 0.0
  %643 = vmatprep.subr.mxu0 0.0
  %644 = vmatpush1.msra.mxu0 0.0
  %645 = vmatprep.subr.mxu0 0.0
  %646 = vmatpush1.msra.mxu0 0.0
  %647 = vmatprep.subr.mxu0 0.0
  %648 = vmatpush1.msra.mxu0 0.0
  %649 = vmatprep.subr.mxu0 %v140
  %650 = vmatpush1.msra.mxu0 %v139
  %651 = vmatprep.subr.mxu0 %v138
  %652 = vmatpush1.msra.mxu0 %v137
  %653 = vmatprep.subr.mxu0 %v136
  %654 = vmatpush1.msra.mxu0 %v135
  %655 = vmatprep.subr.mxu0 %v134
  %656 = vmatpush1.msra.mxu0 %v133
  %657 = vmatprep.subr.mxu0 0.0
  %658 = vmatpush2.msra.mxu0 0.0
  %659 = vmatprep.subr.mxu0 0.0
  %660 = vmatpush2.msra.mxu0 0.0
  %661 = vmatprep.subr.mxu0 0.0
  %662 = vmatpush2.msra.mxu0 0.0
  %663 = vmatprep.subr.mxu0 0.0
  %664 = vmatpush2.msra.mxu0 0.0
  %665 = vmatprep.subr.mxu0 0.0
  %666 = vmatpush2.msra.mxu0 0.0
  %667 = vmatprep.subr.mxu0 0.0
  %668 = vmatpush2.msra.mxu0 0.0
  %669 = vmatprep.subr.mxu0 0.0
  %670 = vmatpush2.msra.mxu0 0.0
  %671 = vmatprep.subr.mxu0 0.0
  %672 = vmatpush2.msra.mxu0 0.0
  %673 = vmatprep.subr.mxu0 0.0
  %674 = vmatpush2.msra.mxu0 0.0
  %675 = vmatprep.subr.mxu0 0.0
  %676 = vmatpush2.msra.mxu0 0.0
  %677 = vmatprep.subr.mxu0 0.0
  %678 = vmatpush2.msra.mxu0 0.0
  %679 = vmatprep.subr.mxu0 0.0
  %680 = vmatpush2.msra.mxu0 0.0
  %681 = vmatprep.subr.mxu0 0.0
  %682 = vmatpush2.msra.mxu0 0.0
  %683 = vmatprep.subr.mxu0 0.0
  %684 = vmatpush2.msra.mxu0 0.0
  %685 = vmatprep.subr.mxu0 0.0
  %686 = vmatpush2.msra.mxu0 0.0
  %687 = vmatprep.subr.mxu0 0.0
  %688 = vmatpush2.msra.mxu0 0.0
  %689 = vmatprep.mubr.f32.mxu0 0.0
  %690 = vmatmul.mubr.f32.gmra.mxu0 %v623
  %v691 = vpop.f32.mrf.mxu0
  %v692 = vadd.f32 0.0, %v691
  %v693 = vpop.f32.mrf.mxu0
  %v694 = vadd.f32 0.0, %v693
  %695 = vdwg.mxu0
  %v696 = vsel %vm143, %v692, %v694
  %v697 = vld [vmem:[#allocation2 + $0x10] sm:$0x3]
  %v698 = vld [vmem:[#allocation2 + $0x8] sm:$0xc0]
  %v700 = vrot.slane %v698, 4
  %v702 = vsel %vm226, %v697, %v700
  %v703 = vadd.f32 %v702, %v696
  %v704 = vxor.u32 %v703, 2147483648
  %v705 = vmul.f32 %v704, 1.442695
  %v706 = vpow.pop %v705
  %v707 = vadd.f32 %v706, 1.0
  %v708 = vrcp.pop %v707
  %v709 = vmul.f32 1.0, %v708
  %v710 = vtanh.pop %v703
  %v711 = vmul.f32 %v709, %v605
  %713 = vrot.lane.b32.xlu0 %v710, 64
  %v714 = vpop.permute.xlu0 %713
  %v716 = vmul.f32 %v709, %v714
  %718 = vrot.lane.b32.xlu0 %v716, 32
  %v719 = vpop.permute.xlu0 %718
  %v721 = vadd.f32 %v711, %v719
  %v722 = vtanh.pop %v721
  %724 = vrot.lane.b32.xlu0 %v722, 64
  %v725 = vpop.permute.xlu0 %724
  %v727 = vmul.f32 %v709, %v725
  %729 = vrot.lane.b32.xlu0 %v727, 32
  %v730 = vpop.permute.xlu0 %729
  %732 = vst.msk [vmem:[%s621] sm:$0x3] %vm261, %v730
  %733 = vrot.lane.b32.xlu0 %v727, 64
  %v734 = vpop.permute.xlu0 %733
  %736 = vst.msk [vmem:[%s616 - $0x2] sm:$0xc] %vm267, %v734
  %v737 = vsel %vm45, %v730, 0
  %739 = vmatprep.subr.mxu0 0.0
  %740 = vmatpush1.msra.mxu0 0.0
  %741 = vmatprep.subr.mxu0 0.0
  %742 = vmatpush1.msra.mxu0 0.0
  %743 = vmatprep.subr.mxu0 0.0
  %744 = vmatpush1.msra.mxu0 0.0
  %745 = vmatprep.subr.mxu0 0.0
  %746 = vmatpush1.msra.mxu0 0.0
  %747 = vmatprep.subr.mxu0 0.0
  %748 = vmatpush1.msra.mxu0 0.0
  %749 = vmatprep.subr.mxu0 0.0
  %750 = vmatpush1.msra.mxu0 0.0
  %751 = vmatprep.subr.mxu0 0.0
  %752 = vmatpush1.msra.mxu0 0.0
  %753 = vmatprep.subr.mxu0 0.0
  %754 = vmatpush1.msra.mxu0 0.0
  %755 = vmatprep.subr.mxu0 0.0
  %756 = vmatpush1.msra.mxu0 0.0
  %757 = vmatprep.subr.mxu0 0.0
  %758 = vmatpush1.msra.mxu0 0.0
  %759 = vmatprep.subr.mxu0 0.0
  %760 = vmatpush1.msra.mxu0 0.0
  %761 = vmatprep.subr.mxu0 0.0
  %762 = vmatpush1.msra.mxu0 0.0
  %763 = vmatprep.subr.mxu0 %v140
  %764 = vmatpush1.msra.mxu0 %v139
  %765 = vmatprep.subr.mxu0 %v138
  %766 = vmatpush1.msra.mxu0 %v137
  %767 = vmatprep.subr.mxu0 %v136
  %768 = vmatpush1.msra.mxu0 %v135
  %769 = vmatprep.subr.mxu0 %v134
  %770 = vmatpush1.msra.mxu0 %v133
  %771 = vmatprep.subr.mxu0 0.0
  %772 = vmatpush2.msra.mxu0 0.0
  %773 = vmatprep.subr.mxu0 0.0
  %774 = vmatpush2.msra.mxu0 0.0
  %775 = vmatprep.subr.mxu0 0.0
  %776 = vmatpush2.msra.mxu0 0.0
  %777 = vmatprep.subr.mxu0 0.0
  %778 = vmatpush2.msra.mxu0 0.0
  %779 = vmatprep.subr.mxu0 0.0
  %780 = vmatpush2.msra.mxu0 0.0
  %781 = vmatprep.subr.mxu0 0.0
  %782 = vmatpush2.msra.mxu0 0.0
  %783 = vmatprep.subr.mxu0 0.0
  %784 = vmatpush2.msra.mxu0 0.0
  %785 = vmatprep.subr.mxu0 0.0
  %786 = vmatpush2.msra.mxu0 0.0
  %787 = vmatprep.subr.mxu0 0.0
  %788 = vmatpush2.msra.mxu0 0.0
  %789 = vmatprep.subr.mxu0 0.0
  %790 = vmatpush2.msra.mxu0 0.0
  %791 = vmatprep.subr.mxu0 0.0
  %792 = vmatpush2.msra.mxu0 0.0
  %793 = vmatprep.subr.mxu0 0.0
  %794 = vmatpush2.msra.mxu0 0.0
  %795 = vmatprep.subr.mxu0 0.0
  %796 = vmatpush2.msra.mxu0 0.0
  %797 = vmatprep.subr.mxu0 0.0
  %798 = vmatpush2.msra.mxu0 0.0
  %799 = vmatprep.subr.mxu0 0.0
  %800 = vmatpush2.msra.mxu0 0.0
  %801 = vmatprep.subr.mxu0 0.0
  %802 = vmatpush2.msra.mxu0 0.0
  %803 = vmatprep.mubr.f32.mxu0 0.0
  %804 = vmatmul.mubr.f32.gmra.mxu0 %v737
  %v805 = vpop.f32.mrf.mxu0
  %v806 = vadd.f32 0.0, %v805
  %v807 = vpop.f32.mrf.mxu0
  %v808 = vadd.f32 0.0, %v807
  %809 = vdwg.mxu0
  %v810 = vsel %vm143, %v806, %v808
  %v811 = vld [vmem:[#allocation2 + $0x10] sm:$0xc]
  %v812 = vld [vmem:[#allocation2 + $0x8] sm:$0x30]
  %v814 = vrot.slane %v811, 2
  %v817 = vrot.slane %v812, 2
  %v819 = vsel %vm226, %v814, %v817
  %v820 = vadd.f32 %v819, %v810
  %v821 = vxor.u32 %v820, 2147483648
  %v822 = vmul.f32 %v821, 1.442695
  %v823 = vpow.pop %v822
  %v824 = vadd.f32 %v823, 1.0
  %v825 = vrcp.pop %v824
  %v826 = vmul.f32 1.0, %v825
  %v827 = vtanh.pop %v820
  %v828 = vmul.f32 %v826, %v721
  %830 = vrot.lane.b32.xlu0 %v827, 64
  %v831 = vpop.permute.xlu0 %830
  %v833 = vmul.f32 %v826, %v831
  %835 = vrot.lane.b32.xlu0 %v833, 32
  %v836 = vpop.permute.xlu0 %835
  %v838 = vadd.f32 %v828, %v836
  %v839 = vtanh.pop %v838
  %841 = vrot.lane.b32.xlu0 %v839, 64
  %v842 = vpop.permute.xlu0 %841
  %v844 = vmul.f32 %v826, %v842
  %846 = vrot.lane.b32.xlu0 %v844, 32
  %v847 = vpop.permute.xlu0 %846
  %849 = vst.msk [vmem:[%s502] sm:$0x3] %vm261, %v847
  %850 = vrot.lane.b32.xlu0 %v844, 64
  %v851 = vpop.permute.xlu0 %850
  %853 = vst.msk [vmem:[%s497 - $0x2] sm:$0xc] %vm267, %v851
  %v854 = vsel %vm45, %v847, 0
  %856 = vmatprep.subr.mxu0 0.0
  %857 = vmatpush1.msra.mxu0 0.0
  %858 = vmatprep.subr.mxu0 0.0
  %859 = vmatpush1.msra.mxu0 0.0
  %860 = vmatprep.subr.mxu0 0.0
  %861 = vmatpush1.msra.mxu0 0.0
  %862 = vmatprep.subr.mxu0 0.0
  %863 = vmatpush1.msra.mxu0 0.0
  %864 = vmatprep.subr.mxu0 0.0
  %865 = vmatpush1.msra.mxu0 0.0
  %866 = vmatprep.subr.mxu0 0.0
  %867 = vmatpush1.msra.mxu0 0.0
  %868 = vmatprep.subr.mxu0 0.0
  %869 = vmatpush1.msra.mxu0 0.0
  %870 = vmatprep.subr.mxu0 0.0
  %871 = vmatpush1.msra.mxu0 0.0
  %872 = vmatprep.subr.mxu0 0.0
  %873 = vmatpush1.msra.mxu0 0.0
  %874 = vmatprep.subr.mxu0 0.0
  %875 = vmatpush1.msra.mxu0 0.0
  %876 = vmatprep.subr.mxu0 0.0
  %877 = vmatpush1.msra.mxu0 0.0
  %878 = vmatprep.subr.mxu0 0.0
  %879 = vmatpush1.msra.mxu0 0.0
  %880 = vmatprep.subr.mxu0 %v140
  %881 = vmatpush1.msra.mxu0 %v139
  %882 = vmatprep.subr.mxu0 %v138
  %883 = vmatpush1.msra.mxu0 %v137
  %884 = vmatprep.subr.mxu0 %v136
  %885 = vmatpush1.msra.mxu0 %v135
  %886 = vmatprep.subr.mxu0 %v134
  %887 = vmatpush1.msra.mxu0 %v133
  %888 = vmatprep.subr.mxu0 0.0
  %889 = vmatpush2.msra.mxu0 0.0
  %890 = vmatprep.subr.mxu0 0.0
  %891 = vmatpush2.msra.mxu0 0.0
  %892 = vmatprep.subr.mxu0 0.0
  %893 = vmatpush2.msra.mxu0 0.0
  %894 = vmatprep.subr.mxu0 0.0
  %895 = vmatpush2.msra.mxu0 0.0
  %896 = vmatprep.subr.mxu0 0.0
  %897 = vmatpush2.msra.mxu0 0.0
  %898 = vmatprep.subr.mxu0 0.0
  %899 = vmatpush2.msra.mxu0 0.0
  %900 = vmatprep.subr.mxu0 0.0
  %901 = vmatpush2.msra.mxu0 0.0
  %902 = vmatprep.subr.mxu0 0.0
  %903 = vmatpush2.msra.mxu0 0.0
  %904 = vmatprep.subr.mxu0 0.0
  %905 = vmatpush2.msra.mxu0 0.0
  %906 = vmatprep.subr.mxu0 0.0
  %907 = vmatpush2.msra.mxu0 0.0
  %908 = vmatprep.subr.mxu0 0.0
  %909 = vmatpush2.msra.mxu0 0.0
  %910 = vmatprep.subr.mxu0 0.0
  %911 = vmatpush2.msra.mxu0 0.0
  %912 = vmatprep.subr.mxu0 0.0
  %913 = vmatpush2.msra.mxu0 0.0
  %914 = vmatprep.subr.mxu0 0.0
  %915 = vmatpush2.msra.mxu0 0.0
  %916 = vmatprep.subr.mxu0 0.0
  %917 = vmatpush2.msra.mxu0 0.0
  %918 = vmatprep.subr.mxu0 0.0
  %919 = vmatpush2.msra.mxu0 0.0
  %920 = vmatprep.mubr.f32.mxu0 0.0
  %921 = vmatmul.mubr.f32.gmra.mxu0 %v854
  %v922 = vpop.f32.mrf.mxu0
  %v923 = vadd.f32 0.0, %v922
  %v924 = vpop.f32.mrf.mxu0
  %v925 = vadd.f32 0.0, %v924
  %926 = vdwg.mxu0
  %v927 = vsel %vm143, %v923, %v925
  %v928 = vld [vmem:[#allocation2 + $0x10] sm:$0x30]
  %v929 = vld [vmem:[#allocation2 + $0x8] sm:$0xc]
  %v931 = vrot.slane %v928, 4
  %v933 = vsel %vm226, %v931, %v929
  %v934 = vadd.f32 %v933, %v927
  %v935 = vxor.u32 %v934, 2147483648
  %v936 = vmul.f32 %v935, 1.442695
  %v937 = vpow.pop %v936
  %v938 = vadd.f32 %v937, 1.0
  %v939 = vrcp.pop %v938
  %v940 = vmul.f32 1.0, %v939
  %v941 = vtanh.pop %v934
  %v942 = vmul.f32 %v940, %v838
  %944 = vrot.lane.b32.xlu0 %v941, 64
  %v945 = vpop.permute.xlu0 %944
  %v947 = vmul.f32 %v940, %v945
  %949 = vrot.lane.b32.xlu0 %v947, 32
  %v950 = vpop.permute.xlu0 %949
  %v952 = vadd.f32 %v942, %v950
  %v953 = vtanh.pop %v952
  %955 = vrot.lane.b32.xlu0 %v953, 64
  %v956 = vpop.permute.xlu0 %955
  %v958 = vmul.f32 %v940, %v956
  %960 = vrot.lane.b32.xlu0 %v958, 32
  %v961 = vpop.permute.xlu0 %960
  %963 = vst.msk [vmem:[%s386] sm:$0x3] %vm261, %v961
  %964 = vrot.lane.b32.xlu0 %v958, 64
  %v965 = vpop.permute.xlu0 %964
  %967 = vst.msk [vmem:[%s381 - $0x2] sm:$0xc] %vm267, %v965
  %v968 = vsel %vm45, %v961, 0
  %970 = vmatprep.subr.mxu0 0.0
  %971 = vmatpush1.msra.mxu0 0.0
  %972 = vmatprep.subr.mxu0 0.0
  %973 = vmatpush1.msra.mxu0 0.0
  %974 = vmatprep.subr.mxu0 0.0
  %975 = vmatpush1.msra.mxu0 0.0
  %976 = vmatprep.subr.mxu0 0.0
  %977 = vmatpush1.msra.mxu0 0.0
  %978 = vmatprep.subr.mxu0 0.0
  %979 = vmatpush1.msra.mxu0 0.0
  %980 = vmatprep.subr.mxu0 0.0
  %981 = vmatpush1.msra.mxu0 0.0
  %982 = vmatprep.subr.mxu0 0.0
  %983 = vmatpush1.msra.mxu0 0.0
  %984 = vmatprep.subr.mxu0 0.0
  %985 = vmatpush1.msra.mxu0 0.0
  %986 = vmatprep.subr.mxu0 0.0
  %987 = vmatpush1.msra.mxu0 0.0
  %988 = vmatprep.subr.mxu0 0.0
  %989 = vmatpush1.msra.mxu0 0.0
  %990 = vmatprep.subr.mxu0 0.0
  %991 = vmatpush1.msra.mxu0 0.0
  %992 = vmatprep.subr.mxu0 0.0
  %993 = vmatpush1.msra.mxu0 0.0
  %994 = vmatprep.subr.mxu0 %v140
  %995 = vmatpush1.msra.mxu0 %v139
  %996 = vmatprep.subr.mxu0 %v138
  %997 = vmatpush1.msra.mxu0 %v137
  %998 = vmatprep.subr.mxu0 %v136
  %999 = vmatpush1.msra.mxu0 %v135
  %1000 = vmatprep.subr.mxu0 %v134
  %1001 = vmatpush1.msra.mxu0 %v133
  %1002 = vmatprep.subr.mxu0 0.0
  %1003 = vmatpush2.msra.mxu0 0.0
  %1004 = vmatprep.subr.mxu0 0.0
  %1005 = vmatpush2.msra.mxu0 0.0
  %1006 = vmatprep.subr.mxu0 0.0
  %1007 = vmatpush2.msra.mxu0 0.0
  %1008 = vmatprep.subr.mxu0 0.0
  %1009 = vmatpush2.msra.mxu0 0.0
  %1010 = vmatprep.subr.mxu0 0.0
  %1011 = vmatpush2.msra.mxu0 0.0
  %1012 = vmatprep.subr.mxu0 0.0
  %1013 = vmatpush2.msra.mxu0 0.0
  %1014 = vmatprep.subr.mxu0 0.0
  %1015 = vmatpush2.msra.mxu0 0.0
  %1016 = vmatprep.subr.mxu0 0.0
  %1017 = vmatpush2.msra.mxu0 0.0
  %1018 = vmatprep.subr.mxu0 0.0
  %1019 = vmatpush2.msra.mxu0 0.0
  %1020 = vmatprep.subr.mxu0 0.0
  %1021 = vmatpush2.msra.mxu0 0.0
  %1022 = vmatprep.subr.mxu0 0.0
  %1023 = vmatpush2.msra.mxu0 0.0
  %1024 = vmatprep.subr.mxu0 0.0
  %1025 = vmatpush2.msra.mxu0 0.0
  %1026 = vmatprep.subr.mxu0 0.0
  %1027 = vmatpush2.msra.mxu0 0.0
  %1028 = vmatprep.subr.mxu0 0.0
  %1029 = vmatpush2.msra.mxu0 0.0
  %1030 = vmatprep.subr.mxu0 0.0
  %1031 = vmatpush2.msra.mxu0 0.0
  %1032 = vmatprep.subr.mxu0 0.0
  %1033 = vmatpush2.msra.mxu0 0.0
  %1034 = vmatprep.mubr.f32.mxu0 0.0
  %1035 = vmatmul.mubr.f32.gmra.mxu0 %v968
  %v1036 = vpop.f32.mrf.mxu0
  %v1037 = vadd.f32 0.0, %v1036
  %v1038 = vpop.f32.mrf.mxu0
  %v1039 = vadd.f32 0.0, %v1038
  %1040 = vdwg.mxu0
  %v1041 = vsel %vm143, %v1037, %v1039
  %v1042 = vld [vmem:[#allocation2 + $0x10] sm:$0xc0]
  %v1043 = vld [vmem:[#allocation2 + $0x8] sm:$0x3]
  %v1045 = vrot.slane %v1042, 6
  %v1048 = vrot.slane %v1043, 6
  %v1050 = vsel %vm226, %v1045, %v1048
  %v1051 = vadd.f32 %v1050, %v1041
  %v1052 = vxor.u32 %v1051, 2147483648
  %v1053 = vmul.f32 %v1052, 1.442695
  %v1054 = vpow.pop %v1053
  %v1055 = vadd.f32 %v1054, 1.0
  %v1056 = vrcp.pop %v1055
  %v1057 = vmul.f32 1.0, %v1056
  %v1058 = vtanh.pop %v1051
  %v1059 = vmul.f32 %v1057, %v952
  %1061 = vrot.lane.b32.xlu0 %v1058, 64
  %v1062 = vpop.permute.xlu0 %1061
  %v1064 = vmul.f32 %v1057, %v1062
  %1066 = vrot.lane.b32.xlu0 %v1064, 32
  %v1067 = vpop.permute.xlu0 %1066
  %v1069 = vadd.f32 %v1059, %v1067
  %v1070 = vtanh.pop %v1069
  %1072 = vrot.lane.b32.xlu0 %v1070, 64
  %v1073 = vpop.permute.xlu0 %1072
  %v1075 = vmul.f32 %v1057, %v1073
  %1077 = vrot.lane.b32.xlu0 %v1075, 32
  %v1078 = vpop.permute.xlu0 %1077
  %1080 = vst.msk [vmem:[%s266] sm:$0x3] %vm261, %v1078
  %1081 = vrot.lane.b32.xlu0 %v1075, 64
  %v1082 = vpop.permute.xlu0 %1081
  %1084 = vst.msk [vmem:[%s6 - $0x2] sm:$0xc] %vm267, %v1082
  // Predicated region
  $region26: #{bilstm_forward.2} parent=0 // pred_check
    _
  $region27: #{bilstm_forward.2} parent=0 // pred_check_branch
    %1086 = sbr.rel (0) target = $region29
  $region28: #{bilstm_forward.2} parent=0 // pred_region
    _
  $region29: #{bilstm_forward.2} parent=0 // pred_fallthru
    _
  // Predicated region
  $region30: #{bilstm_forward.2} parent=0 // pred_check
    _
  $region31: #{bilstm_forward.2} parent=0 // pred_check_branch
    %1088 = sbr.rel (0) target = $region33
  $region32: #{bilstm_forward.2} parent=0 // pred_region
    _
  $region33: #{bilstm_forward.2} parent=0 // pred_fallthru
    _

// kernel: bilstm_forward.3
$region0: #{bilstm_forward.3}
  #allocation0 [shape = 'u32[]', space=smem, size = 0x4, offset = 0x4, fixed_abs, tag = 'smem constant byte address 0x4 - core index']
  #allocation1 [shape = 'u32[144,128]{1,0:T(1,128)}', space=vmem, size = 0x12000, scoped, tag = 'internal scratch']
  #allocation2 [shape = 'f32[16,256]{1,0:T(8,128)}', space=vmem, size = 0x4000, scoped, tag = 'scratch operand']
  %s0 = inlined_call_operand.vmem [shape: f32[16,64], index: 0, kind: input, shape index: {}]
  %s1 = inlined_call_operand.vmem [shape: f32[64,256], index: 1, kind: input, shape index: {}]
  %s2 = inlined_call_operand.vmem [shape: f32[32,256], index: 2, kind: input, shape index: {}]
  %s3 = inlined_call_operand.vmem [shape: f32[1,256], index: 3, kind: input, shape index: {}]
  %s4 = inlined_call_operand.vmem [shape: f32[4,32], index: 4, kind: input, shape index: {}]
  %s5 = inlined_call_operand.vmem [shape: f32[4,32], index: 5, kind: input, shape index: {}]
  %s6 = inlined_call_operand.vmem [shape: f32[8,2,64], index: 6, kind: output, shape index: {}]
  %s7 = sld [smem:[#allocation0]]
  $region34: #{bilstm_forward.3} parent=0
    _
  %s9 = ssub.s32 1, %s7
  %s10 = scalar_select 0, %s9, %s7
  // Predicated region
  $region2: #{bilstm_forward.3} parent=0 // pred_check
    _
  $region3: #{bilstm_forward.3} parent=0 // pred_check_branch
    %12 = sbr.rel (0) target = $region5
  $region4: #{bilstm_forward.3} parent=0 // pred_region
    _
  $region5: #{bilstm_forward.3} parent=0 // pred_fallthru
    _
  // Predicated region
  $region6: #{bilstm_forward.3} parent=0 // pred_check
    _
  $region7: #{bilstm_forward.3} parent=0 // pred_check_branch
    %14 = sbr.rel (0) target = $region9
  $region8: #{bilstm_forward.3} parent=0 // pred_region
    _
  $region9: #{bilstm_forward.3} parent=0 // pred_fallthru
    _
  // Predicated region
  $region10: #{bilstm_forward.3} parent=0 // pred_check
    _
  $region11: #{bilstm_forward.3} parent=0 // pred_check_branch
    %16 = sbr.rel (0) target = $region13
  $region12: #{bilstm_forward.3} parent=0 // pred_region
    _
  $region13: #{bilstm_forward.3} parent=0 // pred_fallthru
    _
  // Predicated region
  $region14: #{bilstm_forward.3} parent=0 // pred_check
    _
  $region15: #{bilstm_forward.3} parent=0 // pred_check_branch
    %18 = sbr.rel (0) target = $region17
  $region16: #{bilstm_forward.3} parent=0 // pred_region
    _
  $region17: #{bilstm_forward.3} parent=0 // pred_fallthru
    _
  // Predicated region
  $region18: #{bilstm_forward.3} parent=0 // pred_check
    _
  $region19: #{bilstm_forward.3} parent=0 // pred_check_branch
    %20 = sbr.rel (0) target = $region21
  $region20: #{bilstm_forward.3} parent=0 // pred_region
    _
  $region21: #{bilstm_forward.3} parent=0 // pred_fallthru
    _
  // Predicated region
  $region22: #{bilstm_forward.3} parent=0 // pred_check
    _
  $region23: #{bilstm_forward.3} parent=0 // pred_check_branch
    %22 = sbr.rel (0) target = $region25
  $region24: #{bilstm_forward.3} parent=0 // pred_region
    _
  $region25: #{bilstm_forward.3} parent=0 // pred_fallthru
    _
  %v23 = vld [vmem:[%s0] sm:$0xff]
  %v24 = vld [vmem:[%s0 + $0x8] sm:$0xff]
  %v25 = vld [vmem:[%s1] sm:$0xff]
  %v26 = vld [vmem:[%s1 + $0x8] sm:$0xff]
  %v27 = vld [vmem:[%s1 + $0x10] sm:$0xff]
  %v28 = vld [vmem:[%s1 + $0x18] sm:$0xff]
  %v29 = vld [vmem:[%s1 + $0x20] sm:$0xff]
  %v30 = vld [vmem:[%s1 + $0x28] sm:$0xff]
  %v31 = vld [vmem:[%s1 + $0x30] sm:$0xff]
  %v32 = vld [vmem:[%s1 + $0x38] sm:$0xff]
  %v33 = vld [vmem:[%s1 + $0x40] sm:$0xff]
  %v34 = vld [vmem:[%s1 + $0x48] sm:$0xff]
  %v35 = vld [vmem:[%s1 + $0x50] sm:$0xff]
  %v36 = vld [vmem:[%s1 + $0x58] sm:$0xff]
  %v37 = vld [vmem:[%s1 + $0x60] sm:$0xff]
  %v38 = vld [vmem:[%s1 + $0x68] sm:$0xff]
  %v39 = vld [vmem:[%s1 + $0x70] sm:$0xff]
  %v40 = vld [vmem:[%s1 + $0x78] sm:$0xff]
  %v41 = vld [vmem:[%s3] sm:$0x3]
  %v43 = vlaneseq
  %v44 = vshrl.u32 %v43, 7
  %v45 = vsub.s32 0, %v44
  %v46 = vrot.slane %v41, %v45
  %v47 = vlaneseq
  %v48 = vshrl.u32 %v47, 7
  %v49 = vsub.s32 1, %v48
  %v50 = vrot.slane %v41, %v49
  %vm53 = vcmask 523264
  %v55 = vsel %vm53, %v23, 0
  %v58 = vsel %vm53, %v24, 0
  %60 = vmatprep.subr.mxu0 0.0
  %61 = vmatpush1.msra.mxu0 0.0
  %62 = vmatprep.subr.mxu0 0.0
  %63 = vmatpush1.msra.mxu0 0.0
  %64 = vmatprep.subr.mxu0 0.0
  %65 = vmatpush1.msra.mxu0 0.0
  %66 = vmatprep.subr.mxu0 0.0
  %67 = vmatpush1.msra.mxu0 0.0
  %68 = vmatprep.subr.mxu0 0.0
  %69 = vmatpush1.msra.mxu0 0.0
  %70 = vmatprep.subr.mxu0 0.0
  %71 = vmatpush1.msra.mxu0 0.0
  %72 = vmatprep.subr.mxu0 0.0
  %73 = vmatpush1.msra.mxu0 0.0
  %74 = vmatprep.subr.mxu0 0.0
  %75 = vmatpush1.msra.mxu0 0.0
  %76 = vmatprep.subr.mxu0 %v40
  %77 = vmatpush1.msra.mxu0 %v39
  %78 = vmatprep.subr.mxu0 %v38
  %79 = vmatpush1.msra.mxu0 %v37
  %80 = vmatprep.subr.mxu0 %v36
  %81 = vmatpush1.msra.mxu0 %v35
  %82 = vmatprep.subr.mxu0 %v34
  %83 = vmatpush1.msra.mxu0 %v33
  %84 = vmatprep.subr.mxu0 %v32
  %85 = vmatpush1.msra.mxu0 %v31
  %86 = vmatprep.subr.mxu0 %v30
  %87 = vmatpush1.msra.mxu0 %v29
  %88 = vmatprep.subr.mxu0 %v28
  %89 = vmatpush1.msra.mxu0 %v27
  %90 = vmatprep.subr.mxu0 %v26
  %91 = vmatpush1.msra.mxu0 %v25
  %92 = vmatprep.subr.mxu0 0.0
  %93 = vmatpush2.msra.mxu0 0.0
  %94 = vmatprep.subr.mxu0 0.0
  %95 = vmatpush2.msra.mxu0 0.0
  %96 = vmatprep.subr.mxu0 0.0
  %97 = vmatpush2.msra.mxu0 0.0
  %98 = vmatprep.subr.mxu0 0.0
  %99 = vmatpush2.msra.mxu0 0.0
  %100 = vmatprep.subr.mxu0 0.0
  %101 = vmatpush2.msra.mxu0 0.0
  %102 = vmatprep.subr.mxu0 0.0
  %103 = vmatpush2.msra.mxu0 0.0
  %104 = vmatprep.subr.mxu0 0.0
  %105 = vmatpush2.msra.mxu0 0.0
  %106 = vmatprep.subr.mxu0 0.0
  %107 = vmatpush2.msra.mxu0 0.0
  %108 = vmatprep.subr.mxu0 0.0
  %109 = vmatpush2.msra.mxu0 0.0
  %110 = vmatprep.subr.mxu0 0.0
  %111 = vmatpush2.msra.mxu0 0.0
  %112 = vmatprep.subr.mxu0 0.0
  %113 = vmatpush2.msra.mxu0 0.0
  %114 = vmatprep.subr.mxu0 0.0
  %115 = vmatpush2.msra.mxu0 0.0
  %116 = vmatprep.subr.mxu0 0.0
  %117 = vmatpush2.msra.mxu0 0.0
  %118 = vmatprep.subr.mxu0 0.0
  %119 = vmatpush2.msra.mxu0 0.0
  %120 = vmatprep.subr.mxu0 0.0
  %121 = vmatpush2.msra.mxu0 0.0
  %122 = vmatprep.subr.mxu0 0.0
  %123 = vmatpush2.msra.mxu0 0.0
  %124 = vmatprep.mubr.f32.mxu0 0.0
  %125 = vmatmul.mubr.f32.gmra.mxu0 %v55
  %v126 = vpop.f32.mrf.mxu0
  %v127 = vadd.f32 %v46, %v126
  %v128 = vpop.f32.mrf.mxu0
  %v129 = vadd.f32 %v50, %v128
  %130 = vmatprep.mubr.f32.mxu0 0.0
  %131 = vmatmul.mubr.f32.gmra.mxu0 %v58
  %v132 = vpop.f32.mrf.mxu0
  %v133 = vadd.f32 %v46, %v132
  %v134 = vpop.f32.mrf.mxu0
  %v135 = vadd.f32 %v50, %v134
  %136 = vdwg.mxu0
  %137 = vst [vmem:[#allocation2] sm:$0xff] %v127
  %138 = vst [vmem:[#allocation2 + $0x8] sm:$0xff] %v129
  %139 = vst [vmem:[#allocation2 + $0x10] sm:$0xff] %v133
  %140 = vst [vmem:[#allocation2 + $0x18] sm:$0xff] %v135
  %v141 = vld [vmem:[%s2] sm:$0xff]
  %v142 = vld [vmem:[%s2 + $0x8] sm:$0xff]
  %v143 = vld [vmem:[%s2 + $0x10] sm:$0xff]
  %v144 = vld [vmem:[%s2 + $0x18] sm:$0xff]
  %v145 = vld [vmem:[%s2 + $0x20] sm:$0xff]
  %v146 = vld [vmem:[%s2 + $0x28] sm:$0xff]
  %v147 = vld [vmem:[%s2 + $0x30] sm:$0xff]
  %v148 = vld [vmem:[%s2 + $0x38] sm:$0xff]
  %v149 = vlaneseq
  %v150 = vshrl.u32 %v149, 7
  %vm151 = vcmp.lt.s32.totalorder %v150, 2
  %v152 = vld [vmem:[%s4] sm:$0xf]
  %v153 = vld [vmem:[%s5] sm:$0xf]
  %vm154 = vcmask 261120
  %v156 = vsel %vm154, %v152, 0
  %158 = vmatprep.subr.mxu0 0.0
  %159 = vmatpush1.msra.mxu0 0.0
  %160 = vmatprep.subr.mxu0 0.0
  %161 = vmatpush1.msra.mxu0 0.0
  %162 = vmatprep.subr.mxu0 0.0
  %163 = vmatpush1.msra.mxu0 0.0
  %164 = vmatprep.subr.mxu0 0.0
  %165 = vmatpush1.msra.mxu0 0.0
  %166 = vmatprep.subr.mxu0 0.0
  %167 = vmatpush1.msra.mxu0 0.0
  %168 = vmatprep.subr.mxu0 0.0
  %169 = vmatpush1.msra.mxu0 0.0
  %170 = vmatprep.subr.mxu0 0.0
  %171 = vmatpush1.msra.mxu0 0.0
  %172 = vmatprep.subr.mxu0 0.0
  %173 = vmatpush1.msra.mxu0 0.0
  %174 = vmatprep.subr.mxu0 0.0
  %175 = vmatpush1.msra.mxu0 0.0
  %176 = vmatprep.subr.mxu0 0.0
  %177 = vmatpush1.msra.mxu0 0.0
  %178 = vmatprep.subr.mxu0 0.0
  %179 = vmatpush1.msra.mxu0 0.0
  %180 = vmatprep.subr.mxu0 0.0
  %181 = vmatpush1.msra.mxu0 0.0
  %182 = vmatprep.subr.mxu0 %v148
  %183 = vmatpush1.msra.mxu0 %v147
  %184 = vmatprep.subr.mxu0 %v146
  %185 = vmatpush1.msra.mxu0 %v145
  %186 = vmatprep.subr.mxu0 %v144
  %187 = vmatpush1.msra.mxu0 %v143
  %188 = vmatprep.subr.mxu0 %v142
  %189 = vmatpush1.msra.mxu0 %v141
  %190 = vmatprep.subr.mxu0 0.0
  %191 = vmatpush2.msra.mxu0 0.0
  %192 = vmatprep.subr.mxu0 0.0
  %193 = vmatpush2.msra.mxu0 0.0
  %194 = vmatprep.subr.mxu0 0.0
  %195 = vmatpush2.msra.mxu0 0.0
  %196 = vmatprep.subr.mxu0 0.0
  %197 = vmatpush2.msra.mxu0 0.0
  %198 = vmatprep.subr.mxu0 0.0
  %199 = vmatpush2.msra.mxu0 0.0
  %200 = vmatprep.subr.mxu0 0.0
  %201 = vmatpush2.msra.mxu0 0.0
  %202 = vmatprep.subr.mxu0 0.0
  %203 = vmatpush2.msra.mxu0 0.0
  %204 = vmatprep.subr.mxu0 0.0
  %205 = vmatpush2.msra.mxu0 0.0
  %206 = vmatprep.subr.mxu0 0.0
  %207 = vmatpush2.msra.mxu0 0.0
  %208 = vmatprep.subr.mxu0 0.0
  %209 = vmatpush2.msra.mxu0 0.0
  %210 = vmatprep.subr.mxu0 0.0
  %211 = vmatpush2.msra.mxu0 0.0
  %212 = vmatprep.subr.mxu0 0.0
  %213 = vmatpush2.msra.mxu0 0.0
  %214 = vmatprep.subr.mxu0 0.0
  %215 = vmatpush2.msra.mxu0 0.0
  %216 = vmatprep.subr.mxu0 0.0
  %217 = vmatpush2.msra.mxu0 0.0
  %218 = vmatprep.subr.mxu0 0.0
  %219 = vmatpush2.msra.mxu0 0.0
  %220 = vmatprep.subr.mxu0 0.0
  %221 = vmatpush2.msra.mxu0 0.0
  %222 = vmatprep.mubr.f32.mxu0 0.0
  %223 = vmatmul.mubr.f32.gmra.mxu0 %v156
  %v224 = vpop.f32.mrf.mxu0
  %v225 = vadd.f32 0.0, %v224
  %v226 = vpop.f32.mrf.mxu0
  %v227 = vadd.f32 0.0, %v226
  %228 = vdwg.mxu0
  %v229 = vsel %vm151, %v225, %v227
  %v230 = vld [vmem:[#allocation2] sm:$0x3]
  %v231 = vld [vmem:[#allocation2 + $0x18] sm:$0xc0]
  %v233 = vrot.slane %v231, 4
  %vm235 = vcmask 1041408
  %v236 = vsel %vm235, %v230, %v233
  %v237 = vadd.f32 %v236, %v229
  %v238 = vxor.u32 %v237, 2147483648
  %v239 = vmul.f32 %v238, 1.442695
  %v240 = vpow.pop %v239
  %v241 = vadd.f32 %v240, 1.0
  %v242 = vrcp.pop %v241
  %v243 = vmul.f32 1.0, %v242
  %v244 = vtanh.pop %v237
  %246 = vrot.lane.b32.xlu0 %v153, 32
  %v247 = vpop.permute.xlu0 %246
  %v249 = vmul.f32 %v243, %v247
  %251 = vrot.lane.b32.xlu0 %v244, 64
  %v252 = vpop.permute.xlu0 %251
  %v254 = vmul.f32 %v243, %v252
  %256 = vrot.lane.b32.xlu0 %v254, 32
  %v257 = vpop.permute.xlu0 %256
  %v259 = vadd.f32 %v249, %v257
  %v260 = vtanh.pop %v259
  %262 = vrot.lane.b32.xlu0 %v260, 64
  %v263 = vpop.permute.xlu0 %262
  %v265 = vmul.f32 %v243, %v263
  %267 = vrot.lane.b32.xlu0 %v265, 32
  %v268 = vpop.permute.xlu0 %267
  %vm270 = vcmask 254976
  %271 = vst.msk [vmem:[%s6] sm:$0x3] %vm270, %v268
  %272 = vrot.lane.b32.xlu0 %v265, 64
  %v273 = vpop.permute.xlu0 %272
  %s275 = scalar_lea.vmem %s6, 14
  %vm276 = vcmask 519426
  %277 = vst.msk [vmem:[%s275 - $0x2] sm:$0xc] %vm276, %v273
  %v278 = vsel %vm154, %v268, 0
  %280 = vmatprep.subr.mxu0 0.0
  %281 = vmatpush1.msra.mxu0 0.0
  %282 = vmatprep.subr.mxu0 0.0
  %283 = vmatpush1.msra.mxu0 0.0
  %284 = vmatprep.subr.mxu0 0.0
  %285 = vmatpush1.msra.mxu0 0.0
  %286 = vmatprep.subr.mxu0 0.0
  %287 = vmatpush1.msra.mxu0 0.0
  %288 = vmatprep.subr.mxu0 0.0
  %289 = vmatpush1.msra.mxu0 0.0
  %290 = vmatprep.subr.mxu0 0.0
  %291 = vmatpush1.msra.mxu0 0.0
  %292 = vmatprep.subr.mxu0 0.0
  %293 = vmatpush1.msra.mxu0 0.0
  %294 = vmatprep.subr.mxu0 0.0
  %295 = vmatpush1.msra.mxu0 0.0
  %296 = vmatprep.subr.mxu0 0.0
  %297 = vmatpush1.msra.mxu0 0.0
  %298 = vmatprep.subr.mxu0 0.0
  %299 = vmatpush1.msra.mxu0 0.0
  %300 = vmatprep.subr.mxu0 0.0
  %301 = vmatpush1.msra.mxu0 0.0
  %302 = vmatprep.subr.mxu0 0.0
  %303 = vmatpush1.msra.mxu0 0.0
  %304 = vmatprep.subr.mxu0 %v148
  %305 = vmatpush1.msra.mxu0 %v147
  %306 = vmatprep.subr.mxu0 %v146
  %307 = vmatpush1.msra.mxu0 %v145
  %308 = vmatprep.subr.mxu0 %v144
  %309 = vmatpush1.msra.mxu0 %v143
  %310 = vmatprep.subr.mxu0 %v142
  %311 = vmatpush1.msra.mxu0 %v141
  %312 = vmatprep.subr.mxu0 0.0
  %313 = vmatpush2.msra.mxu0 0.0
  %314 = vmatprep.subr.mxu0 0.0
  %315 = vmatpush2.msra.mxu0 0.0
  %316 = vmatprep.subr.mxu0 0.0
  %317 = vmatpush2.msra.mxu0 0.0
  %318 = vmatprep.subr.mxu0 0.0
  %319 = vmatpush2.msra.mxu0 0.0
  %320 = vmatprep.subr.mxu0 0.0
  %321 = vmatpush2.msra.mxu0 0.0
  %322 = vmatprep.subr.mxu0 0.0
  %323 = vmatpush2.msra.mxu0 0.0
  %324 = vmatprep.subr.mxu0 0.0
  %325 = vmatpush2.msra.mxu0 0.0
  %326 = vmatprep.subr.mxu0 0.0
  %327 = vmatpush2.msra.mxu0 0.0
  %328 = vmatprep.subr.mxu0 0.0
  %329 = vmatpush2.msra.mxu0 0.0
  %330 = vmatprep.subr.mxu0 0.0
  %331 = vmatpush2.msra.mxu0 0.0
  %332 = vmatprep.subr.mxu0 0.0
  %333 = vmatpush2.msra.mxu0 0.0
  %334 = vmatprep.subr.mxu0 0.0
  %335 = vmatpush2.msra.mxu0 0.0
  %336 = vmatprep.subr.mxu0 0.0
  %337 = vmatpush2.msra.mxu0 0.0
  %338 = vmatprep.subr.mxu0 0.0
  %339 = vmatpush2.msra.mxu0 0.0
  %340 = vmatprep.subr.mxu0 0.0
  %341 = vmatpush2.msra.mxu0 0.0
  %342 = vmatprep.subr.mxu0 0.0
  %343 = vmatpush2.msra.mxu0 0.0
  %344 = vmatprep.mubr.f32.mxu0 0.0
  %345 = vmatmul.mubr.f32.gmra.mxu0 %v278
  %v346 = vpop.f32.mrf.mxu0
  %v347 = vadd.f32 0.0, %v346
  %v348 = vpop.f32.mrf.mxu0
  %v349 = vadd.f32 0.0, %v348
  %350 = vdwg.mxu0
  %v351 = vsel %vm151, %v347, %v349
  %v352 = vld [vmem:[#allocation2] sm:$0xc]
  %v353 = vld [vmem:[#allocation2 + $0x18] sm:$0x30]
  %v355 = vrot.slane %v352, 2
  %v358 = vrot.slane %v353, 2
  %v360 = vsel %vm235, %v355, %v358
  %v361 = vadd.f32 %v360, %v351
  %v362 = vxor.u32 %v361, 2147483648
  %v363 = vmul.f32 %v362, 1.442695
  %v364 = vpow.pop %v363
  %v365 = vadd.f32 %v364, 1.0
  %v366 = vrcp.pop %v365
  %v367 = vmul.f32 1.0, %v366
  %v368 = vtanh.pop %v361
  %v369 = vmul.f32 %v367, %v259
  %371 = vrot.lane.b32.xlu0 %v368, 64
  %v372 = vpop.permute.xlu0 %371
  %v374 = vmul.f32 %v367, %v372
  %376 = vrot.lane.b32.xlu0 %v374, 32
  %v377 = vpop.permute.xlu0 %376
  %v379 = vadd.f32 %v369, %v377
  %v380 = vtanh.pop %v379
  %382 = vrot.lane.b32.xlu0 %v380, 64
  %v383 = vpop.permute.xlu0 %382
  %v385 = vmul.f32 %v367, %v383
  %387 = vrot.lane.b32.xlu0 %v385, 32
  %v388 = vpop.permute.xlu0 %387
  %s390 = scalar_lea.vmem %s6, 2
  %391 = vst.msk [vmem:[%s390] sm:$0x3] %vm270, %v388
  %392 = vrot.lane.b32.xlu0 %v385, 64
  %v393 = vpop.permute.xlu0 %392
  %s395 = scalar_lea.vmem %s6, 12
  %396 = vst.msk [vmem:[%s395 - $0x2] sm:$0xc] %vm276, %v393
  %v397 = vsel %vm154, %v388, 0
  %399 = vmatprep.subr.mxu0 0.0
  %400 = vmatpush1.msra.mxu0 0.0
  %401 = vmatprep.subr.mxu0 0.0
  %402 = vmatpush1.msra.mxu0 0.0
  %403 = vmatprep.subr.mxu0 0.0
  %404 = vmatpush1.msra.mxu0 0.0
  %405 = vmatprep.subr.mxu0 0.0
  %406 = vmatpush1.msra.mxu0 0.0
  %407 = vmatprep.subr.mxu0 0.0
  %408 = vmatpush1.msra.mxu0 0.0
  %409 = vmatprep.subr.mxu0 0.0
  %410 = vmatpush1.msra.mxu0 0.0
  %411 = vmatprep.subr.mxu0 0.0
  %412 = vmatpush1.msra.mxu0 0.0
  %413 = vmatprep.subr.mxu0 0.0
  %414 = vmatpush1.msra.mxu0 0.0
  %415 = vmatprep.subr.mxu0 0.0
  %416 = vmatpush1.msra.mxu0 0.0
  %417 = vmatprep.subr.mxu0 0.0
  %418 = vmatpush1.msra.mxu0 0.0
  %419 = vmatprep.subr.mxu0 0.0
  %420 = vmatpush1.msra.mxu0 0.0
  %421 = vmatprep.subr.mxu0 0.0
  %422 = vmatpush1.msra.mxu0 0.0
  %423 = vmatprep.subr.mxu0 %v148
  %424 = vmatpush1.msra.mxu0 %v147
  %425 = vmatprep.subr.mxu0 %v146
  %426 = vmatpush1.msra.mxu0 %v145
  %427 = vmatprep.subr.mxu0 %v144
  %428 = vmatpush1.msra.mxu0 %v143
  %429 = vmatprep.subr.mxu0 %v142
  %430 = vmatpush1.msra.mxu0 %v141
  %431 = vmatprep.subr.mxu0 0.0
  %432 = vmatpush2.msra.mxu0 0.0
  %433 = vmatprep.subr.mxu0 0.0
  %434 = vmatpush2.msra.mxu0 0.0
  %435 = vmatprep.subr.mxu0 0.0
  %436 = vmatpush2.msra.mxu0 0.0
  %437 = vmatprep.subr.mxu0 0.0
  %438 = vmatpush2.msra.mxu0 0.0
  %439 = vmatprep.subr.mxu0 0.0
  %440 = vmatpush2.msra.mxu0 0.0
  %441 = vmatprep.subr.mxu0 0.0
  %442 = vmatpush2.msra.mxu0 0.0
  %443 = vmatprep.subr.mxu0 0.0
  %444 = vmatpush2.msra.mxu0 0.0
  %445 = vmatprep.subr.mxu0 0.0
  %446 = vmatpush2.msra.mxu0 0.0
  %447 = vmatprep.subr.mxu0 0.0
  %448 = vmatpush2.msra.mxu0 0.0
  %449 = vmatprep.subr.mxu0 0.0
  %450 = vmatpush2.msra.mxu0 0.0
  %451 = vmatprep.subr.mxu0 0.0
  %452 = vmatpush2.msra.mxu0 0.0
  %453 = vmatprep.subr.mxu0 0.0
  %454 = vmatpush2.msra.mxu0 0.0
  %455 = vmatprep.subr.mxu0 0.0
  %456 = vmatpush2.msra.mxu0 0.0
  %457 = vmatprep.subr.mxu0 0.0
  %458 = vmatpush2.msra.mxu0 0.0
  %459 = vmatprep.subr.mxu0 0.0
  %460 = vmatpush2.msra.mxu0 0.0
  %461 = vmatprep.subr.mxu0 0.0
  %462 = vmatpush2.msra.mxu0 0.0
  %463 = vmatprep.mubr.f32.mxu0 0.0
  %464 = vmatmul.mubr.f32.gmra.mxu0 %v397
  %v465 = vpop.f32.mrf.mxu0
  %v466 = vadd.f32 0.0, %v465
  %v467 = vpop.f32.mrf.mxu0
  %v468 = vadd.f32 0.0, %v467
  %469 = vdwg.mxu0
  %v470 = vsel %vm151, %v466, %v468
  %v471 = vld [vmem:[#allocation2] sm:$0x30]
  %v472 = vld [vmem:[#allocation2 + $0x18] sm:$0xc]
  %v474 = vrot.slane %v471, 4
  %v476 = vsel %vm235, %v474, %v472
  %v477 = vadd.f32 %v476, %v470
  %v478 = vxor.u32 %v477, 2147483648
  %v479 = vmul.f32 %v478, 1.442695
  %v480 = vpow.pop %v479
  %v481 = vadd.f32 %v480, 1.0
  %v482 = vrcp.pop %v481
  %v483 = vmul.f32 1.0, %v482
  %v484 = vtanh.pop %v477
  %v485 = vmul.f32 %v483, %v379
  %487 = vrot.lane.b32.xlu0 %v484, 64
  %v488 = vpop.permute.xlu0 %487
  %v490 = vmul.f32 %v483, %v488
  %492 = vrot.lane.b32.xlu0 %v490, 32
  %v493 = vpop.permute.xlu0 %492
  %v495 = vadd.f32 %v485, %v493
  %v496 = vtanh.pop %v495
  %498 = vrot.lane.b32.xlu0 %v496, 64
  %v499 = vpop.permute.xlu0 %498
  %v501 = vmul.f32 %v483, %v499
  %503 = vrot.lane.b32.xlu0 %v501, 32
  %v504 = vpop.permute.xlu0 %503
  %s506 = scalar_lea.vmem %s6, 4
  %507 = vst.msk [vmem:[%s506] sm:$0x3] %vm270, %v504
  %508 = vrot.lane.b32.xlu0 %v501, 64
  %v509 = vpop.permute.xlu0 %508
  %s511 = scalar_lea.vmem %s6, 10
  %512 = vst.msk [vmem:[%s511 - $0x2] sm:$0xc] %vm276, %v509
  %v513 = vsel %vm154, %v504, 0
  %515 = vmatprep.subr.mxu0 0.0
  %516 = vmatpush1.msra.mxu0 0.0
  %517 = vmatprep.subr.mxu0 0.0
  %518 = vmatpush1.msra.mxu0 0.0
  %519 = vmatprep.subr.mxu0 0.0
  %520 = vmatpush1.msra.mxu0 0.0
  %521 = vmatprep.subr.mxu0 0.0
  %522 = vmatpush1.msra.mxu0 0.0
  %523 = vmatprep.subr.mxu0 0.0
  %524 = vmatpush1.msra.mxu0 0.0
  %525 = vmatprep.subr.mxu0 0.0
  %526 = vmatpush1.msra.mxu0 0.0
  %527 = vmatprep.subr.mxu0 0.0
  %528 = vmatpush1.msra.mxu0 0.0
  %529 = vmatprep.subr.mxu0 0.0
  %530 = vmatpush1.msra.mxu0 0.0
  %531 = vmatprep.subr.mxu0 0.0
  %532 = vmatpush1.msra.mxu0 0.0
  %533 = vmatprep.subr.mxu0 0.0
  %534 = vmatpush1.msra.mxu0 0.0
  %535 = vmatprep.subr.mxu0 0.0
  %536 = vmatpush1.msra.mxu0 0.0
  %537 = vmatprep.subr.mxu0 0.0
  %538 = vmatpush1.msra.mxu0 0.0
  %539 = vmatprep.subr.mxu0 %v148
  %540 = vmatpush1.msra.mxu0 %v147
  %541 = vmatprep.subr.mxu0 %v146
  %542 = vmatpush1.msra.mxu0 %v145
  %543 = vmatprep.subr.mxu0 %v144
  %544 = vmatpush1.msra.mxu0 %v143
  %545 = vmatprep.subr.mxu0 %v142
  %546 = vmatpush1.msra.mxu0 %v141
  %547 = vmatprep.subr.mxu0 0.0
  %548 = vmatpush2.msra.mxu0 0.0
  %549 = vmatprep.subr.mxu0 0.0
  %550 = vmatpush2.msra.mxu0 0.0
  %551 = vmatprep.subr.mxu0 0.0
  %552 = vmatpush2.msra.mxu0 0.0
  %553 = vmatprep.subr.mxu0 0.0
  %554 = vmatpush2.msra.mxu0 0.0
  %555 = vmatprep.subr.mxu0 0.0
  %556 = vmatpush2.msra.mxu0 0.0
  %557 = vmatprep.subr.mxu0 0.0
  %558 = vmatpush2.msra.mxu0 0.0
  %559 = vmatprep.subr.mxu0 0.0
  %560 = vmatpush2.msra.mxu0 0.0
  %561 = vmatprep.subr.mxu0 0.0
  %562 = vmatpush2.msra.mxu0 0.0
  %563 = vmatprep.subr.mxu0 0.0
  %564 = vmatpush2.msra.mxu0 0.0
  %565 = vmatprep.subr.mxu0 0.0
  %566 = vmatpush2.msra.mxu0 0.0
  %567 = vmatprep.subr.mxu0 0.0
  %568 = vmatpush2.msra.mxu0 0.0
  %569 = vmatprep.subr.mxu0 0.0
  %570 = vmatpush2.msra.mxu0 0.0
  %571 = vmatprep.subr.mxu0 0.0
  %572 = vmatpush2.msra.mxu0 0.0
  %573 = vmatprep.subr.mxu0 0.0
  %574 = vmatpush2.msra.mxu0 0.0
  %575 = vmatprep.subr.mxu0 0.0
  %576 = vmatpush2.msra.mxu0 0.0
  %577 = vmatprep.subr.mxu0 0.0
  %578 = vmatpush2.msra.mxu0 0.0
  %579 = vmatprep.mubr.f32.mxu0 0.0
  %580 = vmatmul.mubr.f32.gmra.mxu0 %v513
  %v581 = vpop.f32.mrf.mxu0
  %v582 = vadd.f32 0.0, %v581
  %v583 = vpop.f32.mrf.mxu0
  %v584 = vadd.f32 0.0, %v583
  %585 = vdwg.mxu0
  %v586 = vsel %vm151, %v582, %v584
  %v587 = vld [vmem:[#allocation2] sm:$0xc0]
  %v588 = vld [vmem:[#allocation2 + $0x18] sm:$0x3]
  %v590 = vrot.slane %v587, 6
  %v593 = vrot.slane %v588, 6
  %v595 = vsel %vm235, %v590, %v593
  %v596 = vadd.f32 %v595, %v586
  %v597 = vxor.u32 %v596, 2147483648
  %v598 = vmul.f32 %v597, 1.442695
  %v599 = vpow.pop %v598
  %v600 = vadd.f32 %v599, 1.0
  %v601 = vrcp.pop %v600
  %v602 = vmul.f32 1.0, %v601
  %v603 = vtanh.pop %v596
  %v604 = vmul.f32 %v602, %v495
  %606 = vrot.lane.b32.xlu0 %v603, 64
  %v607 = vpop.permute.xlu0 %606
  %v609 = vmul.f32 %v602, %v607
  %611 = vrot.lane.b32.xlu0 %v609, 32
  %v612 = vpop.permute.xlu0 %611
  %v614 = vadd.f32 %v604, %v612
  %v615 = vtanh.pop %v614
  %617 = vrot.lane.b32.xlu0 %v615, 64
  %v618 = vpop.permute.xlu0 %617
  %v620 = vmul.f32 %v602, %v618
  %622 = vrot.lane.b32.xlu0 %v620, 32
  %v623 = vpop.permute.xlu0 %622
  %s625 = scalar_lea.vmem %s6, 6
  %626 = vst.msk [vmem:[%s625] sm:$0x3] %vm270, %v623
  %627 = vrot.lane.b32.xlu0 %v620, 64
  %v628 = vpop.permute.xlu0 %627
  %s630 = scalar_lea.vmem %s6, 8
  %631 = vst.msk [vmem:[%s630 - $0x2] sm:$0xc] %vm276, %v628
  %v632 = vsel %vm154, %v623, 0
  %634 = vmatprep.subr.mxu0 0.0
  %635 = vmatpush1.msra.mxu0 0.0
  %636 = vmatprep.subr.mxu0 0.0
  %637 = vmatpush1.msra.mxu0 0.0
  %638 = vmatprep.subr.mxu0 0.0
  %639 = vmatpush1.msra.mxu0 0.0
  %640 = vmatprep.subr.mxu0 0.0
  %641 = vmatpush1.msra.mxu0 0.0
  %642 = vmatprep.subr.mxu0 0.0
  %643 = vmatpush1.msra.mxu0 0.0
  %644 = vmatprep.subr.mxu0 0.0
  %645 = vmatpush1.msra.mxu0 0.0
  %646 = vmatprep.subr.mxu0 0.0
  %647 = vmatpush1.msra.mxu0 0.0
  %648 = vmatprep.subr.mxu0 0.0
  %649 = vmatpush1.msra.mxu0 0.0
  %650 = vmatprep.subr.mxu0 0.0
  %651 = vmatpush1.msra.mxu0 0.0
  %652 = vmatprep.subr.mxu0 0.0
  %653 = vmatpush1.msra.mxu0 0.0
  %654 = vmatprep.subr.mxu0 0.0
  %655 = vmatpush1.msra.mxu0 0.0
  %656 = vmatprep.subr.mxu0 0.0
  %657 = vmatpush1.msra.mxu0 0.0
  %658 = vmatprep.subr.mxu0 %v148
  %659 = vmatpush1.msra.mxu0 %v147
  %660 = vmatprep.subr.mxu0 %v146
  %661 = vmatpush1.msra.mxu0 %v145
  %662 = vmatprep.subr.mxu0 %v144
  %663 = vmatpush1.msra.mxu0 %v143
  %664 = vmatprep.subr.mxu0 %v142
  %665 = vmatpush1.msra.mxu0 %v141
  %666 = vmatprep.subr.mxu0 0.0
  %667 = vmatpush2.msra.mxu0 0.0
  %668 = vmatprep.subr.mxu0 0.0
  %669 = vmatpush2.msra.mxu0 0.0
  %670 = vmatprep.subr.mxu0 0.0
  %671 = vmatpush2.msra.mxu0 0.0
  %672 = vmatprep.subr.mxu0 0.0
  %673 = vmatpush2.msra.mxu0 0.0
  %674 = vmatprep.subr.mxu0 0.0
  %675 = vmatpush2.msra.mxu0 0.0
  %676 = vmatprep.subr.mxu0 0.0
  %677 = vmatpush2.msra.mxu0 0.0
  %678 = vmatprep.subr.mxu0 0.0
  %679 = vmatpush2.msra.mxu0 0.0
  %680 = vmatprep.subr.mxu0 0.0
  %681 = vmatpush2.msra.mxu0 0.0
  %682 = vmatprep.subr.mxu0 0.0
  %683 = vmatpush2.msra.mxu0 0.0
  %684 = vmatprep.subr.mxu0 0.0
  %685 = vmatpush2.msra.mxu0 0.0
  %686 = vmatprep.subr.mxu0 0.0
  %687 = vmatpush2.msra.mxu0 0.0
  %688 = vmatprep.subr.mxu0 0.0
  %689 = vmatpush2.msra.mxu0 0.0
  %690 = vmatprep.subr.mxu0 0.0
  %691 = vmatpush2.msra.mxu0 0.0
  %692 = vmatprep.subr.mxu0 0.0
  %693 = vmatpush2.msra.mxu0 0.0
  %694 = vmatprep.subr.mxu0 0.0
  %695 = vmatpush2.msra.mxu0 0.0
  %696 = vmatprep.subr.mxu0 0.0
  %697 = vmatpush2.msra.mxu0 0.0
  %698 = vmatprep.mubr.f32.mxu0 0.0
  %699 = vmatmul.mubr.f32.gmra.mxu0 %v632
  %v700 = vpop.f32.mrf.mxu0
  %v701 = vadd.f32 0.0, %v700
  %v702 = vpop.f32.mrf.mxu0
  %v703 = vadd.f32 0.0, %v702
  %704 = vdwg.mxu0
  %v705 = vsel %vm151, %v701, %v703
  %v706 = vld [vmem:[#allocation2 + $0x10] sm:$0x3]
  %v707 = vld [vmem:[#allocation2 + $0x8] sm:$0xc0]
  %v709 = vrot.slane %v707, 4
  %v711 = vsel %vm235, %v706, %v709
  %v712 = vadd.f32 %v711, %v705
  %v713 = vxor.u32 %v712, 2147483648
  %v714 = vmul.f32 %v713, 1.442695
  %v715 = vpow.pop %v714
  %v716 = vadd.f32 %v715, 1.0
  %v717 = vrcp.pop %v716
  %v718 = vmul.f32 1.0, %v717
  %v719 = vtanh.pop %v712
  %v720 = vmul.f32 %v718, %v614
  %722 = vrot.lane.b32.xlu0 %v719, 64
  %v723 = vpop.permute.xlu0 %722
  %v725 = vmul.f32 %v718, %v723
  %727 = vrot.lane.b32.xlu0 %v725, 32
  %v728 = vpop.permute.xlu0 %727
  %v730 = vadd.f32 %v720, %v728
  %v731 = vtanh.pop %v730
  %733 = vrot.lane.b32.xlu0 %v731, 64
  %v734 = vpop.permute.xlu0 %733
  %v736 = vmul.f32 %v718, %v734
  %738 = vrot.lane.b32.xlu0 %v736, 32
  %v739 = vpop.permute.xlu0 %738
  %741 = vst.msk [vmem:[%s630] sm:$0x3] %vm270, %v739
  %742 = vrot.lane.b32.xlu0 %v736, 64
  %v743 = vpop.permute.xlu0 %742
  %745 = vst.msk [vmem:[%s625 - $0x2] sm:$0xc] %vm276, %v743
  %v746 = vsel %vm154, %v739, 0
  %748 = vmatprep.subr.mxu0 0.0
  %749 = vmatpush1.msra.mxu0 0.0
  %750 = vmatprep.subr.mxu0 0.0
  %751 = vmatpush1.msra.mxu0 0.0
  %752 = vmatprep.subr.mxu0 0.0
  %753 = vmatpush1.msra.mxu0 0.0
  %754 = vmatprep.subr.mxu0 0.0
  %755 = vmatpush1.msra.mxu0 0.0
  %756 = vmatprep.subr.mxu0 0.0
  %757 = vmatpush1.msra.mxu0 0.0
  %758 = vmatprep.subr.mxu0 0.0
  %759 = vmatpush1.msra.mxu0 0.0
  %760 = vmatprep.subr.mxu0 0.0
  %761 = vmatpush1.msra.mxu0 0.0
  %762 = vmatprep.subr.mxu0 0.0
  %763 = vmatpush1.msra.mxu0 0.0
  %764 = vmatprep.subr.mxu0 0.0
  %765 = vmatpush1.msra.mxu0 0.0
  %766 = vmatprep.subr.mxu0 0.0
  %767 = vmatpush1.msra.mxu0 0.0
  %768 = vmatprep.subr.mxu0 0.0
  %769 = vmatpush1.msra.mxu0 0.0
  %770 = vmatprep.subr.mxu0 0.0
  %771 = vmatpush1.msra.mxu0 0.0
  %772 = vmatprep.subr.mxu0 %v148
  %773 = vmatpush1.msra.mxu0 %v147
  %774 = vmatprep.subr.mxu0 %v146
  %775 = vmatpush1.msra.mxu0 %v145
  %776 = vmatprep.subr.mxu0 %v144
  %777 = vmatpush1.msra.mxu0 %v143
  %778 = vmatprep.subr.mxu0 %v142
  %779 = vmatpush1.msra.mxu0 %v141
  %780 = vmatprep.subr.mxu0 0.0
  %781 = vmatpush2.msra.mxu0 0.0
  %782 = vmatprep.subr.mxu0 0.0
  %783 = vmatpush2.msra.mxu0 0.0
  %784 = vmatprep.subr.mxu0 0.0
  %785 = vmatpush2.msra.mxu0 0.0
  %786 = vmatprep.subr.mxu0 0.0
  %787 = vmatpush2.msra.mxu0 0.0
  %788 = vmatprep.subr.mxu0 0.0
  %789 = vmatpush2.msra.mxu0 0.0
  %790 = vmatprep.subr.mxu0 0.0
  %791 = vmatpush2.msra.mxu0 0.0
  %792 = vmatprep.subr.mxu0 0.0
  %793 = vmatpush2.msra.mxu0 0.0
  %794 = vmatprep.subr.mxu0 0.0
  %795 = vmatpush2.msra.mxu0 0.0
  %796 = vmatprep.subr.mxu0 0.0
  %797 = vmatpush2.msra.mxu0 0.0
  %798 = vmatprep.subr.mxu0 0.0
  %799 = vmatpush2.msra.mxu0 0.0
  %800 = vmatprep.subr.mxu0 0.0
  %801 = vmatpush2.msra.mxu0 0.0
  %802 = vmatprep.subr.mxu0 0.0
  %803 = vmatpush2.msra.mxu0 0.0
  %804 = vmatprep.subr.mxu0 0.0
  %805 = vmatpush2.msra.mxu0 0.0
  %806 = vmatprep.subr.mxu0 0.0
  %807 = vmatpush2.msra.mxu0 0.0
  %808 = vmatprep.subr.mxu0 0.0
  %809 = vmatpush2.msra.mxu0 0.0
  %810 = vmatprep.subr.mxu0 0.0
  %811 = vmatpush2.msra.mxu0 0.0
  %812 = vmatprep.mubr.f32.mxu0 0.0
  %813 = vmatmul.mubr.f32.gmra.mxu0 %v746
  %v814 = vpop.f32.mrf.mxu0
  %v815 = vadd.f32 0.0, %v814
  %v816 = vpop.f32.mrf.mxu0
  %v817 = vadd.f32 0.0, %v816
  %818 = vdwg.mxu0
  %v819 = vsel %vm151, %v815, %v817
  %v820 = vld [vmem:[#allocation2 + $0x10] sm:$0xc]
  %v821 = vld [vmem:[#allocation2 + $0x8] sm:$0x30]
  %v823 = vrot.slane %v820, 2
  %v826 = vrot.slane %v821, 2
  %v828 = vsel %vm235, %v823, %v826
  %v829 = vadd.f32 %v828, %v819
  %v830 = vxor.u32 %v829, 2147483648
  %v831 = vmul.f32 %v830, 1.442695
  %v832 = vpow.pop %v831
  %v833 = vadd.f32 %v832, 1.0
  %v834 = vrcp.pop %v833
  %v835 = vmul.f32 1.0, %v834
  %v836 = vtanh.pop %v829
  %v837 = vmul.f32 %v835, %v730
  %839 = vrot.lane.b32.xlu0 %v836, 64
  %v840 = vpop.permute.xlu0 %839
  %v842 = vmul.f32 %v835, %v840
  %844 = vrot.lane.b32.xlu0 %v842, 32
  %v845 = vpop.permute.xlu0 %844
  %v847 = vadd.f32 %v837, %v845
  %v848 = vtanh.pop %v847
  %850 = vrot.lane.b32.xlu0 %v848, 64
  %v851 = vpop.permute.xlu0 %850
  %v853 = vmul.f32 %v835, %v851
  %855 = vrot.lane.b32.xlu0 %v853, 32
  %v856 = vpop.permute.xlu0 %855
  %858 = vst.msk [vmem:[%s511] sm:$0x3] %vm270, %v856
  %859 = vrot.lane.b32.xlu0 %v853, 64
  %v860 = vpop.permute.xlu0 %859
  %862 = vst.msk [vmem:[%s506 - $0x2] sm:$0xc] %vm276, %v860
  %v863 = vsel %vm154, %v856, 0
  %865 = vmatprep.subr.mxu0 0.0
  %866 = vmatpush1.msra.mxu0 0.0
  %867 = vmatprep.subr.mxu0 0.0
  %868 = vmatpush1.msra.mxu0 0.0
  %869 = vmatprep.subr.mxu0 0.0
  %870 = vmatpush1.msra.mxu0 0.0
  %871 = vmatprep.subr.mxu0 0.0
  %872 = vmatpush1.msra.mxu0 0.0
  %873 = vmatprep.subr.mxu0 0.0
  %874 = vmatpush1.msra.mxu0 0.0
  %875 = vmatprep.subr.mxu0 0.0
  %876 = vmatpush1.msra.mxu0 0.0
  %877 = vmatprep.subr.mxu0 0.0
  %878 = vmatpush1.msra.mxu0 0.0
  %879 = vmatprep.subr.mxu0 0.0
  %880 = vmatpush1.msra.mxu0 0.0
  %881 = vmatprep.subr.mxu0 0.0
  %882 = vmatpush1.msra.mxu0 0.0
  %883 = vmatprep.subr.mxu0 0.0
  %884 = vmatpush1.msra.mxu0 0.0
  %885 = vmatprep.subr.mxu0 0.0
  %886 = vmatpush1.msra.mxu0 0.0
  %887 = vmatprep.subr.mxu0 0.0
  %888 = vmatpush1.msra.mxu0 0.0
  %889 = vmatprep.subr.mxu0 %v148
  %890 = vmatpush1.msra.mxu0 %v147
  %891 = vmatprep.subr.mxu0 %v146
  %892 = vmatpush1.msra.mxu0 %v145
  %893 = vmatprep.subr.mxu0 %v144
  %894 = vmatpush1.msra.mxu0 %v143
  %895 = vmatprep.subr.mxu0 %v142
  %896 = vmatpush1.msra.mxu0 %v141
  %897 = vmatprep.subr.mxu0 0.0
  %898 = vmatpush2.msra.mxu0 0.0
  %899 = vmatprep.subr.mxu0 0.0
  %900 = vmatpush2.msra.mxu0 0.0
  %901 = vmatprep.subr.mxu0 0.0
  %902 = vmatpush2.msra.mxu0 0.0
  %903 = vmatprep.subr.mxu0 0.0
  %904 = vmatpush2.msra.mxu0 0.0
  %905 = vmatprep.subr.mxu0 0.0
  %906 = vmatpush2.msra.mxu0 0.0
  %907 = vmatprep.subr.mxu0 0.0
  %908 = vmatpush2.msra.mxu0 0.0
  %909 = vmatprep.subr.mxu0 0.0
  %910 = vmatpush2.msra.mxu0 0.0
  %911 = vmatprep.subr.mxu0 0.0
  %912 = vmatpush2.msra.mxu0 0.0
  %913 = vmatprep.subr.mxu0 0.0
  %914 = vmatpush2.msra.mxu0 0.0
  %915 = vmatprep.subr.mxu0 0.0
  %916 = vmatpush2.msra.mxu0 0.0
  %917 = vmatprep.subr.mxu0 0.0
  %918 = vmatpush2.msra.mxu0 0.0
  %919 = vmatprep.subr.mxu0 0.0
  %920 = vmatpush2.msra.mxu0 0.0
  %921 = vmatprep.subr.mxu0 0.0
  %922 = vmatpush2.msra.mxu0 0.0
  %923 = vmatprep.subr.mxu0 0.0
  %924 = vmatpush2.msra.mxu0 0.0
  %925 = vmatprep.subr.mxu0 0.0
  %926 = vmatpush2.msra.mxu0 0.0
  %927 = vmatprep.subr.mxu0 0.0
  %928 = vmatpush2.msra.mxu0 0.0
  %929 = vmatprep.mubr.f32.mxu0 0.0
  %930 = vmatmul.mubr.f32.gmra.mxu0 %v863
  %v931 = vpop.f32.mrf.mxu0
  %v932 = vadd.f32 0.0, %v931
  %v933 = vpop.f32.mrf.mxu0
  %v934 = vadd.f32 0.0, %v933
  %935 = vdwg.mxu0
  %v936 = vsel %vm151, %v932, %v934
  %v937 = vld [vmem:[#allocation2 + $0x10] sm:$0x30]
  %v938 = vld [vmem:[#allocation2 + $0x8] sm:$0xc]
  %v940 = vrot.slane %v937, 4
  %v942 = vsel %vm235, %v940, %v938
  %v943 = vadd.f32 %v942, %v936
  %v944 = vxor.u32 %v943, 2147483648
  %v945 = vmul.f32 %v944, 1.442695
  %v946 = vpow.pop %v945
  %v947 = vadd.f32 %v946, 1.0
  %v948 = vrcp.pop %v947
  %v949 = vmul.f32 1.0, %v948
  %v950 = vtanh.pop %v943
  %v951 = vmul.f32 %v949, %v847
  %953 = vrot.lane.b32.xlu0 %v950, 64
  %v954 = vpop.permute.xlu0 %953
  %v956 = vmul.f32 %v949, %v954
  %958 = vrot.lane.b32.xlu0 %v956, 32
  %v959 = vpop.permute.xlu0 %958
  %v961 = vadd.f32 %v951, %v959
  %v962 = vtanh.pop %v961
  %964 = vrot.lane.b32.xlu0 %v962, 64
  %v965 = vpop.permute.xlu0 %964
  %v967 = vmul.f32 %v949, %v965
  %969 = vrot.lane.b32.xlu0 %v967, 32
  %v970 = vpop.permute.xlu0 %969
  %972 = vst.msk [vmem:[%s395] sm:$0x3] %vm270, %v970
  %973 = vrot.lane.b32.xlu0 %v967, 64
  %v974 = vpop.permute.xlu0 %973
  %976 = vst.msk [vmem:[%s390 - $0x2] sm:$0xc] %vm276, %v974
  %v977 = vsel %vm154, %v970, 0
  %979 = vmatprep.subr.mxu0 0.0
  %980 = vmatpush1.msra.mxu0 0.0
  %981 = vmatprep.subr.mxu0 0.0
  %982 = vmatpush1.msra.mxu0 0.0
  %983 = vmatprep.subr.mxu0 0.0
  %984 = vmatpush1.msra.mxu0 0.0
  %985 = vmatprep.subr.mxu0 0.0
  %986 = vmatpush1.msra.mxu0 0.0
  %987 = vmatprep.subr.mxu0 0.0
  %988 = vmatpush1.msra.mxu0 0.0
  %989 = vmatprep.subr.mxu0 0.0
  %990 = vmatpush1.msra.mxu0 0.0
  %991 = vmatprep.subr.mxu0 0.0
  %992 = vmatpush1.msra.mxu0 0.0
  %993 = vmatprep.subr.mxu0 0.0
  %994 = vmatpush1.msra.mxu0 0.0
  %995 = vmatprep.subr.mxu0 0.0
  %996 = vmatpush1.msra.mxu0 0.0
  %997 = vmatprep.subr.mxu0 0.0
  %998 = vmatpush1.msra.mxu0 0.0
  %999 = vmatprep.subr.mxu0 0.0
  %1000 = vmatpush1.msra.mxu0 0.0
  %1001 = vmatprep.subr.mxu0 0.0
  %1002 = vmatpush1.msra.mxu0 0.0
  %1003 = vmatprep.subr.mxu0 %v148
  %1004 = vmatpush1.msra.mxu0 %v147
  %1005 = vmatprep.subr.mxu0 %v146
  %1006 = vmatpush1.msra.mxu0 %v145
  %1007 = vmatprep.subr.mxu0 %v144
  %1008 = vmatpush1.msra.mxu0 %v143
  %1009 = vmatprep.subr.mxu0 %v142
  %1010 = vmatpush1.msra.mxu0 %v141
  %1011 = vmatprep.subr.mxu0 0.0
  %1012 = vmatpush2.msra.mxu0 0.0
  %1013 = vmatprep.subr.mxu0 0.0
  %1014 = vmatpush2.msra.mxu0 0.0
  %1015 = vmatprep.subr.mxu0 0.0
  %1016 = vmatpush2.msra.mxu0 0.0
  %1017 = vmatprep.subr.mxu0 0.0
  %1018 = vmatpush2.msra.mxu0 0.0
  %1019 = vmatprep.subr.mxu0 0.0
  %1020 = vmatpush2.msra.mxu0 0.0
  %1021 = vmatprep.subr.mxu0 0.0
  %1022 = vmatpush2.msra.mxu0 0.0
  %1023 = vmatprep.subr.mxu0 0.0
  %1024 = vmatpush2.msra.mxu0 0.0
  %1025 = vmatprep.subr.mxu0 0.0
  %1026 = vmatpush2.msra.mxu0 0.0
  %1027 = vmatprep.subr.mxu0 0.0
  %1028 = vmatpush2.msra.mxu0 0.0
  %1029 = vmatprep.subr.mxu0 0.0
  %1030 = vmatpush2.msra.mxu0 0.0
  %1031 = vmatprep.subr.mxu0 0.0
  %1032 = vmatpush2.msra.mxu0 0.0
  %1033 = vmatprep.subr.mxu0 0.0
  %1034 = vmatpush2.msra.mxu0 0.0
  %1035 = vmatprep.subr.mxu0 0.0
  %1036 = vmatpush2.msra.mxu0 0.0
  %1037 = vmatprep.subr.mxu0 0.0
  %1038 = vmatpush2.msra.mxu0 0.0
  %1039 = vmatprep.subr.mxu0 0.0
  %1040 = vmatpush2.msra.mxu0 0.0
  %1041 = vmatprep.subr.mxu0 0.0
  %1042 = vmatpush2.msra.mxu0 0.0
  %1043 = vmatprep.mubr.f32.mxu0 0.0
  %1044 = vmatmul.mubr.f32.gmra.mxu0 %v977
  %v1045 = vpop.f32.mrf.mxu0
  %v1046 = vadd.f32 0.0, %v1045
  %v1047 = vpop.f32.mrf.mxu0
  %v1048 = vadd.f32 0.0, %v1047
  %1049 = vdwg.mxu0
  %v1050 = vsel %vm151, %v1046, %v1048
  %v1051 = vld [vmem:[#allocation2 + $0x10] sm:$0xc0]
  %v1052 = vld [vmem:[#allocation2 + $0x8] sm:$0x3]
  %v1054 = vrot.slane %v1051, 6
  %v1057 = vrot.slane %v1052, 6
  %v1059 = vsel %vm235, %v1054, %v1057
  %v1060 = vadd.f32 %v1059, %v1050
  %v1061 = vxor.u32 %v1060, 2147483648
  %v1062 = vmul.f32 %v1061, 1.442695
  %v1063 = vpow.pop %v1062
  %v1064 = vadd.f32 %v1063, 1.0
  %v1065 = vrcp.pop %v1064
  %v1066 = vmul.f32 1.0, %v1065
  %v1067 = vtanh.pop %v1060
  %v1068 = vmul.f32 %v1066, %v961
  %1070 = vrot.lane.b32.xlu0 %v1067, 64
  %v1071 = vpop.permute.xlu0 %1070
  %v1073 = vmul.f32 %v1066, %v1071
  %1075 = vrot.lane.b32.xlu0 %v1073, 32
  %v1076 = vpop.permute.xlu0 %1075
  %v1078 = vadd.f32 %v1068, %v1076
  %v1079 = vtanh.pop %v1078
  %1081 = vrot.lane.b32.xlu0 %v1079, 64
  %v1082 = vpop.permute.xlu0 %1081
  %v1084 = vmul.f32 %v1066, %v1082
  %1086 = vrot.lane.b32.xlu0 %v1084, 32
  %v1087 = vpop.permute.xlu0 %1086
  %1089 = vst.msk [vmem:[%s275] sm:$0x3] %vm270, %v1087
  %1090 = vrot.lane.b32.xlu0 %v1084, 64
  %v1091 = vpop.permute.xlu0 %1090
  %1093 = vst.msk [vmem:[%s6 - $0x2] sm:$0xc] %vm276, %v1091
  // Predicated region
  $region26: #{bilstm_forward.3} parent=0 // pred_check
    _
  $region27: #{bilstm_forward.3} parent=0 // pred_check_branch
    %1095 = sbr.rel (0) target = $region29
  $region28: #{bilstm_forward.3} parent=0 // pred_region
    _
  $region29: #{bilstm_forward.3} parent=0 // pred_fallthru
    _
  // Predicated region
  $region30: #{bilstm_forward.3} parent=0 // pred_check
    _
  $region31: #{bilstm_forward.3} parent=0 // pred_check_branch
    %1097 = sbr.rel (0) target = $region33
  $region32: #{bilstm_forward.3} parent=0 // pred_region
    _
  $region33: #{bilstm_forward.3} parent=0 // pred_fallthru
    _

</llo_original>
